<compile_context>
chip_gen: v7x
topology: tpu7x:2x2x1
jax: 0.10.0
libtpu: 0.0.40
codegen_flags: <defaults>
</compile_context>

<pallas_src>
import functools
import math

import jax
import jax.numpy as jnp
from jax import lax
from jax.experimental import pallas as pl
from jax.experimental.pallas import tpu as pltpu


# ----------------------------------------------------------------------------
# Fused GhostModule kernel
# ----------------------------------------------------------------------------
def _ghost_fused_kernel(x_int_ref, x_top_ref, x_bot_ref,
                        w1_ref, b1_ref, wdw_ref, b2_ref,
                        o_ref, x1buf,
                        *, th, W, Cin, C1, apply_relu):
    # x_int_ref: (1, th, W, Cin)   interior rows of the strip
    # x_top/bot_ref: (1, 1, W, Cin) halo rows (clamped at the image border)
    # w1_ref: (Cin, C1)  b1_ref: (1, C1)  wdw_ref: (9, C1)  b2_ref: (1, C1)
    # o_ref: (1, th, W, 2*C1)
    # x1buf: VMEM scratch (th+2, W+2, C1) — zero-padded x1 window for the dw conv
    h = pl.program_id(1)
    n_strips = pl.num_programs(1)

    w1 = w1_ref[...]          # BN scale already folded into the weights
    b1 = b1_ref[...]
    wdw = wdw_ref[...]
    b2 = b2_ref[...]

    def conv1x1(xp):          # xp: (R, W, Cin) f32  ->  (R, W, C1)
        acc = jnp.zeros(xp.shape[:2] + (C1,), jnp.float32)
        for c in range(Cin):  # tiny Cin: VPU broadcast-MACs, skip the MXU
            acc = acc + xp[:, :, c:c + 1] * w1[c:c + 1, :]
        y = acc + b1
        return jnp.maximum(y, 0.0) if apply_relu else y

    x1_int = conv1x1(x_int_ref[0].astype(jnp.float32))   # (th, W, C1)
    x1_top = conv1x1(x_top_ref[0].astype(jnp.float32))   # (1, W, C1)
    x1_bot = conv1x1(x_bot_ref[0].astype(jnp.float32))   # (1, W, C1)

    # Rows outside the image are zero padding of x1 (the dw conv pads x1, not x).
    x1_top = jnp.where(h == 0, 0.0, x1_top)
    x1_bot = jnp.where(h == n_strips - 1, 0.0, x1_bot)

    # Assemble the zero-padded x1 window in VMEM scratch.
    zcol = jnp.zeros((th + 2, 1, C1), jnp.float32)
    x1buf[:, 0:1, :] = zcol                    # left pad column
    x1buf[:, W + 1:W + 2, :] = zcol            # right pad column
    x1buf[0:1, 1:W + 1, :] = x1_top
    x1buf[1:th + 1, 1:W + 1, :] = x1_int
    x1buf[th + 1:th + 2, 1:W + 1, :] = x1_bot

    # 3x3 depthwise conv (BN scale folded into wdw): 9 shifted-window taps.
    acc = jnp.zeros((th, W, C1), jnp.float32)
    for dy in range(3):
        for dx in range(3):
            tap = x1buf[dy:dy + th, dx:dx + W, :]
            acc = acc + tap * wdw[dy * 3 + dx:dy * 3 + dx + 1, :]
    x2 = acc + b2
    if apply_relu:
        x2 = jnp.maximum(x2, 0.0)

    # Fused channel concat: write [x1 | x2] as a single 2*C1-wide slab.
    o_ref[...] = jnp.concatenate([x1_int, x2], axis=-1)[None].astype(o_ref.dtype)


# ----------------------------------------------------------------------------
# Wrapper
# ----------------------------------------------------------------------------
def fold_bn(gamma, beta, mean, var, eps=1e-5):
    scale = gamma / jnp.sqrt(var + eps)
    bias = beta - mean * scale
    return scale[None, :], bias[None, :]


def _pick_strip_rows(H, W, cin, c1, bytes_budget=2 << 20):
    """Largest divisor of H whose strip stays within a per-buffer VMEM budget."""
    cmax = max(cin, 2 * c1)
    best = 1
    for th in range(1, H + 1):
        if H % th == 0 and th * (W + 2) * cmax * 4 <= bytes_budget:
            best = th
    return best


def ghost_module_forward(x_nchw, params, out_channel, is_linear=False,
                         strip_rows=None):
    N, Cin, H, W = x_nchw.shape
    apply_relu = not is_linear
    C1 = params["w1"].shape[1]

    s1, b1 = fold_bn(params["bn1_gamma"], params["bn1_beta"],
                     params["bn1_mean"], params["bn1_var"])
    s2, b2 = fold_bn(params["bn2_gamma"], params["bn2_beta"],
                     params["bn2_mean"], params["bn2_var"])
    w1f = params["w1"] * s1       # fold BN scale into 1x1 weights  (Cin, C1)
    wdwf = params["w_dw"] * s2    # fold BN scale into dw weights   (9, C1)

    # TODO(synk): if the surrounding model can stay NHWC, drop these boundary
    # transposes (each is an extra full HBM pass executed by XLA).
    x_nhwc = jnp.transpose(x_nchw, (0, 2, 3, 1))

    th = strip_rows if strip_rows is not None else _pick_strip_rows(H, W, Cin, C1)
    assert H % th == 0, (H, th)
    grid = (N, H // th)

    kernel = functools.partial(_ghost_fused_kernel, th=th, W=W, Cin=Cin, C1=C1,
                               apply_relu=apply_relu)
    out_nhwc = pl.pallas_call(
        kernel,
        out_shape=jax.ShapeDtypeStruct((N, H, W, 2 * C1), jnp.float32),
        grid=grid,
        in_specs=[
            # interior rows of the strip
            pl.BlockSpec((1, th, W, Cin), lambda n, h: (n, h, 0, 0)),
            # one-row halos, clamped at the image border (zero-masked in-kernel)
            pl.BlockSpec((1, 1, W, Cin),
                         lambda n, h: (n, jnp.maximum(h * th - 1, 0), 0, 0)),
            pl.BlockSpec((1, 1, W, Cin),
                         lambda n, h: (n, jnp.minimum(h * th + th, H - 1), 0, 0)),
            # folded weights / biases (resident, tiny)
            pl.BlockSpec((Cin, C1), lambda n, h: (0, 0)),
            pl.BlockSpec((1, C1), lambda n, h: (0, 0)),
            pl.BlockSpec((9, C1), lambda n, h: (0, 0)),
            pl.BlockSpec((1, C1), lambda n, h: (0, 0)),
        ],
        out_specs=pl.BlockSpec((1, th, W, 2 * C1), lambda n, h: (n, h, 0, 0)),
        scratch_shapes=[pltpu.VMEM((th + 2, W + 2, C1), jnp.float32)],
        compiler_params=pltpu.CompilerParams(
            dimension_semantics=("parallel", "parallel"),
            vmem_limit_bytes=32 * 1024 * 1024),
    )(x_nhwc, x_nhwc, x_nhwc, w1f, b1, wdwf, b2)

    out = out_nhwc[..., :out_channel]           # only copies when out_channel is odd
    return jnp.transpose(out, (0, 3, 1, 2))     # NHWC -> NCHW


# ----------------------------------------------------------------------------
# Parameter construction (matches the PyTorch module's shapes)
# ----------------------------------------------------------------------------
def make_ghost_params(key, in_channel, out_channel):
    init_channel = math.ceil(out_channel / 2)
    k = jax.random.split(key, 10)
    p = {}
    # primary 1x1 conv: PyTorch weight (init_c, in_c, 1, 1) -> (in_c, init_c)
    p["w1"] = 0.1 * jax.random.normal(k[0], (in_channel, init_channel), jnp.float32)
    p["bn1_gamma"] = 1.0 + 0.1 * jax.random.normal(k[1], (init_channel,), jnp.float32)
    p["bn1_beta"] = 0.1 * jax.random.normal(k[2], (init_channel,), jnp.float32)
    p["bn1_mean"] = 0.1 * jax.random.normal(k[3], (init_channel,), jnp.float32)
    p["bn1_var"] = jnp.abs(1.0 + 0.1 * jax.random.normal(k[4], (init_channel,), jnp.float32))
    # cheap op 3x3 depthwise: PyTorch weight (init_c, 1, 3, 3) -> (9, init_c)
    w_dw = 0.1 * jax.random.normal(k[5], (init_channel, 3, 3), jnp.float32)
    p["w_dw"] = jnp.transpose(w_dw, (1, 2, 0)).reshape(9, init_channel)
    p["bn2_gamma"] = 1.0 + 0.1 * jax.random.normal(k[6], (init_channel,), jnp.float32)
    p["bn2_beta"] = 0.1 * jax.random.normal(k[7], (init_channel,), jnp.float32)
    p["bn2_mean"] = 0.1 * jax.random.normal(k[8], (init_channel,), jnp.float32)
    p["bn2_var"] = jnp.abs(1.0 + 0.1 * jax.random.normal(k[9], (init_channel,), jnp.float32))
    return p, init_channel


# ----------------------------------------------------------------------------
# Pure-JAX reference for verification
# ----------------------------------------------------------------------------
def ghost_module_ref(x_nchw, params, out_channel, is_linear=False):
    apply_relu = not is_linear
    s1, b1 = fold_bn(params["bn1_gamma"], params["bn1_beta"],
                     params["bn1_mean"], params["bn1_var"])
    s2, b2 = fold_bn(params["bn2_gamma"], params["bn2_beta"],
                     params["bn2_mean"], params["bn2_var"])
    C1 = params["w1"].shape[1]
    # 1x1 conv
    w1 = jnp.transpose(params["w1"], (1, 0))[:, :, None, None]      # (C1, Cin, 1, 1)
    y1 = lax.conv_general_dilated(x_nchw, w1, (1, 1), "VALID",
                                  dimension_numbers=("NCHW", "OIHW", "NCHW"))
    y1 = y1 * s1[0][None, :, None, None] + b1[0][None, :, None, None]
    if apply_relu:
        y1 = jnp.maximum(y1, 0.0)
    # 3x3 depthwise conv
    w_dw = jnp.transpose(params["w_dw"].reshape(3, 3, C1), (2, 0, 1))[:, None]  # (C1,1,3,3)
    y2 = lax.conv_general_dilated(y1, w_dw, (1, 1), ((1, 1), (1, 1)),
                                  feature_group_count=C1,
                                  dimension_numbers=("NCHW", "OIHW", "NCHW"))
    y2 = y2 * s2[0][None, :, None, None] + b2[0][None, :, None, None]
    if apply_relu:
        y2 = jnp.maximum(y2, 0.0)
    return jnp.concatenate([y1, y2], axis=1)[:, :out_channel]


if __name__ == "__main__":
    key = jax.random.PRNGKey(0)
    k1, k2, k3, k4 = jax.random.split(key, 4)

    # Test 1: default strip size.
    N, Cin, H, W = 2, 4, 16, 16
    out_channel = 8
    x = jax.random.normal(k1, (N, Cin, H, W), jnp.float32)
    params, _ = make_ghost_params(k2, Cin, out_channel)
    out = jax.block_until_ready(ghost_module_forward(x, params, out_channel))
    ref = ghost_module_ref(x, params, out_channel)
    assert out.shape == (N, out_channel, H, W), out.shape
    assert jnp.allclose(out, ref, atol=1e-4, rtol=1e-4), float(jnp.max(jnp.abs(out - ref)))

    # Test 2: multi-strip path (real halo fetch + border zeroing), linear variant.
    out2 = jax.block_until_ready(
        ghost_module_forward(x, params, out_channel, is_linear=True, strip_rows=4))
    ref2 = ghost_module_ref(x, params, out_channel, is_linear=True)
    assert jnp.allclose(out2, ref2, atol=1e-4, rtol=1e-4), float(jnp.max(jnp.abs(out2 - ref2)))

    # Test 3: odd out_channel (exercises the trailing channel slice), Cin != C1.
    N3, Cin3, H3, W3, oc3 = 1, 3, 12, 16, 7
    x3 = jax.random.normal(k3, (N3, Cin3, H3, W3), jnp.float32)
    params3, _ = make_ghost_params(k4, Cin3, oc3)
    out3 = jax.block_until_ready(ghost_module_forward(x3, params3, oc3, strip_rows=4))
    ref3 = ghost_module_ref(x3, params3, oc3)
    assert out3.shape == (N3, oc3, H3, W3), out3.shape
    assert jnp.allclose(out3, ref3, atol=1e-4, rtol=1e-4), float(jnp.max(jnp.abs(out3 - ref3)))

    print("KERNEL_OK")
</pallas_src>

<mosaic_0001>
module attributes {stable_mosaic.version = 11 : i64} {
  func.func @_ghost_fused_kernel(%arg0: i32, %arg1: i32, %arg2: memref<1x16x16x4xf32, #tpu.memory_space<vmem>>, %arg3: memref<1x1x16x4xf32, #tpu.memory_space<vmem>>, %arg4: memref<1x1x16x4xf32, #tpu.memory_space<vmem>>, %arg5: memref<4x4xf32, #tpu.memory_space<vmem>>, %arg6: memref<1x4xf32, #tpu.memory_space<vmem>>, %arg7: memref<9x4xf32, #tpu.memory_space<vmem>>, %arg8: memref<1x4xf32, #tpu.memory_space<vmem>>, %arg9: memref<1x16x16x8xf32, #tpu.memory_space<vmem>>, %arg10: memref<18x18x4xf32, #tpu.memory_space<vmem>>) attributes {dimension_semantics = [#tpu.dimension_semantics<parallel>, #tpu.dimension_semantics<parallel>], iteration_bounds = array<i64: 2, 1>, scalar_prefetch = 0 : i64, scratch_operands = 1 : i64, tpu.core_type = #tpu.core_type<tc>, window_params = [{transform_indices = @transform_0, window_bounds = array<i64: 1, 16, 16, 4>}, {transform_indices = @transform_1, window_bounds = array<i64: 1, 1, 16, 4>}, {transform_indices = @transform_2, window_bounds = array<i64: 1, 1, 16, 4>}, {pipeline_mode = #tpu.pipeline_mode<synchronous>, transform_indices = @transform_3, window_bounds = array<i64: 4, 4>}, {pipeline_mode = #tpu.pipeline_mode<synchronous>, transform_indices = @transform_4, window_bounds = array<i64: 1, 4>}, {pipeline_mode = #tpu.pipeline_mode<synchronous>, transform_indices = @transform_5, window_bounds = array<i64: 9, 4>}, {pipeline_mode = #tpu.pipeline_mode<synchronous>, transform_indices = @transform_6, window_bounds = array<i64: 1, 4>}, {transform_indices = @transform_7, window_bounds = array<i64: 1, 16, 16, 8>}]} {
    %c0 = arith.constant 0 : index
    %c0_0 = arith.constant 0 : index
    %0 = vector.load %arg5[%c0, %c0_0] : memref<4x4xf32, #tpu.memory_space<vmem>>, vector<4x4xf32>
    %c0_1 = arith.constant 0 : index
    %c0_2 = arith.constant 0 : index
    %1 = vector.load %arg6[%c0_1, %c0_2] : memref<1x4xf32, #tpu.memory_space<vmem>>, vector<1x4xf32>
    %c0_3 = arith.constant 0 : index
    %c0_4 = arith.constant 0 : index
    %2 = vector.load %arg7[%c0_3, %c0_4] : memref<9x4xf32, #tpu.memory_space<vmem>>, vector<9x4xf32>
    %c0_5 = arith.constant 0 : index
    %c0_6 = arith.constant 0 : index
    %3 = vector.load %arg8[%c0_5, %c0_6] : memref<1x4xf32, #tpu.memory_space<vmem>>, vector<1x4xf32>
    %c0_7 = arith.constant 0 : index
    %c0_8 = arith.constant 0 : index
    %c0_9 = arith.constant 0 : index
    %c0_10 = arith.constant 0 : index
    %4 = vector.load %arg2[%c0_7, %c0_8, %c0_9, %c0_10] : memref<1x16x16x4xf32, #tpu.memory_space<vmem>>, vector<1x16x16x4xf32>
    %5 = vector.shape_cast %4 : vector<1x16x16x4xf32> to vector<16x16x4xf32>
    %cst = arith.constant 0.000000e+00 : f32
    %6 = vector.broadcast %cst : f32 to vector<16x16x4xf32>
    %7 = vector.extract_strided_slice %5 {offsets = [0, 0, 0], sizes = [16, 16, 1], strides = [1, 1, 1]} : vector<16x16x4xf32> to vector<16x16x1xf32>
    %8 = vector.extract_strided_slice %0 {offsets = [0, 0], sizes = [1, 4], strides = [1, 1]} : vector<4x4xf32> to vector<1x4xf32>
    %9 = vector.shape_cast %8 : vector<1x4xf32> to vector<1x1x4xf32>
    %10 = vector.broadcast %7 : vector<16x16x1xf32> to vector<16x16x4xf32>
    %11 = vector.broadcast %9 : vector<1x1x4xf32> to vector<16x16x4xf32>
    %12 = arith.mulf %10, %11 : vector<16x16x4xf32>
    %13 = arith.addf %6, %12 : vector<16x16x4xf32>
    %14 = vector.extract_strided_slice %5 {offsets = [0, 0, 1], sizes = [16, 16, 1], strides = [1, 1, 1]} : vector<16x16x4xf32> to vector<16x16x1xf32>
    %15 = vector.extract_strided_slice %0 {offsets = [1, 0], sizes = [1, 4], strides = [1, 1]} : vector<4x4xf32> to vector<1x4xf32>
    %16 = vector.shape_cast %15 : vector<1x4xf32> to vector<1x1x4xf32>
    %17 = vector.broadcast %14 : vector<16x16x1xf32> to vector<16x16x4xf32>
    %18 = vector.broadcast %16 : vector<1x1x4xf32> to vector<16x16x4xf32>
    %19 = arith.mulf %17, %18 : vector<16x16x4xf32>
    %20 = arith.addf %13, %19 : vector<16x16x4xf32>
    %21 = vector.extract_strided_slice %5 {offsets = [0, 0, 2], sizes = [16, 16, 1], strides = [1, 1, 1]} : vector<16x16x4xf32> to vector<16x16x1xf32>
    %22 = vector.extract_strided_slice %0 {offsets = [2, 0], sizes = [1, 4], strides = [1, 1]} : vector<4x4xf32> to vector<1x4xf32>
    %23 = vector.shape_cast %22 : vector<1x4xf32> to vector<1x1x4xf32>
    %24 = vector.broadcast %21 : vector<16x16x1xf32> to vector<16x16x4xf32>
    %25 = vector.broadcast %23 : vector<1x1x4xf32> to vector<16x16x4xf32>
    %26 = arith.mulf %24, %25 : vector<16x16x4xf32>
    %27 = arith.addf %20, %26 : vector<16x16x4xf32>
    %28 = vector.extract_strided_slice %5 {offsets = [0, 0, 3], sizes = [16, 16, 1], strides = [1, 1, 1]} : vector<16x16x4xf32> to vector<16x16x1xf32>
    %29 = vector.extract_strided_slice %0 {offsets = [3, 0], sizes = [1, 4], strides = [1, 1]} : vector<4x4xf32> to vector<1x4xf32>
    %30 = vector.shape_cast %29 : vector<1x4xf32> to vector<1x1x4xf32>
    %31 = vector.broadcast %28 : vector<16x16x1xf32> to vector<16x16x4xf32>
    %32 = vector.broadcast %30 : vector<1x1x4xf32> to vector<16x16x4xf32>
    %33 = arith.mulf %31, %32 : vector<16x16x4xf32>
    %34 = arith.addf %27, %33 : vector<16x16x4xf32>
    %35 = vector.shape_cast %1 : vector<1x4xf32> to vector<1x1x4xf32>
    %36 = vector.broadcast %35 : vector<1x1x4xf32> to vector<16x16x4xf32>
    %37 = arith.addf %34, %36 : vector<16x16x4xf32>
    %cst_11 = arith.constant 0.000000e+00 : f32
    %38 = vector.broadcast %cst_11 : f32 to vector<16x16x4xf32>
    %39 = arith.maximumf %37, %38 : vector<16x16x4xf32>
    %c0_12 = arith.constant 0 : index
    %c0_13 = arith.constant 0 : index
    %c0_14 = arith.constant 0 : index
    %c0_15 = arith.constant 0 : index
    %40 = vector.load %arg3[%c0_12, %c0_13, %c0_14, %c0_15] : memref<1x1x16x4xf32, #tpu.memory_space<vmem>>, vector<1x1x16x4xf32>
    %41 = vector.shape_cast %40 : vector<1x1x16x4xf32> to vector<1x16x4xf32>
    %cst_16 = arith.constant 0.000000e+00 : f32
    %42 = vector.broadcast %cst_16 : f32 to vector<1x16x4xf32>
    %43 = vector.extract_strided_slice %41 {offsets = [0, 0, 0], sizes = [1, 16, 1], strides = [1, 1, 1]} : vector<1x16x4xf32> to vector<1x16x1xf32>
    %44 = vector.extract_strided_slice %0 {offsets = [0, 0], sizes = [1, 4], strides = [1, 1]} : vector<4x4xf32> to vector<1x4xf32>
    %45 = vector.shape_cast %44 : vector<1x4xf32> to vector<1x1x4xf32>
    %46 = vector.broadcast %43 : vector<1x16x1xf32> to vector<1x16x4xf32>
    %47 = vector.broadcast %45 : vector<1x1x4xf32> to vector<1x16x4xf32>
    %48 = arith.mulf %46, %47 : vector<1x16x4xf32>
    %49 = arith.addf %42, %48 : vector<1x16x4xf32>
    %50 = vector.extract_strided_slice %41 {offsets = [0, 0, 1], sizes = [1, 16, 1], strides = [1, 1, 1]} : vector<1x16x4xf32> to vector<1x16x1xf32>
    %51 = vector.extract_strided_slice %0 {offsets = [1, 0], sizes = [1, 4], strides = [1, 1]} : vector<4x4xf32> to vector<1x4xf32>
    %52 = vector.shape_cast %51 : vector<1x4xf32> to vector<1x1x4xf32>
    %53 = vector.broadcast %50 : vector<1x16x1xf32> to vector<1x16x4xf32>
    %54 = vector.broadcast %52 : vector<1x1x4xf32> to vector<1x16x4xf32>
    %55 = arith.mulf %53, %54 : vector<1x16x4xf32>
    %56 = arith.addf %49, %55 : vector<1x16x4xf32>
    %57 = vector.extract_strided_slice %41 {offsets = [0, 0, 2], sizes = [1, 16, 1], strides = [1, 1, 1]} : vector<1x16x4xf32> to vector<1x16x1xf32>
    %58 = vector.extract_strided_slice %0 {offsets = [2, 0], sizes = [1, 4], strides = [1, 1]} : vector<4x4xf32> to vector<1x4xf32>
    %59 = vector.shape_cast %58 : vector<1x4xf32> to vector<1x1x4xf32>
    %60 = vector.broadcast %57 : vector<1x16x1xf32> to vector<1x16x4xf32>
    %61 = vector.broadcast %59 : vector<1x1x4xf32> to vector<1x16x4xf32>
    %62 = arith.mulf %60, %61 : vector<1x16x4xf32>
    %63 = arith.addf %56, %62 : vector<1x16x4xf32>
    %64 = vector.extract_strided_slice %41 {offsets = [0, 0, 3], sizes = [1, 16, 1], strides = [1, 1, 1]} : vector<1x16x4xf32> to vector<1x16x1xf32>
    %65 = vector.extract_strided_slice %0 {offsets = [3, 0], sizes = [1, 4], strides = [1, 1]} : vector<4x4xf32> to vector<1x4xf32>
    %66 = vector.shape_cast %65 : vector<1x4xf32> to vector<1x1x4xf32>
    %67 = vector.broadcast %64 : vector<1x16x1xf32> to vector<1x16x4xf32>
    %68 = vector.broadcast %66 : vector<1x1x4xf32> to vector<1x16x4xf32>
    %69 = arith.mulf %67, %68 : vector<1x16x4xf32>
    %70 = arith.addf %63, %69 : vector<1x16x4xf32>
    %71 = vector.shape_cast %1 : vector<1x4xf32> to vector<1x1x4xf32>
    %72 = vector.broadcast %71 : vector<1x1x4xf32> to vector<1x16x4xf32>
    %73 = arith.addf %70, %72 : vector<1x16x4xf32>
    %cst_17 = arith.constant 0.000000e+00 : f32
    %74 = vector.broadcast %cst_17 : f32 to vector<1x16x4xf32>
    %75 = arith.maximumf %73, %74 : vector<1x16x4xf32>
    %c0_18 = arith.constant 0 : index
    %c0_19 = arith.constant 0 : index
    %c0_20 = arith.constant 0 : index
    %c0_21 = arith.constant 0 : index
    %76 = vector.load %arg4[%c0_18, %c0_19, %c0_20, %c0_21] : memref<1x1x16x4xf32, #tpu.memory_space<vmem>>, vector<1x1x16x4xf32>
    %77 = vector.shape_cast %76 : vector<1x1x16x4xf32> to vector<1x16x4xf32>
    %cst_22 = arith.constant 0.000000e+00 : f32
    %78 = vector.broadcast %cst_22 : f32 to vector<1x16x4xf32>
    %79 = vector.extract_strided_slice %77 {offsets = [0, 0, 0], sizes = [1, 16, 1], strides = [1, 1, 1]} : vector<1x16x4xf32> to vector<1x16x1xf32>
    %80 = vector.extract_strided_slice %0 {offsets = [0, 0], sizes = [1, 4], strides = [1, 1]} : vector<4x4xf32> to vector<1x4xf32>
    %81 = vector.shape_cast %80 : vector<1x4xf32> to vector<1x1x4xf32>
    %82 = vector.broadcast %79 : vector<1x16x1xf32> to vector<1x16x4xf32>
    %83 = vector.broadcast %81 : vector<1x1x4xf32> to vector<1x16x4xf32>
    %84 = arith.mulf %82, %83 : vector<1x16x4xf32>
    %85 = arith.addf %78, %84 : vector<1x16x4xf32>
    %86 = vector.extract_strided_slice %77 {offsets = [0, 0, 1], sizes = [1, 16, 1], strides = [1, 1, 1]} : vector<1x16x4xf32> to vector<1x16x1xf32>
    %87 = vector.extract_strided_slice %0 {offsets = [1, 0], sizes = [1, 4], strides = [1, 1]} : vector<4x4xf32> to vector<1x4xf32>
    %88 = vector.shape_cast %87 : vector<1x4xf32> to vector<1x1x4xf32>
    %89 = vector.broadcast %86 : vector<1x16x1xf32> to vector<1x16x4xf32>
    %90 = vector.broadcast %88 : vector<1x1x4xf32> to vector<1x16x4xf32>
    %91 = arith.mulf %89, %90 : vector<1x16x4xf32>
    %92 = arith.addf %85, %91 : vector<1x16x4xf32>
    %93 = vector.extract_strided_slice %77 {offsets = [0, 0, 2], sizes = [1, 16, 1], strides = [1, 1, 1]} : vector<1x16x4xf32> to vector<1x16x1xf32>
    %94 = vector.extract_strided_slice %0 {offsets = [2, 0], sizes = [1, 4], strides = [1, 1]} : vector<4x4xf32> to vector<1x4xf32>
    %95 = vector.shape_cast %94 : vector<1x4xf32> to vector<1x1x4xf32>
    %96 = vector.broadcast %93 : vector<1x16x1xf32> to vector<1x16x4xf32>
    %97 = vector.broadcast %95 : vector<1x1x4xf32> to vector<1x16x4xf32>
    %98 = arith.mulf %96, %97 : vector<1x16x4xf32>
    %99 = arith.addf %92, %98 : vector<1x16x4xf32>
    %100 = vector.extract_strided_slice %77 {offsets = [0, 0, 3], sizes = [1, 16, 1], strides = [1, 1, 1]} : vector<1x16x4xf32> to vector<1x16x1xf32>
    %101 = vector.extract_strided_slice %0 {offsets = [3, 0], sizes = [1, 4], strides = [1, 1]} : vector<4x4xf32> to vector<1x4xf32>
    %102 = vector.shape_cast %101 : vector<1x4xf32> to vector<1x1x4xf32>
    %103 = vector.broadcast %100 : vector<1x16x1xf32> to vector<1x16x4xf32>
    %104 = vector.broadcast %102 : vector<1x1x4xf32> to vector<1x16x4xf32>
    %105 = arith.mulf %103, %104 : vector<1x16x4xf32>
    %106 = arith.addf %99, %105 : vector<1x16x4xf32>
    %107 = vector.shape_cast %1 : vector<1x4xf32> to vector<1x1x4xf32>
    %108 = vector.broadcast %107 : vector<1x1x4xf32> to vector<1x16x4xf32>
    %109 = arith.addf %106, %108 : vector<1x16x4xf32>
    %cst_23 = arith.constant 0.000000e+00 : f32
    %110 = vector.broadcast %cst_23 : f32 to vector<1x16x4xf32>
    %111 = arith.maximumf %109, %110 : vector<1x16x4xf32>
    %c0_i32 = arith.constant 0 : i32
    %112 = arith.cmpi eq, %arg1, %c0_i32 : i32
    %cst_24 = arith.constant 0.000000e+00 : f32
    %113 = vector.broadcast %cst_24 : f32 to vector<1x16x4xf32>
    %114 = arith.select %112, %113, %75 : vector<1x16x4xf32>
    %c0_i32_25 = arith.constant 0 : i32
    %115 = arith.cmpi eq, %arg1, %c0_i32_25 : i32
    %cst_26 = arith.constant 0.000000e+00 : f32
    %116 = vector.broadcast %cst_26 : f32 to vector<1x16x4xf32>
    %117 = arith.select %115, %116, %111 : vector<1x16x4xf32>
    %cst_27 = arith.constant 0.000000e+00 : f32
    %118 = vector.broadcast %cst_27 : f32 to vector<18x1x4xf32>
    %c0_28 = arith.constant 0 : index
    %c0_29 = arith.constant 0 : index
    %c0_30 = arith.constant 0 : index
    %119 = vector.load %arg10[%c0_28, %c0_29, %c0_30] : memref<18x18x4xf32, #tpu.memory_space<vmem>>, vector<18x1x4xf32>
    tpu.vector_store %arg10[%c0_28, %c0_29, %c0_30], %118 {strides = array<i32>} : memref<18x18x4xf32, #tpu.memory_space<vmem>>, vector<18x1x4xf32>,
    %c0_31 = arith.constant 0 : index
    %c17 = arith.constant 17 : index
    %c0_32 = arith.constant 0 : index
    %120 = vector.load %arg10[%c0_31, %c17, %c0_32] : memref<18x18x4xf32, #tpu.memory_space<vmem>>, vector<18x1x4xf32>
    tpu.vector_store %arg10[%c0_31, %c17, %c0_32], %118 {strides = array<i32>} : memref<18x18x4xf32, #tpu.memory_space<vmem>>, vector<18x1x4xf32>,
    %c0_33 = arith.constant 0 : index
    %c1 = arith.constant 1 : index
    %c0_34 = arith.constant 0 : index
    %121 = vector.load %arg10[%c0_33, %c1, %c0_34] : memref<18x18x4xf32, #tpu.memory_space<vmem>>, vector<1x16x4xf32>
    tpu.vector_store %arg10[%c0_33, %c1, %c0_34], %114 {strides = array<i32>} : memref<18x18x4xf32, #tpu.memory_space<vmem>>, vector<1x16x4xf32>,
    %c1_35 = arith.constant 1 : index
    %c1_36 = arith.constant 1 : index
    %c0_37 = arith.constant 0 : index
    %122 = vector.load %arg10[%c1_35, %c1_36, %c0_37] : memref<18x18x4xf32, #tpu.memory_space<vmem>>, vector<16x16x4xf32>
    tpu.vector_store %arg10[%c1_35, %c1_36, %c0_37], %39 {strides = array<i32>} : memref<18x18x4xf32, #tpu.memory_space<vmem>>, vector<16x16x4xf32>,
    %c17_38 = arith.constant 17 : index
    %c1_39 = arith.constant 1 : index
    %c0_40 = arith.constant 0 : index
    %123 = vector.load %arg10[%c17_38, %c1_39, %c0_40] : memref<18x18x4xf32, #tpu.memory_space<vmem>>, vector<1x16x4xf32>
    tpu.vector_store %arg10[%c17_38, %c1_39, %c0_40], %117 {strides = array<i32>} : memref<18x18x4xf32, #tpu.memory_space<vmem>>, vector<1x16x4xf32>,
    %cst_41 = arith.constant 0.000000e+00 : f32
    %124 = vector.broadcast %cst_41 : f32 to vector<16x16x4xf32>
    %c0_42 = arith.constant 0 : index
    %c0_43 = arith.constant 0 : index
    %c0_44 = arith.constant 0 : index
    %125 = vector.load %arg10[%c0_42, %c0_43, %c0_44] : memref<18x18x4xf32, #tpu.memory_space<vmem>>, vector<16x16x4xf32>
    %126 = vector.extract_strided_slice %2 {offsets = [0, 0], sizes = [1, 4], strides = [1, 1]} : vector<9x4xf32> to vector<1x4xf32>
    %127 = vector.shape_cast %126 : vector<1x4xf32> to vector<1x1x4xf32>
    %128 = vector.broadcast %127 : vector<1x1x4xf32> to vector<16x16x4xf32>
    %129 = arith.mulf %125, %128 : vector<16x16x4xf32>
    %130 = arith.addf %124, %129 : vector<16x16x4xf32>
    %c0_45 = arith.constant 0 : index
    %c1_46 = arith.constant 1 : index
    %c0_47 = arith.constant 0 : index
    %131 = vector.load %arg10[%c0_45, %c1_46, %c0_47] : memref<18x18x4xf32, #tpu.memory_space<vmem>>, vector<16x16x4xf32>
    %132 = vector.extract_strided_slice %2 {offsets = [1, 0], sizes = [1, 4], strides = [1, 1]} : vector<9x4xf32> to vector<1x4xf32>
    %133 = vector.shape_cast %132 : vector<1x4xf32> to vector<1x1x4xf32>
    %134 = vector.broadcast %133 : vector<1x1x4xf32> to vector<16x16x4xf32>
    %135 = arith.mulf %131, %134 : vector<16x16x4xf32>
    %136 = arith.addf %130, %135 : vector<16x16x4xf32>
    %c0_48 = arith.constant 0 : index
    %c2 = arith.constant 2 : index
    %c0_49 = arith.constant 0 : index
    %137 = vector.load %arg10[%c0_48, %c2, %c0_49] : memref<18x18x4xf32, #tpu.memory_space<vmem>>, vector<16x16x4xf32>
    %138 = vector.extract_strided_slice %2 {offsets = [2, 0], sizes = [1, 4], strides = [1, 1]} : vector<9x4xf32> to vector<1x4xf32>
    %139 = vector.shape_cast %138 : vector<1x4xf32> to vector<1x1x4xf32>
    %140 = vector.broadcast %139 : vector<1x1x4xf32> to vector<16x16x4xf32>
    %141 = arith.mulf %137, %140 : vector<16x16x4xf32>
    %142 = arith.addf %136, %141 : vector<16x16x4xf32>
    %c1_50 = arith.constant 1 : index
    %c0_51 = arith.constant 0 : index
    %c0_52 = arith.constant 0 : index
    %143 = vector.load %arg10[%c1_50, %c0_51, %c0_52] : memref<18x18x4xf32, #tpu.memory_space<vmem>>, vector<16x16x4xf32>
    %144 = vector.extract_strided_slice %2 {offsets = [3, 0], sizes = [1, 4], strides = [1, 1]} : vector<9x4xf32> to vector<1x4xf32>
    %145 = vector.shape_cast %144 : vector<1x4xf32> to vector<1x1x4xf32>
    %146 = vector.broadcast %145 : vector<1x1x4xf32> to vector<16x16x4xf32>
    %147 = arith.mulf %143, %146 : vector<16x16x4xf32>
    %148 = arith.addf %142, %147 : vector<16x16x4xf32>
    %c1_53 = arith.constant 1 : index
    %c1_54 = arith.constant 1 : index
    %c0_55 = arith.constant 0 : index
    %149 = vector.load %arg10[%c1_53, %c1_54, %c0_55] : memref<18x18x4xf32, #tpu.memory_space<vmem>>, vector<16x16x4xf32>
    %150 = vector.extract_strided_slice %2 {offsets = [4, 0], sizes = [1, 4], strides = [1, 1]} : vector<9x4xf32> to vector<1x4xf32>
    %151 = vector.shape_cast %150 : vector<1x4xf32> to vector<1x1x4xf32>
    %152 = vector.broadcast %151 : vector<1x1x4xf32> to vector<16x16x4xf32>
    %153 = arith.mulf %149, %152 : vector<16x16x4xf32>
    %154 = arith.addf %148, %153 : vector<16x16x4xf32>
    %c1_56 = arith.constant 1 : index
    %c2_57 = arith.constant 2 : index
    %c0_58 = arith.constant 0 : index
    %155 = vector.load %arg10[%c1_56, %c2_57, %c0_58] : memref<18x18x4xf32, #tpu.memory_space<vmem>>, vector<16x16x4xf32>
    %156 = vector.extract_strided_slice %2 {offsets = [5, 0], sizes = [1, 4], strides = [1, 1]} : vector<9x4xf32> to vector<1x4xf32>
    %157 = vector.shape_cast %156 : vector<1x4xf32> to vector<1x1x4xf32>
    %158 = vector.broadcast %157 : vector<1x1x4xf32> to vector<16x16x4xf32>
    %159 = arith.mulf %155, %158 : vector<16x16x4xf32>
    %160 = arith.addf %154, %159 : vector<16x16x4xf32>
    %c2_59 = arith.constant 2 : index
    %c0_60 = arith.constant 0 : index
    %c0_61 = arith.constant 0 : index
    %161 = vector.load %arg10[%c2_59, %c0_60, %c0_61] : memref<18x18x4xf32, #tpu.memory_space<vmem>>, vector<16x16x4xf32>
    %162 = vector.extract_strided_slice %2 {offsets = [6, 0], sizes = [1, 4], strides = [1, 1]} : vector<9x4xf32> to vector<1x4xf32>
    %163 = vector.shape_cast %162 : vector<1x4xf32> to vector<1x1x4xf32>
    %164 = vector.broadcast %163 : vector<1x1x4xf32> to vector<16x16x4xf32>
    %165 = arith.mulf %161, %164 : vector<16x16x4xf32>
    %166 = arith.addf %160, %165 : vector<16x16x4xf32>
    %c2_62 = arith.constant 2 : index
    %c1_63 = arith.constant 1 : index
    %c0_64 = arith.constant 0 : index
    %167 = vector.load %arg10[%c2_62, %c1_63, %c0_64] : memref<18x18x4xf32, #tpu.memory_space<vmem>>, vector<16x16x4xf32>
    %168 = vector.extract_strided_slice %2 {offsets = [7, 0], sizes = [1, 4], strides = [1, 1]} : vector<9x4xf32> to vector<1x4xf32>
    %169 = vector.shape_cast %168 : vector<1x4xf32> to vector<1x1x4xf32>
    %170 = vector.broadcast %169 : vector<1x1x4xf32> to vector<16x16x4xf32>
    %171 = arith.mulf %167, %170 : vector<16x16x4xf32>
    %172 = arith.addf %166, %171 : vector<16x16x4xf32>
    %c2_65 = arith.constant 2 : index
    %c2_66 = arith.constant 2 : index
    %c0_67 = arith.constant 0 : index
    %173 = vector.load %arg10[%c2_65, %c2_66, %c0_67] : memref<18x18x4xf32, #tpu.memory_space<vmem>>, vector<16x16x4xf32>
    %174 = vector.extract_strided_slice %2 {offsets = [8, 0], sizes = [1, 4], strides = [1, 1]} : vector<9x4xf32> to vector<1x4xf32>
    %175 = vector.shape_cast %174 : vector<1x4xf32> to vector<1x1x4xf32>
    %176 = vector.broadcast %175 : vector<1x1x4xf32> to vector<16x16x4xf32>
    %177 = arith.mulf %173, %176 : vector<16x16x4xf32>
    %178 = arith.addf %172, %177 : vector<16x16x4xf32>
    %179 = vector.shape_cast %3 : vector<1x4xf32> to vector<1x1x4xf32>
    %180 = vector.broadcast %179 : vector<1x1x4xf32> to vector<16x16x4xf32>
    %181 = arith.addf %178, %180 : vector<16x16x4xf32>
    %cst_68 = arith.constant 0.000000e+00 : f32
    %182 = vector.broadcast %cst_68 : f32 to vector<16x16x4xf32>
    %183 = arith.maximumf %181, %182 : vector<16x16x4xf32>
    %184 = tpu.concatenate %39, %183 in 2 : vector<16x16x4xf32>, vector<16x16x4xf32> -> vector<16x16x8xf32>
    %185 = vector.shape_cast %184 : vector<16x16x8xf32> to vector<1x16x16x8xf32>
    %c0_69 = arith.constant 0 : index
    %c0_70 = arith.constant 0 : index
    %c0_71 = arith.constant 0 : index
    %c0_72 = arith.constant 0 : index
    %186 = vector.load %arg9[%c0_69, %c0_70, %c0_71, %c0_72] : memref<1x16x16x8xf32, #tpu.memory_space<vmem>>, vector<1x16x16x8xf32>
    tpu.vector_store %arg9[%c0_69, %c0_70, %c0_71, %c0_72], %185 {strides = array<i32>} : memref<1x16x16x8xf32, #tpu.memory_space<vmem>>, vector<1x16x16x8xf32>,
    return
  }
  func.func @transform_0(%arg0: i32, %arg1: i32) -> (i32, i32, i32, i32) {
    %c0_i32 = arith.constant 0 : i32
    %c0_i32_0 = arith.constant 0 : i32
    %c0_i32_1 = arith.constant 0 : i32
    return %arg0, %arg1, %c0_i32, %c0_i32_0 : i32, i32, i32, i32
  }
  func.func @transform_1(%arg0: i32, %arg1: i32) -> (i32, i32, i32, i32) {
    %c16_i32 = arith.constant 16 : i32
    %0 = arith.muli %arg1, %c16_i32 : i32
    %c1_i32 = arith.constant 1 : i32
    %1 = arith.subi %0, %c1_i32 : i32
    %c0_i32 = arith.constant 0 : i32
    %2 = arith.maxsi %1, %c0_i32 : i32
    %c0_i32_0 = arith.constant 0 : i32
    %c0_i32_1 = arith.constant 0 : i32
    %c0_i32_2 = arith.constant 0 : i32
    return %arg0, %2, %c0_i32_0, %c0_i32_1 : i32, i32, i32, i32
  }
  func.func @transform_2(%arg0: i32, %arg1: i32) -> (i32, i32, i32, i32) {
    %c16_i32 = arith.constant 16 : i32
    %0 = arith.muli %arg1, %c16_i32 : i32
    %c16_i32_0 = arith.constant 16 : i32
    %1 = arith.addi %0, %c16_i32_0 : i32
    %c15_i32 = arith.constant 15 : i32
    %2 = arith.minsi %1, %c15_i32 : i32
    %c0_i32 = arith.constant 0 : i32
    %c0_i32_1 = arith.constant 0 : i32
    %c0_i32_2 = arith.constant 0 : i32
    return %arg0, %2, %c0_i32, %c0_i32_1 : i32, i32, i32, i32
  }
  func.func @transform_3(%arg0: i32, %arg1: i32) -> (i32, i32) {
    %c0_i32 = arith.constant 0 : i32
    %c0_i32_0 = arith.constant 0 : i32
    %c0_i32_1 = arith.constant 0 : i32
    return %c0_i32, %c0_i32_0 : i32, i32
  }
  func.func @transform_4(%arg0: i32, %arg1: i32) -> (i32, i32) {
    %c0_i32 = arith.constant 0 : i32
    %c0_i32_0 = arith.constant 0 : i32
    %c0_i32_1 = arith.constant 0 : i32
    return %c0_i32, %c0_i32_0 : i32, i32
  }
  func.func @transform_5(%arg0: i32, %arg1: i32) -> (i32, i32) {
    %c0_i32 = arith.constant 0 : i32
    %c0_i32_0 = arith.constant 0 : i32
    %c0_i32_1 = arith.constant 0 : i32
    return %c0_i32, %c0_i32_0 : i32, i32
  }
  func.func @transform_6(%arg0: i32, %arg1: i32) -> (i32, i32) {
    %c0_i32 = arith.constant 0 : i32
    %c0_i32_0 = arith.constant 0 : i32
    %c0_i32_1 = arith.constant 0 : i32
    return %c0_i32, %c0_i32_0 : i32, i32
  }
  func.func @transform_7(%arg0: i32, %arg1: i32) -> (i32, i32, i32, i32) {
    %c0_i32 = arith.constant 0 : i32
    %c0_i32_0 = arith.constant 0 : i32
    %c0_i32_1 = arith.constant 0 : i32
    return %arg0, %arg1, %c0_i32, %c0_i32_0 : i32, i32, i32, i32
  }
}

</mosaic_0001>

<llo_original>
// kernel: tpu_custom_call.1
$region0: #{tpu_custom_call.1}
  #allocation0 [shape = 'u32[]', space=smem, size = 0x4, offset = 0x4, fixed_abs, tag = 'smem constant byte address 0x4 - core index']
  #allocation1 [shape = 'u32[144,128]{1,0:T(1,128)}', space=vmem, size = 0x12000, scoped, tag = 'internal scratch']
  #allocation2 [shape = 'f32[18,18,4]{2,1,0:T(8,128)}', space=vmem, size = 0x36000, scoped, tag = 'scratch operand']
  %s0 = inlined_call_operand.vmem [shape: f32[2,16,16,4], index: 0, kind: input, shape index: {}]
  %s1 = inlined_call_operand.vmem [shape: f32[2,16,16,4], index: 1, kind: input, shape index: {}]
  %s2 = inlined_call_operand.vmem [shape: f32[2,16,16,4], index: 2, kind: input, shape index: {}]
  %s3 = inlined_call_operand.vmem [shape: f32[4,4], index: 3, kind: input, shape index: {}]
  %s4 = inlined_call_operand.vmem [shape: f32[1,4], index: 4, kind: input, shape index: {}]
  %s5 = inlined_call_operand.vmem [shape: f32[9,4], index: 5, kind: input, shape index: {}]
  %s6 = inlined_call_operand.vmem [shape: f32[1,4], index: 6, kind: input, shape index: {}]
  %s7 = inlined_call_operand.vmem [shape: f32[2,16,16,8], index: 7, kind: output, shape index: {}]
  %s8 = sld [smem:[#allocation0]]
  $region61: #{tpu_custom_call.1} parent=0
    _
  %s10 = ssub.s32 1, %s8
  %s11 = scalar_select 0, %s10, %s8
  loop: start=0, step=1, limit=4
  $region2: #{tpu_custom_call.1} parent=0 // loop_pre_header
    _
  $region3: #{tpu_custom_call.1} parent=0 // loop_header
    %s13 = sphi 0, %s17
    %p14 = scmp.ge.s32.totalorder %s13, 4
    %s20 = sphi 0, %s32
    %s21 = sphi 0, %s28
    %s22 = sphi 0, %s20
    %s23 = sphi 0, %s21
    %s24 = sphi 0, %s22
    %s25 = sphi 0, %s23
    %s37 = sphi 0, %s39
    %s40 = sphi 0, %s37
    %s41 = sphi 0, %s40
    %s57 = sphi 0, %s41
    %s73 = sphi 0, %s75
    %s76 = sphi 0, %s73
    %s77 = sphi 0, %s76
    %s93 = sphi 0, %s77
    %s109 = sphi 0, %s111
    %s112 = sphi 0, %s109
    %s113 = sphi 0, %s112
    %s129 = sphi 0, %s113
    %s133 = sphi 0, %s133
    %s135 = sphi 0, %s133
    %s136 = sphi 0, %s135
    %s150 = sphi 0, %s136
    %s154 = sphi 0, %s154
    %s156 = sphi 0, %s154
    %s157 = sphi 0, %s156
    %s171 = sphi 0, %s157
    %s175 = sphi 0, %s175
    %s177 = sphi 0, %s175
    %s178 = sphi 0, %s177
    %s192 = sphi 0, %s178
    %s196 = sphi 0, %s196
    %s198 = sphi 0, %s196
    %s199 = sphi 0, %s198
    %s213 = sphi 0, %s199
    %s221 = sphi 0, %s223
    %s224 = sphi 0, %s221
    %s225 = sphi 0, %s224
    %s241 = sphi 0, %s225
  $region4: #{tpu_custom_call.1} parent=0 // loop_header_branch
    %16 = sbr.rel (%p14) target = $region8
  $region5: #{tpu_custom_call.1} parent=0 // loop_body
    %s18 = ssub.s32 %s13, 1
    %s19 = ssub.s32 %s13, 2
    %s26 = sadd.s32 1, %s21
    %p27 = scmp.ge.s32.totalorder %s26, 1
    %s28 = scalar_select %p27, 0, %s26
    %s29 = sadd.s32 1, %s20
    %s30 = scalar_select %p27, %s29, %s20
    %p31 = scmp.ge.s32.totalorder %s30, 2
    %s32 = scalar_select %p31, 0, %s30
    %s33 = ssub.s32 %s20, %s32
    %s34 = ssub.s32 %s21, %s28
    %s35 = sor.u32 %s33, %s34
    %p36 = scmp.eq.s32.totalorder %s35, 0
    %s38 = sadd.s32 %s37, 1
    %s39 = scalar_select %p36, %s37, %s38
    %p42 = pneg %p36
    %p43 = scmp.eq.s32.totalorder %s13, 1
    %p44 = por %p42, %p43
    %p45 = scmp.ne.s32.totalorder %s37, %s40
    %p46 = scmp.eq.s32.totalorder %s13, 0
    %p47 = por %p45, %p46
    %p48 = scmp.ne.s32.totalorder %s37, %s40
    %p49 = scmp.eq.s32.totalorder %s18, 1
    %p50 = por %p48, %p49
    %p51 = scmp.ne.s32.totalorder %s40, %s41
    %p52 = scmp.eq.s32.totalorder %s18, 0
    %p53 = por %p51, %p52
    %p54 = scmp.ne.s32.totalorder %s40, %s41
    %p55 = scmp.eq.s32.totalorder %s19, 1
    %p56 = por %p54, %p55
    %p58 = scmp.ne.s32.totalorder %s41, %s57
    %p59 = scmp.eq.s32.totalorder %s19, 0
    %p60 = por %p58, %p59
    %s61 = smul.u32 %s21, 16
    %s62 = ssub.s32 %s61, 1
    %p63 = scmp.gt.s32.totalorder %s62, 0
    %s64 = scalar_select %p63, %s62, 0
    %s65 = smul.u32 %s28, 16
    %s66 = ssub.s32 %s65, 1
    %p67 = scmp.gt.s32.totalorder %s66, 0
    %s68 = scalar_select %p67, %s66, 0
    %s69 = ssub.s32 %s20, %s32
    %s70 = ssub.s32 %s64, %s68
    %s71 = sor.u32 %s69, %s70
    %p72 = scmp.eq.s32.totalorder %s71, 0
    %s74 = sadd.s32 %s73, 1
    %s75 = scalar_select %p72, %s73, %s74
    %p78 = pneg %p72
    %p79 = scmp.eq.s32.totalorder %s13, 1
    %p80 = por %p78, %p79
    %p81 = scmp.ne.s32.totalorder %s73, %s76
    %p82 = scmp.eq.s32.totalorder %s13, 0
    %p83 = por %p81, %p82
    %p84 = scmp.ne.s32.totalorder %s73, %s76
    %p85 = scmp.eq.s32.totalorder %s18, 1
    %p86 = por %p84, %p85
    %p87 = scmp.ne.s32.totalorder %s76, %s77
    %p88 = scmp.eq.s32.totalorder %s18, 0
    %p89 = por %p87, %p88
    %p90 = scmp.ne.s32.totalorder %s76, %s77
    %p91 = scmp.eq.s32.totalorder %s19, 1
    %p92 = por %p90, %p91
    %p94 = scmp.ne.s32.totalorder %s77, %s93
    %p95 = scmp.eq.s32.totalorder %s19, 0
    %p96 = por %p94, %p95
    %s97 = smul.u32 %s21, 16
    %s98 = sadd.s32 %s97, 16
    %p99 = scmp.lt.s32.totalorder %s98, 15
    %s100 = scalar_select %p99, %s98, 15
    %s101 = smul.u32 %s28, 16
    %s102 = sadd.s32 %s101, 16
    %p103 = scmp.lt.s32.totalorder %s102, 15
    %s104 = scalar_select %p103, %s102, 15
    %s105 = ssub.s32 %s20, %s32
    %s106 = ssub.s32 %s100, %s104
    %s107 = sor.u32 %s105, %s106
    %p108 = scmp.eq.s32.totalorder %s107, 0
    %s110 = sadd.s32 %s109, 1
    %s111 = scalar_select %p108, %s109, %s110
    %p114 = pneg %p108
    %p115 = scmp.eq.s32.totalorder %s13, 1
    %p116 = por %p114, %p115
    %p117 = scmp.ne.s32.totalorder %s109, %s112
    %p118 = scmp.eq.s32.totalorder %s13, 0
    %p119 = por %p117, %p118
    %p120 = scmp.ne.s32.totalorder %s109, %s112
    %p121 = scmp.eq.s32.totalorder %s18, 1
    %p122 = por %p120, %p121
    %p123 = scmp.ne.s32.totalorder %s112, %s113
    %p124 = scmp.eq.s32.totalorder %s18, 0
    %p125 = por %p123, %p124
    %p126 = scmp.ne.s32.totalorder %s112, %s113
    %p127 = scmp.eq.s32.totalorder %s19, 1
    %p128 = por %p126, %p127
    %p130 = scmp.ne.s32.totalorder %s113, %s129
    %p131 = scmp.eq.s32.totalorder %s19, 0
    %p132 = por %p130, %p131
    %s134 = sadd.s32 %s133, 1
    %p137 = scmp.eq.s32.totalorder %s13, 1
    %p138 = scmp.ne.s32.totalorder %s133, %s135
    %p139 = scmp.eq.s32.totalorder %s13, 0
    %p140 = por %p138, %p139
    %p141 = scmp.ne.s32.totalorder %s133, %s135
    %p142 = scmp.eq.s32.totalorder %s18, 1
    %p143 = por %p141, %p142
    %p144 = scmp.ne.s32.totalorder %s135, %s136
    %p145 = scmp.eq.s32.totalorder %s18, 0
    %p146 = por %p144, %p145
    %p147 = scmp.ne.s32.totalorder %s135, %s136
    %p148 = scmp.eq.s32.totalorder %s19, 1
    %p149 = por %p147, %p148
    %p151 = scmp.ne.s32.totalorder %s136, %s150
    %p152 = scmp.eq.s32.totalorder %s19, 0
    %p153 = por %p151, %p152
    %s155 = sadd.s32 %s154, 1
    %p158 = scmp.eq.s32.totalorder %s13, 1
    %p159 = scmp.ne.s32.totalorder %s154, %s156
    %p160 = scmp.eq.s32.totalorder %s13, 0
    %p161 = por %p159, %p160
    %p162 = scmp.ne.s32.totalorder %s154, %s156
    %p163 = scmp.eq.s32.totalorder %s18, 1
    %p164 = por %p162, %p163
    %p165 = scmp.ne.s32.totalorder %s156, %s157
    %p166 = scmp.eq.s32.totalorder %s18, 0
    %p167 = por %p165, %p166
    %p168 = scmp.ne.s32.totalorder %s156, %s157
    %p169 = scmp.eq.s32.totalorder %s19, 1
    %p170 = por %p168, %p169
    %p172 = scmp.ne.s32.totalorder %s157, %s171
    %p173 = scmp.eq.s32.totalorder %s19, 0
    %p174 = por %p172, %p173
    %s176 = sadd.s32 %s175, 1
    %p179 = scmp.eq.s32.totalorder %s13, 1
    %p180 = scmp.ne.s32.totalorder %s175, %s177
    %p181 = scmp.eq.s32.totalorder %s13, 0
    %p182 = por %p180, %p181
    %p183 = scmp.ne.s32.totalorder %s175, %s177
    %p184 = scmp.eq.s32.totalorder %s18, 1
    %p185 = por %p183, %p184
    %p186 = scmp.ne.s32.totalorder %s177, %s178
    %p187 = scmp.eq.s32.totalorder %s18, 0
    %p188 = por %p186, %p187
    %p189 = scmp.ne.s32.totalorder %s177, %s178
    %p190 = scmp.eq.s32.totalorder %s19, 1
    %p191 = por %p189, %p190
    %p193 = scmp.ne.s32.totalorder %s178, %s192
    %p194 = scmp.eq.s32.totalorder %s19, 0
    %p195 = por %p193, %p194
    %s197 = sadd.s32 %s196, 1
    %p200 = scmp.eq.s32.totalorder %s13, 1
    %p201 = scmp.ne.s32.totalorder %s196, %s198
    %p202 = scmp.eq.s32.totalorder %s13, 0
    %p203 = por %p201, %p202
    %p204 = scmp.ne.s32.totalorder %s196, %s198
    %p205 = scmp.eq.s32.totalorder %s18, 1
    %p206 = por %p204, %p205
    %p207 = scmp.ne.s32.totalorder %s198, %s199
    %p208 = scmp.eq.s32.totalorder %s18, 0
    %p209 = por %p207, %p208
    %p210 = scmp.ne.s32.totalorder %s198, %s199
    %p211 = scmp.eq.s32.totalorder %s19, 1
    %p212 = por %p210, %p211
    %p214 = scmp.ne.s32.totalorder %s199, %s213
    %p215 = scmp.eq.s32.totalorder %s19, 0
    %p216 = por %p214, %p215
    %s217 = ssub.s32 %s20, %s32
    %s218 = ssub.s32 %s21, %s28
    %s219 = sor.u32 %s217, %s218
    %p220 = scmp.eq.s32.totalorder %s219, 0
    %s222 = sadd.s32 %s221, 1
    %s223 = scalar_select %p220, %s221, %s222
    %p226 = pneg %p220
    %p227 = scmp.eq.s32.totalorder %s13, 1
    %p228 = por %p226, %p227
    %p229 = scmp.ne.s32.totalorder %s221, %s224
    %p230 = scmp.eq.s32.totalorder %s13, 0
    %p231 = por %p229, %p230
    %p232 = scmp.ne.s32.totalorder %s221, %s224
    %p233 = scmp.eq.s32.totalorder %s18, 1
    %p234 = por %p232, %p233
    %p235 = scmp.ne.s32.totalorder %s224, %s225
    %p236 = scmp.eq.s32.totalorder %s18, 0
    %p237 = por %p235, %p236
    %p238 = scmp.ne.s32.totalorder %s224, %s225
    %p239 = scmp.eq.s32.totalorder %s19, 1
    %p240 = por %p238, %p239
    %p242 = scmp.ne.s32.totalorder %s225, %s241
    %p243 = scmp.eq.s32.totalorder %s19, 0
    %p244 = por %p242, %p243
    %p245 = scmp.le.s32.totalorder 1, %s13
    %p246 = scmp.lt.s32.totalorder %s13, 3
    %p247 = pnand %p245, %p246
    %p248 = pneg %p247
    // Predicated region
    $region9: #{tpu_custom_call.1} parent=5 // pred_check
      _
    $region10: #{tpu_custom_call.1} parent=5 // pred_check_branch
      %250 = sbr.rel (%p247) target = $region12
    $region11: #{tpu_custom_call.1} parent=5 // pred_region
      %s251 = ssub.s32 %s13, 1
      // Predicated region
      $region13: #{tpu_custom_call.1} parent=11 // pred_check
        %p252 = pneg %p146
      $region14: #{tpu_custom_call.1} parent=11 // pred_check_branch
        %254 = sbr.rel (%p252) target = $region16
      $region15: #{tpu_custom_call.1} parent=11 // pred_region
        _
      $region16: #{tpu_custom_call.1} parent=11 // pred_fallthru
        _
      // Predicated region
      $region17: #{tpu_custom_call.1} parent=11 // pred_check
        %p255 = pneg %p167
      $region18: #{tpu_custom_call.1} parent=11 // pred_check_branch
        %257 = sbr.rel (%p255) target = $region20
      $region19: #{tpu_custom_call.1} parent=11 // pred_region
        _
      $region20: #{tpu_custom_call.1} parent=11 // pred_fallthru
        _
      // Predicated region
      $region21: #{tpu_custom_call.1} parent=11 // pred_check
        %p258 = pneg %p188
      $region22: #{tpu_custom_call.1} parent=11 // pred_check_branch
        %260 = sbr.rel (%p258) target = $region24
      $region23: #{tpu_custom_call.1} parent=11 // pred_region
        _
      $region24: #{tpu_custom_call.1} parent=11 // pred_fallthru
        _
      // Predicated region
      $region25: #{tpu_custom_call.1} parent=11 // pred_check
        %p261 = pneg %p209
      $region26: #{tpu_custom_call.1} parent=11 // pred_check_branch
        %263 = sbr.rel (%p261) target = $region28
      $region27: #{tpu_custom_call.1} parent=11 // pred_region
        _
      $region28: #{tpu_custom_call.1} parent=11 // pred_fallthru
        _
    $region12: #{tpu_custom_call.1} parent=5 // pred_fallthru
      _
    %p264 = scmp.lt.s32.totalorder %s13, 2
    // Predicated region
    $region29: #{tpu_custom_call.1} parent=5 // pred_check
      %p265 = pneg %p264
    $region30: #{tpu_custom_call.1} parent=5 // pred_check_branch
      %267 = sbr.rel (%p265) target = $region32
    $region31: #{tpu_custom_call.1} parent=5 // pred_region
      // Predicated region
      $region33: #{tpu_custom_call.1} parent=31 // pred_check
        %p268 = pneg %p47
      $region34: #{tpu_custom_call.1} parent=31 // pred_check_branch
        %270 = sbr.rel (%p268) target = $region36
      $region35: #{tpu_custom_call.1} parent=31 // pred_region
        %s271 = smul.u32 16, %s21
        %p272 = scmp.lt.s32.totalorder %s20, 1
        %s273 = scalar_select %p272, %s20, 1
        %p274 = scmp.lt.s32.totalorder %s271, 15
        %s275 = scalar_select %p274, %s271, 15
        %s276 = smul.addr %s275, 2
        %s277 = smul.addr %s273, 32
        %s278 = sadd.s32 %s276, %s277
        %s279 = smul.addr %s278, 8
        %s280 = scalar_lea.vmem %s0, %s279
        %s281 = smul.u32 16, %s21
      $region36: #{tpu_custom_call.1} parent=31 // pred_fallthru
        _
      // Predicated region
      $region37: #{tpu_custom_call.1} parent=31 // pred_check
        %p282 = pneg %p83
      $region38: #{tpu_custom_call.1} parent=31 // pred_check_branch
        %284 = sbr.rel (%p282) target = $region40
      $region39: #{tpu_custom_call.1} parent=31 // pred_region
        %s285 = smul.u32 %s21, 16
        %s286 = ssub.s32 %s285, 1
        %p287 = scmp.gt.s32.totalorder %s286, 0
        %s288 = scalar_select %p287, %s286, 0
        %p289 = scmp.lt.s32.totalorder %s20, 1
        %s290 = scalar_select %p289, %s20, 1
        %p291 = scmp.lt.s32.totalorder %s288, 15
        %s292 = scalar_select %p291, %s288, 15
        %s293 = smul.addr %s292, 2
        %s294 = smul.addr %s290, 32
        %s295 = sadd.s32 %s293, %s294
        %s296 = smul.addr %s295, 8
        %s297 = scalar_lea.vmem %s1, %s296
        %s298 = smul.u32 %s21, 16
        %s299 = ssub.s32 %s298, 1
        %p300 = scmp.gt.s32.totalorder %s299, 0
        %s301 = scalar_select %p300, %s299, 0
      $region40: #{tpu_custom_call.1} parent=31 // pred_fallthru
        _
      // Predicated region
      $region41: #{tpu_custom_call.1} parent=31 // pred_check
        %p302 = pneg %p119
      $region42: #{tpu_custom_call.1} parent=31 // pred_check_branch
        %304 = sbr.rel (%p302) target = $region44
      $region43: #{tpu_custom_call.1} parent=31 // pred_region
        %s305 = smul.u32 %s21, 16
        %s306 = sadd.s32 %s305, 16
        %p307 = scmp.lt.s32.totalorder %s306, 15
        %s308 = scalar_select %p307, %s306, 15
        %p309 = scmp.lt.s32.totalorder %s20, 1
        %s310 = scalar_select %p309, %s20, 1
        %p311 = scmp.lt.s32.totalorder %s308, 15
        %s312 = scalar_select %p311, %s308, 15
        %s313 = smul.addr %s312, 2
        %s314 = smul.addr %s310, 32
        %s315 = sadd.s32 %s313, %s314
        %s316 = smul.addr %s315, 8
        %s317 = scalar_lea.vmem %s2, %s316
        %s318 = smul.u32 %s21, 16
        %s319 = sadd.s32 %s318, 16
        %p320 = scmp.lt.s32.totalorder %s319, 15
        %s321 = scalar_select %p320, %s319, 15
      $region44: #{tpu_custom_call.1} parent=31 // pred_fallthru
        _
    $region32: #{tpu_custom_call.1} parent=5 // pred_fallthru
      _
    %p322 = scmp.le.s32.totalorder 1, %s13
    %p323 = scmp.lt.s32.totalorder %s13, 3
    %p324 = pnand %p322, %p323
    %p325 = pneg %p324
    // Predicated region
    $region45: #{tpu_custom_call.1} parent=5 // pred_check
      _
    $region46: #{tpu_custom_call.1} parent=5 // pred_check_branch
      %327 = sbr.rel (%p324) target = $region48
    $region47: #{tpu_custom_call.1} parent=5 // pred_region
      %s328 = ssub.s32 %s13, 1
      %s329 = smul.u32 16, %s23
      %p330 = scmp.lt.s32.totalorder %s22, 1
      %s331 = scalar_select %p330, %s22, 1
      %p332 = scmp.lt.s32.totalorder %s329, 15
      %s333 = scalar_select %p332, %s329, 15
      %s334 = smul.addr %s333, 2
      %s335 = smul.addr %s331, 32
      %s336 = sadd.s32 %s334, %s335
      %s337 = smul.addr %s336, 8
      %s338 = scalar_lea.vmem %s0, %s337
      %p339 = pneg %p53
      %p340 = pneg %p50
      %s341 = smul.u32 %s23, 16
      %s342 = ssub.s32 %s341, 1
      %p343 = scmp.gt.s32.totalorder %s342, 0
      %s344 = scalar_select %p343, %s342, 0
      %p345 = scmp.lt.s32.totalorder %s22, 1
      %s346 = scalar_select %p345, %s22, 1
      %p347 = scmp.lt.s32.totalorder %s344, 15
      %s348 = scalar_select %p347, %s344, 15
      %s349 = smul.addr %s348, 2
      %s350 = smul.addr %s346, 32
      %s351 = sadd.s32 %s349, %s350
      %s352 = smul.addr %s351, 8
      %s353 = scalar_lea.vmem %s1, %s352
      %p354 = pneg %p89
      %p355 = pneg %p86
      %s356 = smul.u32 %s23, 16
      %s357 = sadd.s32 %s356, 16
      %p358 = scmp.lt.s32.totalorder %s357, 15
      %s359 = scalar_select %p358, %s357, 15
      %p360 = scmp.lt.s32.totalorder %s22, 1
      %s361 = scalar_select %p360, %s22, 1
      %p362 = scmp.lt.s32.totalorder %s359, 15
      %s363 = scalar_select %p362, %s359, 15
      %s364 = smul.addr %s363, 2
      %s365 = smul.addr %s361, 32
      %s366 = sadd.s32 %s364, %s365
      %s367 = smul.addr %s366, 8
      %s368 = scalar_lea.vmem %s2, %s367
      %p369 = pneg %p125
      %p370 = pneg %p122
      %p371 = pneg %p146
      %p372 = pneg %p143
      %p373 = pneg %p167
      %p374 = pneg %p164
      %p375 = pneg %p188
      %p376 = pneg %p185
      %p377 = pneg %p209
      %p378 = pneg %p206
      %p379 = pneg %p237
      %p380 = pneg %p234
      %s381 = smul.u32 16, %s23
      %p382 = scmp.lt.s32.totalorder %s22, 1
      %s383 = scalar_select %p382, %s22, 1
      %p384 = scmp.lt.s32.totalorder %s381, 15
      %s385 = scalar_select %p384, %s381, 15
      %s386 = smul.addr %s385, 2
      %s387 = smul.addr %s383, 32
      %s388 = sadd.s32 %s386, %s387
      %s389 = smul.addr %s388, 8
      %s390 = scalar_lea.vmem %s7, %s389
      %s391 = smul.u32 16, %s23
      %p392 = scmp.lt.s32.totalorder %s22, 1
      %s393 = scalar_select %p392, %s22, 1
      %p394 = scmp.lt.s32.totalorder %s391, 15
      %s395 = scalar_select %p394, %s391, 15
      %s396 = smul.addr %s395, 2
      %s397 = smul.addr %s393, 32
      %s398 = sadd.s32 %s396, %s397
      %s399 = smul.addr %s398, 8
      %s400 = scalar_lea.vmem %s0, %s399
      %s401 = smul.u32 16, %s23
      %s402 = smul.u32 %s23, 16
      %s403 = ssub.s32 %s402, 1
      %p404 = scmp.gt.s32.totalorder %s403, 0
      %s405 = scalar_select %p404, %s403, 0
      %p406 = scmp.lt.s32.totalorder %s22, 1
      %s407 = scalar_select %p406, %s22, 1
      %p408 = scmp.lt.s32.totalorder %s405, 15
      %s409 = scalar_select %p408, %s405, 15
      %s410 = smul.addr %s409, 2
      %s411 = smul.addr %s407, 32
      %s412 = sadd.s32 %s410, %s411
      %s413 = smul.addr %s412, 8
      %s414 = scalar_lea.vmem %s1, %s413
      %s415 = smul.u32 %s23, 16
      %s416 = ssub.s32 %s415, 1
      %p417 = scmp.gt.s32.totalorder %s416, 0
      %s418 = scalar_select %p417, %s416, 0
      %s419 = smul.u32 %s23, 16
      %s420 = sadd.s32 %s419, 16
      %p421 = scmp.lt.s32.totalorder %s420, 15
      %s422 = scalar_select %p421, %s420, 15
      %p423 = scmp.lt.s32.totalorder %s22, 1
      %s424 = scalar_select %p423, %s22, 1
      %p425 = scmp.lt.s32.totalorder %s422, 15
      %s426 = scalar_select %p425, %s422, 15
      %s427 = smul.addr %s426, 2
      %s428 = smul.addr %s424, 32
      %s429 = sadd.s32 %s427, %s428
      %s430 = smul.addr %s429, 8
      %s431 = scalar_lea.vmem %s2, %s430
      %s432 = smul.u32 %s23, 16
      %s433 = sadd.s32 %s432, 16
      %p434 = scmp.lt.s32.totalorder %s433, 15
      %s435 = scalar_select %p434, %s433, 15
      %s436 = smul.u32 16, %s23
      %p437 = scmp.lt.s32.totalorder %s22, 1
      %s438 = scalar_select %p437, %s22, 1
      %p439 = scmp.lt.s32.totalorder %s436, 15
      %s440 = scalar_select %p439, %s436, 15
      %s441 = smul.addr %s440, 2
      %s442 = smul.addr %s438, 32
      %s443 = sadd.s32 %s441, %s442
      %s444 = smul.addr %s443, 8
      %s445 = scalar_lea.vmem %s7, %s444
      %s446 = smul.u32 16, %s23
      %v447 = vld [vmem:[%s3] sm:$0xf]
      %v448 = vld [vmem:[%s4] sm:$0x1]
      %v449 = vld [vmem:[%s5] sm:$0xff]
      %v450 = vld [vmem:[%s5 + $0x8] sm:$0x1]
      %v451 = vld [vmem:[%s6] sm:$0x1]
      %v452 = vld [vmem:[%s400] sm:$0xff]
      %v453 = vld [vmem:[%s400 + $0x8] sm:$0xff]
      %v454 = vld [vmem:[%s400 + $0x10] sm:$0xff]
      %v455 = vld [vmem:[%s400 + $0x18] sm:$0xff]
      %v456 = vld [vmem:[%s400 + $0x20] sm:$0xff]
      %v457 = vld [vmem:[%s400 + $0x28] sm:$0xff]
      %v458 = vld [vmem:[%s400 + $0x30] sm:$0xff]
      %v459 = vld [vmem:[%s400 + $0x38] sm:$0xff]
      %v460 = vld [vmem:[%s400 + $0x40] sm:$0xff]
      %v461 = vld [vmem:[%s400 + $0x48] sm:$0xff]
      %v462 = vld [vmem:[%s400 + $0x50] sm:$0xff]
      %v463 = vld [vmem:[%s400 + $0x58] sm:$0xff]
      %v464 = vld [vmem:[%s400 + $0x60] sm:$0xff]
      %v465 = vld [vmem:[%s400 + $0x68] sm:$0xff]
      %v466 = vld [vmem:[%s400 + $0x70] sm:$0xff]
      %v467 = vld [vmem:[%s400 + $0x78] sm:$0xff]
      %v468 = vld [vmem:[%s400 + $0x80] sm:$0xff]
      %v469 = vld [vmem:[%s400 + $0x88] sm:$0xff]
      %v470 = vld [vmem:[%s400 + $0x90] sm:$0xff]
      %v471 = vld [vmem:[%s400 + $0x98] sm:$0xff]
      %v472 = vld [vmem:[%s400 + $0xa0] sm:$0xff]
      %v473 = vld [vmem:[%s400 + $0xa8] sm:$0xff]
      %v474 = vld [vmem:[%s400 + $0xb0] sm:$0xff]
      %v475 = vld [vmem:[%s400 + $0xb8] sm:$0xff]
      %v476 = vld [vmem:[%s400 + $0xc0] sm:$0xff]
      %v477 = vld [vmem:[%s400 + $0xc8] sm:$0xff]
      %v478 = vld [vmem:[%s400 + $0xd0] sm:$0xff]
      %v479 = vld [vmem:[%s400 + $0xd8] sm:$0xff]
      %v480 = vld [vmem:[%s400 + $0xe0] sm:$0xff]
      %v481 = vld [vmem:[%s400 + $0xe8] sm:$0xff]
      %v482 = vld [vmem:[%s400 + $0xf0] sm:$0xff]
      %v483 = vld [vmem:[%s400 + $0xf8] sm:$0xff]
      %485 = vset.pattern.permute.xlu0 0
      %486 = vperm.xlu0 %485, %v452
      %v487 = vpop.permute.xlu0 %486
      %490 = vset.pattern.permute.xlu0 0
      %491 = vperm.xlu0 %490, %v453
      %v492 = vpop.permute.xlu0 %491
      %495 = vset.pattern.permute.xlu0 0
      %496 = vperm.xlu0 %495, %v454
      %v497 = vpop.permute.xlu0 %496
      %500 = vset.pattern.permute.xlu0 0
      %501 = vperm.xlu0 %500, %v455
      %v502 = vpop.permute.xlu0 %501
      %505 = vset.pattern.permute.xlu0 0
      %506 = vperm.xlu0 %505, %v456
      %v507 = vpop.permute.xlu0 %506
      %510 = vset.pattern.permute.xlu0 0
      %511 = vperm.xlu0 %510, %v457
      %v512 = vpop.permute.xlu0 %511
      %515 = vset.pattern.permute.xlu0 0
      %516 = vperm.xlu0 %515, %v458
      %v517 = vpop.permute.xlu0 %516
      %520 = vset.pattern.permute.xlu0 0
      %521 = vperm.xlu0 %520, %v459
      %v522 = vpop.permute.xlu0 %521
      %525 = vset.pattern.permute.xlu0 0
      %526 = vperm.xlu0 %525, %v460
      %v527 = vpop.permute.xlu0 %526
      %530 = vset.pattern.permute.xlu0 0
      %531 = vperm.xlu0 %530, %v461
      %v532 = vpop.permute.xlu0 %531
      %535 = vset.pattern.permute.xlu0 0
      %536 = vperm.xlu0 %535, %v462
      %v537 = vpop.permute.xlu0 %536
      %540 = vset.pattern.permute.xlu0 0
      %541 = vperm.xlu0 %540, %v463
      %v542 = vpop.permute.xlu0 %541
      %545 = vset.pattern.permute.xlu0 0
      %546 = vperm.xlu0 %545, %v464
      %v547 = vpop.permute.xlu0 %546
      %550 = vset.pattern.permute.xlu0 0
      %551 = vperm.xlu0 %550, %v465
      %v552 = vpop.permute.xlu0 %551
      %555 = vset.pattern.permute.xlu0 0
      %556 = vperm.xlu0 %555, %v466
      %v557 = vpop.permute.xlu0 %556
      %560 = vset.pattern.permute.xlu0 0
      %561 = vperm.xlu0 %560, %v467
      %v562 = vpop.permute.xlu0 %561
      %565 = vset.pattern.permute.xlu0 0
      %566 = vperm.xlu0 %565, %v468
      %v567 = vpop.permute.xlu0 %566
      %570 = vset.pattern.permute.xlu0 0
      %571 = vperm.xlu0 %570, %v469
      %v572 = vpop.permute.xlu0 %571
      %575 = vset.pattern.permute.xlu0 0
      %576 = vperm.xlu0 %575, %v470
      %v577 = vpop.permute.xlu0 %576
      %580 = vset.pattern.permute.xlu0 0
      %581 = vperm.xlu0 %580, %v471
      %v582 = vpop.permute.xlu0 %581
      %585 = vset.pattern.permute.xlu0 0
      %586 = vperm.xlu0 %585, %v472
      %v587 = vpop.permute.xlu0 %586
      %590 = vset.pattern.permute.xlu0 0
      %591 = vperm.xlu0 %590, %v473
      %v592 = vpop.permute.xlu0 %591
      %595 = vset.pattern.permute.xlu0 0
      %596 = vperm.xlu0 %595, %v474
      %v597 = vpop.permute.xlu0 %596
      %600 = vset.pattern.permute.xlu0 0
      %601 = vperm.xlu0 %600, %v475
      %v602 = vpop.permute.xlu0 %601
      %605 = vset.pattern.permute.xlu0 0
      %606 = vperm.xlu0 %605, %v476
      %v607 = vpop.permute.xlu0 %606
      %610 = vset.pattern.permute.xlu0 0
      %611 = vperm.xlu0 %610, %v477
      %v612 = vpop.permute.xlu0 %611
      %615 = vset.pattern.permute.xlu0 0
      %616 = vperm.xlu0 %615, %v478
      %v617 = vpop.permute.xlu0 %616
      %620 = vset.pattern.permute.xlu0 0
      %621 = vperm.xlu0 %620, %v479
      %v622 = vpop.permute.xlu0 %621
      %625 = vset.pattern.permute.xlu0 0
      %626 = vperm.xlu0 %625, %v480
      %v627 = vpop.permute.xlu0 %626
      %630 = vset.pattern.permute.xlu0 0
      %631 = vperm.xlu0 %630, %v481
      %v632 = vpop.permute.xlu0 %631
      %635 = vset.pattern.permute.xlu0 0
      %636 = vperm.xlu0 %635, %v482
      %v637 = vpop.permute.xlu0 %636
      %640 = vset.pattern.permute.xlu0 0
      %641 = vperm.xlu0 %640, %v483
      %v642 = vpop.permute.xlu0 %641
      %v644 = vlaneseq
      %v645 = vshrl.u32 %v644, 7
      %v646 = vsub.s32 0, %v645
      %v647 = vrot.slane %v447, %v646
      %v648 = vmul.f32 %v487, %v647
      %v649 = vmul.f32 %v492, %v647
      %v650 = vmul.f32 %v497, %v647
      %v651 = vmul.f32 %v502, %v647
      %v652 = vmul.f32 %v507, %v647
      %v653 = vmul.f32 %v512, %v647
      %v654 = vmul.f32 %v517, %v647
      %v655 = vmul.f32 %v522, %v647
      %v656 = vmul.f32 %v527, %v647
      %v657 = vmul.f32 %v532, %v647
      %v658 = vmul.f32 %v537, %v647
      %v659 = vmul.f32 %v542, %v647
      %v660 = vmul.f32 %v547, %v647
      %v661 = vmul.f32 %v552, %v647
      %v662 = vmul.f32 %v557, %v647
      %v663 = vmul.f32 %v562, %v647
      %v664 = vmul.f32 %v567, %v647
      %v665 = vmul.f32 %v572, %v647
      %v666 = vmul.f32 %v577, %v647
      %v667 = vmul.f32 %v582, %v647
      %v668 = vmul.f32 %v587, %v647
      %v669 = vmul.f32 %v592, %v647
      %v670 = vmul.f32 %v597, %v647
      %v671 = vmul.f32 %v602, %v647
      %v672 = vmul.f32 %v607, %v647
      %v673 = vmul.f32 %v612, %v647
      %v674 = vmul.f32 %v617, %v647
      %v675 = vmul.f32 %v622, %v647
      %v676 = vmul.f32 %v627, %v647
      %v677 = vmul.f32 %v632, %v647
      %v678 = vmul.f32 %v637, %v647
      %v679 = vmul.f32 %v642, %v647
      %v680 = vadd.f32 %v648, 0.0
      %v681 = vadd.f32 %v649, 0.0
      %v682 = vadd.f32 %v650, 0.0
      %v683 = vadd.f32 %v651, 0.0
      %v684 = vadd.f32 %v652, 0.0
      %v685 = vadd.f32 %v653, 0.0
      %v686 = vadd.f32 %v654, 0.0
      %v687 = vadd.f32 %v655, 0.0
      %v688 = vadd.f32 %v656, 0.0
      %v689 = vadd.f32 %v657, 0.0
      %v690 = vadd.f32 %v658, 0.0
      %v691 = vadd.f32 %v659, 0.0
      %v692 = vadd.f32 %v660, 0.0
      %v693 = vadd.f32 %v661, 0.0
      %v694 = vadd.f32 %v662, 0.0
      %v695 = vadd.f32 %v663, 0.0
      %v696 = vadd.f32 %v664, 0.0
      %v697 = vadd.f32 %v665, 0.0
      %v698 = vadd.f32 %v666, 0.0
      %v699 = vadd.f32 %v667, 0.0
      %v700 = vadd.f32 %v668, 0.0
      %v701 = vadd.f32 %v669, 0.0
      %v702 = vadd.f32 %v670, 0.0
      %v703 = vadd.f32 %v671, 0.0
      %v704 = vadd.f32 %v672, 0.0
      %v705 = vadd.f32 %v673, 0.0
      %v706 = vadd.f32 %v674, 0.0
      %v707 = vadd.f32 %v675, 0.0
      %v708 = vadd.f32 %v676, 0.0
      %v709 = vadd.f32 %v677, 0.0
      %v710 = vadd.f32 %v678, 0.0
      %v711 = vadd.f32 %v679, 0.0
      %712 = vset.pattern.permute.xlu0 1
      %713 = vperm.xlu0 %712, %v452
      %v714 = vpop.permute.xlu0 %713
      %716 = vset.pattern.permute.xlu0 1
      %717 = vperm.xlu0 %716, %v453
      %v718 = vpop.permute.xlu0 %717
      %720 = vset.pattern.permute.xlu0 1
      %721 = vperm.xlu0 %720, %v454
      %v722 = vpop.permute.xlu0 %721
      %724 = vset.pattern.permute.xlu0 1
      %725 = vperm.xlu0 %724, %v455
      %v726 = vpop.permute.xlu0 %725
      %728 = vset.pattern.permute.xlu0 1
      %729 = vperm.xlu0 %728, %v456
      %v730 = vpop.permute.xlu0 %729
      %732 = vset.pattern.permute.xlu0 1
      %733 = vperm.xlu0 %732, %v457
      %v734 = vpop.permute.xlu0 %733
      %736 = vset.pattern.permute.xlu0 1
      %737 = vperm.xlu0 %736, %v458
      %v738 = vpop.permute.xlu0 %737
      %740 = vset.pattern.permute.xlu0 1
      %741 = vperm.xlu0 %740, %v459
      %v742 = vpop.permute.xlu0 %741
      %744 = vset.pattern.permute.xlu0 1
      %745 = vperm.xlu0 %744, %v460
      %v746 = vpop.permute.xlu0 %745
      %748 = vset.pattern.permute.xlu0 1
      %749 = vperm.xlu0 %748, %v461
      %v750 = vpop.permute.xlu0 %749
      %752 = vset.pattern.permute.xlu0 1
      %753 = vperm.xlu0 %752, %v462
      %v754 = vpop.permute.xlu0 %753
      %756 = vset.pattern.permute.xlu0 1
      %757 = vperm.xlu0 %756, %v463
      %v758 = vpop.permute.xlu0 %757
      %760 = vset.pattern.permute.xlu0 1
      %761 = vperm.xlu0 %760, %v464
      %v762 = vpop.permute.xlu0 %761
      %764 = vset.pattern.permute.xlu0 1
      %765 = vperm.xlu0 %764, %v465
      %v766 = vpop.permute.xlu0 %765
      %768 = vset.pattern.permute.xlu0 1
      %769 = vperm.xlu0 %768, %v466
      %v770 = vpop.permute.xlu0 %769
      %772 = vset.pattern.permute.xlu0 1
      %773 = vperm.xlu0 %772, %v467
      %v774 = vpop.permute.xlu0 %773
      %776 = vset.pattern.permute.xlu0 1
      %777 = vperm.xlu0 %776, %v468
      %v778 = vpop.permute.xlu0 %777
      %780 = vset.pattern.permute.xlu0 1
      %781 = vperm.xlu0 %780, %v469
      %v782 = vpop.permute.xlu0 %781
      %784 = vset.pattern.permute.xlu0 1
      %785 = vperm.xlu0 %784, %v470
      %v786 = vpop.permute.xlu0 %785
      %788 = vset.pattern.permute.xlu0 1
      %789 = vperm.xlu0 %788, %v471
      %v790 = vpop.permute.xlu0 %789
      %792 = vset.pattern.permute.xlu0 1
      %793 = vperm.xlu0 %792, %v472
      %v794 = vpop.permute.xlu0 %793
      %796 = vset.pattern.permute.xlu0 1
      %797 = vperm.xlu0 %796, %v473
      %v798 = vpop.permute.xlu0 %797
      %800 = vset.pattern.permute.xlu0 1
      %801 = vperm.xlu0 %800, %v474
      %v802 = vpop.permute.xlu0 %801
      %804 = vset.pattern.permute.xlu0 1
      %805 = vperm.xlu0 %804, %v475
      %v806 = vpop.permute.xlu0 %805
      %808 = vset.pattern.permute.xlu0 1
      %809 = vperm.xlu0 %808, %v476
      %v810 = vpop.permute.xlu0 %809
      %812 = vset.pattern.permute.xlu0 1
      %813 = vperm.xlu0 %812, %v477
      %v814 = vpop.permute.xlu0 %813
      %816 = vset.pattern.permute.xlu0 1
      %817 = vperm.xlu0 %816, %v478
      %v818 = vpop.permute.xlu0 %817
      %820 = vset.pattern.permute.xlu0 1
      %821 = vperm.xlu0 %820, %v479
      %v822 = vpop.permute.xlu0 %821
      %824 = vset.pattern.permute.xlu0 1
      %825 = vperm.xlu0 %824, %v480
      %v826 = vpop.permute.xlu0 %825
      %828 = vset.pattern.permute.xlu0 1
      %829 = vperm.xlu0 %828, %v481
      %v830 = vpop.permute.xlu0 %829
      %832 = vset.pattern.permute.xlu0 1
      %833 = vperm.xlu0 %832, %v482
      %v834 = vpop.permute.xlu0 %833
      %836 = vset.pattern.permute.xlu0 1
      %837 = vperm.xlu0 %836, %v483
      %v838 = vpop.permute.xlu0 %837
      %v840 = vlaneseq
      %v841 = vshrl.u32 %v840, 7
      %v842 = vsub.s32 1, %v841
      %v843 = vrot.slane %v447, %v842
      %v844 = vmul.f32 %v714, %v843
      %v845 = vmul.f32 %v718, %v843
      %v846 = vmul.f32 %v722, %v843
      %v847 = vmul.f32 %v726, %v843
      %v848 = vmul.f32 %v730, %v843
      %v849 = vmul.f32 %v734, %v843
      %v850 = vmul.f32 %v738, %v843
      %v851 = vmul.f32 %v742, %v843
      %v852 = vmul.f32 %v746, %v843
      %v853 = vmul.f32 %v750, %v843
      %v854 = vmul.f32 %v754, %v843
      %v855 = vmul.f32 %v758, %v843
      %v856 = vmul.f32 %v762, %v843
      %v857 = vmul.f32 %v766, %v843
      %v858 = vmul.f32 %v770, %v843
      %v859 = vmul.f32 %v774, %v843
      %v860 = vmul.f32 %v778, %v843
      %v861 = vmul.f32 %v782, %v843
      %v862 = vmul.f32 %v786, %v843
      %v863 = vmul.f32 %v790, %v843
      %v864 = vmul.f32 %v794, %v843
      %v865 = vmul.f32 %v798, %v843
      %v866 = vmul.f32 %v802, %v843
      %v867 = vmul.f32 %v806, %v843
      %v868 = vmul.f32 %v810, %v843
      %v869 = vmul.f32 %v814, %v843
      %v870 = vmul.f32 %v818, %v843
      %v871 = vmul.f32 %v822, %v843
      %v872 = vmul.f32 %v826, %v843
      %v873 = vmul.f32 %v830, %v843
      %v874 = vmul.f32 %v834, %v843
      %v875 = vmul.f32 %v838, %v843
      %v876 = vadd.f32 %v680, %v844
      %v877 = vadd.f32 %v681, %v845
      %v878 = vadd.f32 %v682, %v846
      %v879 = vadd.f32 %v683, %v847
      %v880 = vadd.f32 %v684, %v848
      %v881 = vadd.f32 %v685, %v849
      %v882 = vadd.f32 %v686, %v850
      %v883 = vadd.f32 %v687, %v851
      %v884 = vadd.f32 %v688, %v852
      %v885 = vadd.f32 %v689, %v853
      %v886 = vadd.f32 %v690, %v854
      %v887 = vadd.f32 %v691, %v855
      %v888 = vadd.f32 %v692, %v856
      %v889 = vadd.f32 %v693, %v857
      %v890 = vadd.f32 %v694, %v858
      %v891 = vadd.f32 %v695, %v859
      %v892 = vadd.f32 %v696, %v860
      %v893 = vadd.f32 %v697, %v861
      %v894 = vadd.f32 %v698, %v862
      %v895 = vadd.f32 %v699, %v863
      %v896 = vadd.f32 %v700, %v864
      %v897 = vadd.f32 %v701, %v865
      %v898 = vadd.f32 %v702, %v866
      %v899 = vadd.f32 %v703, %v867
      %v900 = vadd.f32 %v704, %v868
      %v901 = vadd.f32 %v705, %v869
      %v902 = vadd.f32 %v706, %v870
      %v903 = vadd.f32 %v707, %v871
      %v904 = vadd.f32 %v708, %v872
      %v905 = vadd.f32 %v709, %v873
      %v906 = vadd.f32 %v710, %v874
      %v907 = vadd.f32 %v711, %v875
      %908 = vset.pattern.permute.xlu0 2
      %909 = vperm.xlu0 %908, %v452
      %v910 = vpop.permute.xlu0 %909
      %912 = vset.pattern.permute.xlu0 2
      %913 = vperm.xlu0 %912, %v453
      %v914 = vpop.permute.xlu0 %913
      %916 = vset.pattern.permute.xlu0 2
      %917 = vperm.xlu0 %916, %v454
      %v918 = vpop.permute.xlu0 %917
      %920 = vset.pattern.permute.xlu0 2
      %921 = vperm.xlu0 %920, %v455
      %v922 = vpop.permute.xlu0 %921
      %924 = vset.pattern.permute.xlu0 2
      %925 = vperm.xlu0 %924, %v456
      %v926 = vpop.permute.xlu0 %925
      %928 = vset.pattern.permute.xlu0 2
      %929 = vperm.xlu0 %928, %v457
      %v930 = vpop.permute.xlu0 %929
      %932 = vset.pattern.permute.xlu0 2
      %933 = vperm.xlu0 %932, %v458
      %v934 = vpop.permute.xlu0 %933
      %936 = vset.pattern.permute.xlu0 2
      %937 = vperm.xlu0 %936, %v459
      %v938 = vpop.permute.xlu0 %937
      %940 = vset.pattern.permute.xlu0 2
      %941 = vperm.xlu0 %940, %v460
      %v942 = vpop.permute.xlu0 %941
      %944 = vset.pattern.permute.xlu0 2
      %945 = vperm.xlu0 %944, %v461
      %v946 = vpop.permute.xlu0 %945
      %948 = vset.pattern.permute.xlu0 2
      %949 = vperm.xlu0 %948, %v462
      %v950 = vpop.permute.xlu0 %949
      %952 = vset.pattern.permute.xlu0 2
      %953 = vperm.xlu0 %952, %v463
      %v954 = vpop.permute.xlu0 %953
      %956 = vset.pattern.permute.xlu0 2
      %957 = vperm.xlu0 %956, %v464
      %v958 = vpop.permute.xlu0 %957
      %960 = vset.pattern.permute.xlu0 2
      %961 = vperm.xlu0 %960, %v465
      %v962 = vpop.permute.xlu0 %961
      %964 = vset.pattern.permute.xlu0 2
      %965 = vperm.xlu0 %964, %v466
      %v966 = vpop.permute.xlu0 %965
      %968 = vset.pattern.permute.xlu0 2
      %969 = vperm.xlu0 %968, %v467
      %v970 = vpop.permute.xlu0 %969
      %972 = vset.pattern.permute.xlu0 2
      %973 = vperm.xlu0 %972, %v468
      %v974 = vpop.permute.xlu0 %973
      %976 = vset.pattern.permute.xlu0 2
      %977 = vperm.xlu0 %976, %v469
      %v978 = vpop.permute.xlu0 %977
      %980 = vset.pattern.permute.xlu0 2
      %981 = vperm.xlu0 %980, %v470
      %v982 = vpop.permute.xlu0 %981
      %984 = vset.pattern.permute.xlu0 2
      %985 = vperm.xlu0 %984, %v471
      %v986 = vpop.permute.xlu0 %985
      %988 = vset.pattern.permute.xlu0 2
      %989 = vperm.xlu0 %988, %v472
      %v990 = vpop.permute.xlu0 %989
      %992 = vset.pattern.permute.xlu0 2
      %993 = vperm.xlu0 %992, %v473
      %v994 = vpop.permute.xlu0 %993
      %996 = vset.pattern.permute.xlu0 2
      %997 = vperm.xlu0 %996, %v474
      %v998 = vpop.permute.xlu0 %997
      %1000 = vset.pattern.permute.xlu0 2
      %1001 = vperm.xlu0 %1000, %v475
      %v1002 = vpop.permute.xlu0 %1001
      %1004 = vset.pattern.permute.xlu0 2
      %1005 = vperm.xlu0 %1004, %v476
      %v1006 = vpop.permute.xlu0 %1005
      %1008 = vset.pattern.permute.xlu0 2
      %1009 = vperm.xlu0 %1008, %v477
      %v1010 = vpop.permute.xlu0 %1009
      %1012 = vset.pattern.permute.xlu0 2
      %1013 = vperm.xlu0 %1012, %v478
      %v1014 = vpop.permute.xlu0 %1013
      %1016 = vset.pattern.permute.xlu0 2
      %1017 = vperm.xlu0 %1016, %v479
      %v1018 = vpop.permute.xlu0 %1017
      %1020 = vset.pattern.permute.xlu0 2
      %1021 = vperm.xlu0 %1020, %v480
      %v1022 = vpop.permute.xlu0 %1021
      %1024 = vset.pattern.permute.xlu0 2
      %1025 = vperm.xlu0 %1024, %v481
      %v1026 = vpop.permute.xlu0 %1025
      %1028 = vset.pattern.permute.xlu0 2
      %1029 = vperm.xlu0 %1028, %v482
      %v1030 = vpop.permute.xlu0 %1029
      %1032 = vset.pattern.permute.xlu0 2
      %1033 = vperm.xlu0 %1032, %v483
      %v1034 = vpop.permute.xlu0 %1033
      %v1036 = vlaneseq
      %v1037 = vshrl.u32 %v1036, 7
      %v1038 = vsub.s32 2, %v1037
      %v1039 = vrot.slane %v447, %v1038
      %v1040 = vmul.f32 %v910, %v1039
      %v1041 = vmul.f32 %v914, %v1039
      %v1042 = vmul.f32 %v918, %v1039
      %v1043 = vmul.f32 %v922, %v1039
      %v1044 = vmul.f32 %v926, %v1039
      %v1045 = vmul.f32 %v930, %v1039
      %v1046 = vmul.f32 %v934, %v1039
      %v1047 = vmul.f32 %v938, %v1039
      %v1048 = vmul.f32 %v942, %v1039
      %v1049 = vmul.f32 %v946, %v1039
      %v1050 = vmul.f32 %v950, %v1039
      %v1051 = vmul.f32 %v954, %v1039
      %v1052 = vmul.f32 %v958, %v1039
      %v1053 = vmul.f32 %v962, %v1039
      %v1054 = vmul.f32 %v966, %v1039
      %v1055 = vmul.f32 %v970, %v1039
      %v1056 = vmul.f32 %v974, %v1039
      %v1057 = vmul.f32 %v978, %v1039
      %v1058 = vmul.f32 %v982, %v1039
      %v1059 = vmul.f32 %v986, %v1039
      %v1060 = vmul.f32 %v990, %v1039
      %v1061 = vmul.f32 %v994, %v1039
      %v1062 = vmul.f32 %v998, %v1039
      %v1063 = vmul.f32 %v1002, %v1039
      %v1064 = vmul.f32 %v1006, %v1039
      %v1065 = vmul.f32 %v1010, %v1039
      %v1066 = vmul.f32 %v1014, %v1039
      %v1067 = vmul.f32 %v1018, %v1039
      %v1068 = vmul.f32 %v1022, %v1039
      %v1069 = vmul.f32 %v1026, %v1039
      %v1070 = vmul.f32 %v1030, %v1039
      %v1071 = vmul.f32 %v1034, %v1039
      %v1072 = vadd.f32 %v876, %v1040
      %v1073 = vadd.f32 %v877, %v1041
      %v1074 = vadd.f32 %v878, %v1042
      %v1075 = vadd.f32 %v879, %v1043
      %v1076 = vadd.f32 %v880, %v1044
      %v1077 = vadd.f32 %v881, %v1045
      %v1078 = vadd.f32 %v882, %v1046
      %v1079 = vadd.f32 %v883, %v1047
      %v1080 = vadd.f32 %v884, %v1048
      %v1081 = vadd.f32 %v885, %v1049
      %v1082 = vadd.f32 %v886, %v1050
      %v1083 = vadd.f32 %v887, %v1051
      %v1084 = vadd.f32 %v888, %v1052
      %v1085 = vadd.f32 %v889, %v1053
      %v1086 = vadd.f32 %v890, %v1054
      %v1087 = vadd.f32 %v891, %v1055
      %v1088 = vadd.f32 %v892, %v1056
      %v1089 = vadd.f32 %v893, %v1057
      %v1090 = vadd.f32 %v894, %v1058
      %v1091 = vadd.f32 %v895, %v1059
      %v1092 = vadd.f32 %v896, %v1060
      %v1093 = vadd.f32 %v897, %v1061
      %v1094 = vadd.f32 %v898, %v1062
      %v1095 = vadd.f32 %v899, %v1063
      %v1096 = vadd.f32 %v900, %v1064
      %v1097 = vadd.f32 %v901, %v1065
      %v1098 = vadd.f32 %v902, %v1066
      %v1099 = vadd.f32 %v903, %v1067
      %v1100 = vadd.f32 %v904, %v1068
      %v1101 = vadd.f32 %v905, %v1069
      %v1102 = vadd.f32 %v906, %v1070
      %v1103 = vadd.f32 %v907, %v1071
      %1104 = vset.pattern.permute.xlu0 3
      %1105 = vperm.xlu0 %1104, %v452
      %v1106 = vpop.permute.xlu0 %1105
      %1108 = vset.pattern.permute.xlu0 3
      %1109 = vperm.xlu0 %1108, %v453
      %v1110 = vpop.permute.xlu0 %1109
      %1112 = vset.pattern.permute.xlu0 3
      %1113 = vperm.xlu0 %1112, %v454
      %v1114 = vpop.permute.xlu0 %1113
      %1116 = vset.pattern.permute.xlu0 3
      %1117 = vperm.xlu0 %1116, %v455
      %v1118 = vpop.permute.xlu0 %1117
      %1120 = vset.pattern.permute.xlu0 3
      %1121 = vperm.xlu0 %1120, %v456
      %v1122 = vpop.permute.xlu0 %1121
      %1124 = vset.pattern.permute.xlu0 3
      %1125 = vperm.xlu0 %1124, %v457
      %v1126 = vpop.permute.xlu0 %1125
      %1128 = vset.pattern.permute.xlu0 3
      %1129 = vperm.xlu0 %1128, %v458
      %v1130 = vpop.permute.xlu0 %1129
      %1132 = vset.pattern.permute.xlu0 3
      %1133 = vperm.xlu0 %1132, %v459
      %v1134 = vpop.permute.xlu0 %1133
      %1136 = vset.pattern.permute.xlu0 3
      %1137 = vperm.xlu0 %1136, %v460
      %v1138 = vpop.permute.xlu0 %1137
      %1140 = vset.pattern.permute.xlu0 3
      %1141 = vperm.xlu0 %1140, %v461
      %v1142 = vpop.permute.xlu0 %1141
      %1144 = vset.pattern.permute.xlu0 3
      %1145 = vperm.xlu0 %1144, %v462
      %v1146 = vpop.permute.xlu0 %1145
      %1148 = vset.pattern.permute.xlu0 3
      %1149 = vperm.xlu0 %1148, %v463
      %v1150 = vpop.permute.xlu0 %1149
      %1152 = vset.pattern.permute.xlu0 3
      %1153 = vperm.xlu0 %1152, %v464
      %v1154 = vpop.permute.xlu0 %1153
      %1156 = vset.pattern.permute.xlu0 3
      %1157 = vperm.xlu0 %1156, %v465
      %v1158 = vpop.permute.xlu0 %1157
      %1160 = vset.pattern.permute.xlu0 3
      %1161 = vperm.xlu0 %1160, %v466
      %v1162 = vpop.permute.xlu0 %1161
      %1164 = vset.pattern.permute.xlu0 3
      %1165 = vperm.xlu0 %1164, %v467
      %v1166 = vpop.permute.xlu0 %1165
      %1168 = vset.pattern.permute.xlu0 3
      %1169 = vperm.xlu0 %1168, %v468
      %v1170 = vpop.permute.xlu0 %1169
      %1172 = vset.pattern.permute.xlu0 3
      %1173 = vperm.xlu0 %1172, %v469
      %v1174 = vpop.permute.xlu0 %1173
      %1176 = vset.pattern.permute.xlu0 3
      %1177 = vperm.xlu0 %1176, %v470
      %v1178 = vpop.permute.xlu0 %1177
      %1180 = vset.pattern.permute.xlu0 3
      %1181 = vperm.xlu0 %1180, %v471
      %v1182 = vpop.permute.xlu0 %1181
      %1184 = vset.pattern.permute.xlu0 3
      %1185 = vperm.xlu0 %1184, %v472
      %v1186 = vpop.permute.xlu0 %1185
      %1188 = vset.pattern.permute.xlu0 3
      %1189 = vperm.xlu0 %1188, %v473
      %v1190 = vpop.permute.xlu0 %1189
      %1192 = vset.pattern.permute.xlu0 3
      %1193 = vperm.xlu0 %1192, %v474
      %v1194 = vpop.permute.xlu0 %1193
      %1196 = vset.pattern.permute.xlu0 3
      %1197 = vperm.xlu0 %1196, %v475
      %v1198 = vpop.permute.xlu0 %1197
      %1200 = vset.pattern.permute.xlu0 3
      %1201 = vperm.xlu0 %1200, %v476
      %v1202 = vpop.permute.xlu0 %1201
      %1204 = vset.pattern.permute.xlu0 3
      %1205 = vperm.xlu0 %1204, %v477
      %v1206 = vpop.permute.xlu0 %1205
      %1208 = vset.pattern.permute.xlu0 3
      %1209 = vperm.xlu0 %1208, %v478
      %v1210 = vpop.permute.xlu0 %1209
      %1212 = vset.pattern.permute.xlu0 3
      %1213 = vperm.xlu0 %1212, %v479
      %v1214 = vpop.permute.xlu0 %1213
      %1216 = vset.pattern.permute.xlu0 3
      %1217 = vperm.xlu0 %1216, %v480
      %v1218 = vpop.permute.xlu0 %1217
      %1220 = vset.pattern.permute.xlu0 3
      %1221 = vperm.xlu0 %1220, %v481
      %v1222 = vpop.permute.xlu0 %1221
      %1224 = vset.pattern.permute.xlu0 3
      %1225 = vperm.xlu0 %1224, %v482
      %v1226 = vpop.permute.xlu0 %1225
      %1228 = vset.pattern.permute.xlu0 3
      %1229 = vperm.xlu0 %1228, %v483
      %v1230 = vpop.permute.xlu0 %1229
      %v1232 = vlaneseq
      %v1233 = vshrl.u32 %v1232, 7
      %v1234 = vsub.s32 3, %v1233
      %v1235 = vrot.slane %v447, %v1234
      %v1236 = vmul.f32 %v1106, %v1235
      %v1237 = vmul.f32 %v1110, %v1235
      %v1238 = vmul.f32 %v1114, %v1235
      %v1239 = vmul.f32 %v1118, %v1235
      %v1240 = vmul.f32 %v1122, %v1235
      %v1241 = vmul.f32 %v1126, %v1235
      %v1242 = vmul.f32 %v1130, %v1235
      %v1243 = vmul.f32 %v1134, %v1235
      %v1244 = vmul.f32 %v1138, %v1235
      %v1245 = vmul.f32 %v1142, %v1235
      %v1246 = vmul.f32 %v1146, %v1235
      %v1247 = vmul.f32 %v1150, %v1235
      %v1248 = vmul.f32 %v1154, %v1235
      %v1249 = vmul.f32 %v1158, %v1235
      %v1250 = vmul.f32 %v1162, %v1235
      %v1251 = vmul.f32 %v1166, %v1235
      %v1252 = vmul.f32 %v1170, %v1235
      %v1253 = vmul.f32 %v1174, %v1235
      %v1254 = vmul.f32 %v1178, %v1235
      %v1255 = vmul.f32 %v1182, %v1235
      %v1256 = vmul.f32 %v1186, %v1235
      %v1257 = vmul.f32 %v1190, %v1235
      %v1258 = vmul.f32 %v1194, %v1235
      %v1259 = vmul.f32 %v1198, %v1235
      %v1260 = vmul.f32 %v1202, %v1235
      %v1261 = vmul.f32 %v1206, %v1235
      %v1262 = vmul.f32 %v1210, %v1235
      %v1263 = vmul.f32 %v1214, %v1235
      %v1264 = vmul.f32 %v1218, %v1235
      %v1265 = vmul.f32 %v1222, %v1235
      %v1266 = vmul.f32 %v1226, %v1235
      %v1267 = vmul.f32 %v1230, %v1235
      %v1268 = vadd.f32 %v1072, %v1236
      %v1269 = vadd.f32 %v1073, %v1237
      %v1270 = vadd.f32 %v1074, %v1238
      %v1271 = vadd.f32 %v1075, %v1239
      %v1272 = vadd.f32 %v1076, %v1240
      %v1273 = vadd.f32 %v1077, %v1241
      %v1274 = vadd.f32 %v1078, %v1242
      %v1275 = vadd.f32 %v1079, %v1243
      %v1276 = vadd.f32 %v1080, %v1244
      %v1277 = vadd.f32 %v1081, %v1245
      %v1278 = vadd.f32 %v1082, %v1246
      %v1279 = vadd.f32 %v1083, %v1247
      %v1280 = vadd.f32 %v1084, %v1248
      %v1281 = vadd.f32 %v1085, %v1249
      %v1282 = vadd.f32 %v1086, %v1250
      %v1283 = vadd.f32 %v1087, %v1251
      %v1284 = vadd.f32 %v1088, %v1252
      %v1285 = vadd.f32 %v1089, %v1253
      %v1286 = vadd.f32 %v1090, %v1254
      %v1287 = vadd.f32 %v1091, %v1255
      %v1288 = vadd.f32 %v1092, %v1256
      %v1289 = vadd.f32 %v1093, %v1257
      %v1290 = vadd.f32 %v1094, %v1258
      %v1291 = vadd.f32 %v1095, %v1259
      %v1292 = vadd.f32 %v1096, %v1260
      %v1293 = vadd.f32 %v1097, %v1261
      %v1294 = vadd.f32 %v1098, %v1262
      %v1295 = vadd.f32 %v1099, %v1263
      %v1296 = vadd.f32 %v1100, %v1264
      %v1297 = vadd.f32 %v1101, %v1265
      %v1298 = vadd.f32 %v1102, %v1266
      %v1299 = vadd.f32 %v1103, %v1267
      %v1301 = vlaneseq
      %v1302 = vshrl.u32 %v1301, 7
      %v1303 = vsub.s32 0, %v1302
      %v1304 = vrot.slane %v448, %v1303
      %v1306 = vadd.f32 %v1268, %v1304
      %v1307 = vadd.f32 %v1269, %v1304
      %v1308 = vadd.f32 %v1270, %v1304
      %v1309 = vadd.f32 %v1271, %v1304
      %v1310 = vadd.f32 %v1272, %v1304
      %v1311 = vadd.f32 %v1273, %v1304
      %v1312 = vadd.f32 %v1274, %v1304
      %v1313 = vadd.f32 %v1275, %v1304
      %v1314 = vadd.f32 %v1276, %v1304
      %v1315 = vadd.f32 %v1277, %v1304
      %v1316 = vadd.f32 %v1278, %v1304
      %v1317 = vadd.f32 %v1279, %v1304
      %v1318 = vadd.f32 %v1280, %v1304
      %v1319 = vadd.f32 %v1281, %v1304
      %v1320 = vadd.f32 %v1282, %v1304
      %v1321 = vadd.f32 %v1283, %v1304
      %v1322 = vadd.f32 %v1284, %v1304
      %v1323 = vadd.f32 %v1285, %v1304
      %v1324 = vadd.f32 %v1286, %v1304
      %v1325 = vadd.f32 %v1287, %v1304
      %v1326 = vadd.f32 %v1288, %v1304
      %v1327 = vadd.f32 %v1289, %v1304
      %v1328 = vadd.f32 %v1290, %v1304
      %v1329 = vadd.f32 %v1291, %v1304
      %v1330 = vadd.f32 %v1292, %v1304
      %v1331 = vadd.f32 %v1293, %v1304
      %v1332 = vadd.f32 %v1294, %v1304
      %v1333 = vadd.f32 %v1295, %v1304
      %v1334 = vadd.f32 %v1296, %v1304
      %v1335 = vadd.f32 %v1297, %v1304
      %v1336 = vadd.f32 %v1298, %v1304
      %v1337 = vadd.f32 %v1299, %v1304
      %v1338 = vmax.f32 %v1306, 0.0
      %v1339 = vmax.f32 %v1307, 0.0
      %v1340 = vmax.f32 %v1308, 0.0
      %v1341 = vmax.f32 %v1309, 0.0
      %v1342 = vmax.f32 %v1310, 0.0
      %v1343 = vmax.f32 %v1311, 0.0
      %v1344 = vmax.f32 %v1312, 0.0
      %v1345 = vmax.f32 %v1313, 0.0
      %v1346 = vmax.f32 %v1314, 0.0
      %v1347 = vmax.f32 %v1315, 0.0
      %v1348 = vmax.f32 %v1316, 0.0
      %v1349 = vmax.f32 %v1317, 0.0
      %v1350 = vmax.f32 %v1318, 0.0
      %v1351 = vmax.f32 %v1319, 0.0
      %v1352 = vmax.f32 %v1320, 0.0
      %v1353 = vmax.f32 %v1321, 0.0
      %v1354 = vmax.f32 %v1322, 0.0
      %v1355 = vmax.f32 %v1323, 0.0
      %v1356 = vmax.f32 %v1324, 0.0
      %v1357 = vmax.f32 %v1325, 0.0
      %v1358 = vmax.f32 %v1326, 0.0
      %v1359 = vmax.f32 %v1327, 0.0
      %v1360 = vmax.f32 %v1328, 0.0
      %v1361 = vmax.f32 %v1329, 0.0
      %v1362 = vmax.f32 %v1330, 0.0
      %v1363 = vmax.f32 %v1331, 0.0
      %v1364 = vmax.f32 %v1332, 0.0
      %v1365 = vmax.f32 %v1333, 0.0
      %v1366 = vmax.f32 %v1334, 0.0
      %v1367 = vmax.f32 %v1335, 0.0
      %v1368 = vmax.f32 %v1336, 0.0
      %v1369 = vmax.f32 %v1337, 0.0
      %v1370 = vld [vmem:[%s414] sm:$0xff]
      %v1371 = vld [vmem:[%s414 + $0x8] sm:$0xff]
      %1373 = vset.pattern.permute.xlu0 0
      %1374 = vperm.xlu0 %1373, %v1370
      %v1375 = vpop.permute.xlu0 %1374
      %1378 = vset.pattern.permute.xlu0 0
      %1379 = vperm.xlu0 %1378, %v1371
      %v1380 = vpop.permute.xlu0 %1379
      %v1382 = vmul.f32 %v1375, %v647
      %v1383 = vmul.f32 %v1380, %v647
      %v1384 = vadd.f32 %v1382, 0.0
      %v1385 = vadd.f32 %v1383, 0.0
      %1386 = vset.pattern.permute.xlu0 1
      %1387 = vperm.xlu0 %1386, %v1370
      %v1388 = vpop.permute.xlu0 %1387
      %1390 = vset.pattern.permute.xlu0 1
      %1391 = vperm.xlu0 %1390, %v1371
      %v1392 = vpop.permute.xlu0 %1391
      %v1394 = vmul.f32 %v1388, %v843
      %v1395 = vmul.f32 %v1392, %v843
      %v1396 = vadd.f32 %v1384, %v1394
      %v1397 = vadd.f32 %v1385, %v1395
      %1398 = vset.pattern.permute.xlu0 2
      %1399 = vperm.xlu0 %1398, %v1370
      %v1400 = vpop.permute.xlu0 %1399
      %1402 = vset.pattern.permute.xlu0 2
      %1403 = vperm.xlu0 %1402, %v1371
      %v1404 = vpop.permute.xlu0 %1403
      %v1406 = vmul.f32 %v1400, %v1039
      %v1407 = vmul.f32 %v1404, %v1039
      %v1408 = vadd.f32 %v1396, %v1406
      %v1409 = vadd.f32 %v1397, %v1407
      %1410 = vset.pattern.permute.xlu0 3
      %1411 = vperm.xlu0 %1410, %v1370
      %v1412 = vpop.permute.xlu0 %1411
      %1414 = vset.pattern.permute.xlu0 3
      %1415 = vperm.xlu0 %1414, %v1371
      %v1416 = vpop.permute.xlu0 %1415
      %v1418 = vmul.f32 %v1412, %v1235
      %v1419 = vmul.f32 %v1416, %v1235
      %v1420 = vadd.f32 %v1408, %v1418
      %v1421 = vadd.f32 %v1409, %v1419
      %v1422 = vadd.f32 %v1420, %v1304
      %v1423 = vadd.f32 %v1421, %v1304
      %v1424 = vmax.f32 %v1422, 0.0
      %v1425 = vmax.f32 %v1423, 0.0
      %v1426 = vld [vmem:[%s431] sm:$0xff]
      %v1427 = vld [vmem:[%s431 + $0x8] sm:$0xff]
      %1429 = vset.pattern.permute.xlu0 0
      %1430 = vperm.xlu0 %1429, %v1426
      %v1431 = vpop.permute.xlu0 %1430
      %1434 = vset.pattern.permute.xlu0 0
      %1435 = vperm.xlu0 %1434, %v1427
      %v1436 = vpop.permute.xlu0 %1435
      %v1438 = vmul.f32 %v1431, %v647
      %v1439 = vmul.f32 %v1436, %v647
      %v1440 = vadd.f32 %v1438, 0.0
      %v1441 = vadd.f32 %v1439, 0.0
      %1442 = vset.pattern.permute.xlu0 1
      %1443 = vperm.xlu0 %1442, %v1426
      %v1444 = vpop.permute.xlu0 %1443
      %1446 = vset.pattern.permute.xlu0 1
      %1447 = vperm.xlu0 %1446, %v1427
      %v1448 = vpop.permute.xlu0 %1447
      %v1450 = vmul.f32 %v1444, %v843
      %v1451 = vmul.f32 %v1448, %v843
      %v1452 = vadd.f32 %v1440, %v1450
      %v1453 = vadd.f32 %v1441, %v1451
      %1454 = vset.pattern.permute.xlu0 2
      %1455 = vperm.xlu0 %1454, %v1426
      %v1456 = vpop.permute.xlu0 %1455
      %1458 = vset.pattern.permute.xlu0 2
      %1459 = vperm.xlu0 %1458, %v1427
      %v1460 = vpop.permute.xlu0 %1459
      %v1462 = vmul.f32 %v1456, %v1039
      %v1463 = vmul.f32 %v1460, %v1039
      %v1464 = vadd.f32 %v1452, %v1462
      %v1465 = vadd.f32 %v1453, %v1463
      %1466 = vset.pattern.permute.xlu0 3
      %1467 = vperm.xlu0 %1466, %v1426
      %v1468 = vpop.permute.xlu0 %1467
      %1470 = vset.pattern.permute.xlu0 3
      %1471 = vperm.xlu0 %1470, %v1427
      %v1472 = vpop.permute.xlu0 %1471
      %v1474 = vmul.f32 %v1468, %v1235
      %v1475 = vmul.f32 %v1472, %v1235
      %v1476 = vadd.f32 %v1464, %v1474
      %v1477 = vadd.f32 %v1465, %v1475
      %v1478 = vadd.f32 %v1476, %v1304
      %v1479 = vadd.f32 %v1477, %v1304
      %v1480 = vmax.f32 %v1478, 0.0
      %v1481 = vmax.f32 %v1479, 0.0
      %p1482 = scmp.eq.s32.totalorder %s23, 0
      %s1483 = scalar_select %p1482, 1, 0
      %v1484 = vstv %s1483
      %vm1485 = vcmp.eq.s32.totalorder %v1484, 1
      %v1486 = vsel %vm1485, 0.0, %v1424
      %v1487 = vsel %vm1485, 0.0, %v1425
      %v1488 = vsel %vm1485, 0.0, %v1480
      %v1489 = vsel %vm1485, 0.0, %v1481
      %vm1490 = vcmask 24576
      %1491 = vst.msk [vmem:[#allocation2] sm:$0x1] %vm1490, 0.0
      %1492 = vst.msk [vmem:[#allocation2 + $0x18] sm:$0x1] %vm1490, 0.0
      %1493 = vst.msk [vmem:[#allocation2 + $0x30] sm:$0x1] %vm1490, 0.0
      %1494 = vst.msk [vmem:[#allocation2 + $0x48] sm:$0x1] %vm1490, 0.0
      %1495 = vst.msk [vmem:[#allocation2 + $0x60] sm:$0x1] %vm1490, 0.0
      %1496 = vst.msk [vmem:[#allocation2 + $0x78] sm:$0x1] %vm1490, 0.0
      %1497 = vst.msk [vmem:[#allocation2 + $0x90] sm:$0x1] %vm1490, 0.0
      %1498 = vst.msk [vmem:[#allocation2 + $0xa8] sm:$0x1] %vm1490, 0.0
      %1499 = vst.msk [vmem:[#allocation2 + $0xc0] sm:$0x1] %vm1490, 0.0
      %1500 = vst.msk [vmem:[#allocation2 + $0xd8] sm:$0x1] %vm1490, 0.0
      %1501 = vst.msk [vmem:[#allocation2 + $0xf0] sm:$0x1] %vm1490, 0.0
      %1502 = vst.msk [vmem:[#allocation2 + $0x108] sm:$0x1] %vm1490, 0.0
      %1503 = vst.msk [vmem:[#allocation2 + $0x120] sm:$0x1] %vm1490, 0.0
      %1504 = vst.msk [vmem:[#allocation2 + $0x138] sm:$0x1] %vm1490, 0.0
      %1505 = vst.msk [vmem:[#allocation2 + $0x150] sm:$0x1] %vm1490, 0.0
      %1506 = vst.msk [vmem:[#allocation2 + $0x168] sm:$0x1] %vm1490, 0.0
      %1507 = vst.msk [vmem:[#allocation2 + $0x180] sm:$0x1] %vm1490, 0.0
      %1508 = vst.msk [vmem:[#allocation2 + $0x198] sm:$0x1] %vm1490, 0.0
      %1509 = vst.msk [vmem:[#allocation2 + $0x11] sm:$0x1] %vm1490, 0.0
      %1510 = vst.msk [vmem:[#allocation2 + $0x29] sm:$0x1] %vm1490, 0.0
      %1511 = vst.msk [vmem:[#allocation2 + $0x41] sm:$0x1] %vm1490, 0.0
      %1512 = vst.msk [vmem:[#allocation2 + $0x59] sm:$0x1] %vm1490, 0.0
      %1513 = vst.msk [vmem:[#allocation2 + $0x71] sm:$0x1] %vm1490, 0.0
      %1514 = vst.msk [vmem:[#allocation2 + $0x89] sm:$0x1] %vm1490, 0.0
      %1515 = vst.msk [vmem:[#allocation2 + $0xa1] sm:$0x1] %vm1490, 0.0
      %1516 = vst.msk [vmem:[#allocation2 + $0xb9] sm:$0x1] %vm1490, 0.0
      %1517 = vst.msk [vmem:[#allocation2 + $0xd1] sm:$0x1] %vm1490, 0.0
      %1518 = vst.msk [vmem:[#allocation2 + $0xe9] sm:$0x1] %vm1490, 0.0
      %1519 = vst.msk [vmem:[#allocation2 + $0x101] sm:$0x1] %vm1490, 0.0
      %1520 = vst.msk [vmem:[#allocation2 + $0x119] sm:$0x1] %vm1490, 0.0
      %1521 = vst.msk [vmem:[#allocation2 + $0x131] sm:$0x1] %vm1490, 0.0
      %1522 = vst.msk [vmem:[#allocation2 + $0x149] sm:$0x1] %vm1490, 0.0
      %1523 = vst.msk [vmem:[#allocation2 + $0x161] sm:$0x1] %vm1490, 0.0
      %1524 = vst.msk [vmem:[#allocation2 + $0x179] sm:$0x1] %vm1490, 0.0
      %1525 = vst.msk [vmem:[#allocation2 + $0x191] sm:$0x1] %vm1490, 0.0
      %1526 = vst.msk [vmem:[#allocation2 + $0x1a9] sm:$0x1] %vm1490, 0.0
      %vm1527 = vcmask 31744
      %1528 = vst.msk [vmem:[#allocation2 + $0x1] sm:$0xff] %vm1527, %v1486
      %1529 = vst.msk [vmem:[#allocation2 + $0x9] sm:$0xff] %vm1527, %v1487
      %s1530 = scalar_lea.vmem [#allocation2], 24
      %1531 = vst.msk [vmem:[%s1530 + $0x1] sm:$0xff] %vm1527, %v1338
      %1532 = vst.msk [vmem:[%s1530 + $0x9] sm:$0xff] %vm1527, %v1339
      %1533 = vst.msk [vmem:[%s1530 + $0x19] sm:$0xff] %vm1527, %v1340
      %1534 = vst.msk [vmem:[%s1530 + $0x21] sm:$0xff] %vm1527, %v1341
      %1535 = vst.msk [vmem:[%s1530 + $0x31] sm:$0xff] %vm1527, %v1342
      %1536 = vst.msk [vmem:[%s1530 + $0x39] sm:$0xff] %vm1527, %v1343
      %1537 = vst.msk [vmem:[%s1530 + $0x49] sm:$0xff] %vm1527, %v1344
      %1538 = vst.msk [vmem:[%s1530 + $0x51] sm:$0xff] %vm1527, %v1345
      %1539 = vst.msk [vmem:[%s1530 + $0x61] sm:$0xff] %vm1527, %v1346
      %1540 = vst.msk [vmem:[%s1530 + $0x69] sm:$0xff] %vm1527, %v1347
      %1541 = vst.msk [vmem:[%s1530 + $0x79] sm:$0xff] %vm1527, %v1348
      %1542 = vst.msk [vmem:[%s1530 + $0x81] sm:$0xff] %vm1527, %v1349
      %1543 = vst.msk [vmem:[%s1530 + $0x91] sm:$0xff] %vm1527, %v1350
      %1544 = vst.msk [vmem:[%s1530 + $0x99] sm:$0xff] %vm1527, %v1351
      %1545 = vst.msk [vmem:[%s1530 + $0xa9] sm:$0xff] %vm1527, %v1352
      %1546 = vst.msk [vmem:[%s1530 + $0xb1] sm:$0xff] %vm1527, %v1353
      %1547 = vst.msk [vmem:[%s1530 + $0xc1] sm:$0xff] %vm1527, %v1354
      %1548 = vst.msk [vmem:[%s1530 + $0xc9] sm:$0xff] %vm1527, %v1355
      %1549 = vst.msk [vmem:[%s1530 + $0xd9] sm:$0xff] %vm1527, %v1356
      %1550 = vst.msk [vmem:[%s1530 + $0xe1] sm:$0xff] %vm1527, %v1357
      %1551 = vst.msk [vmem:[%s1530 + $0xf1] sm:$0xff] %vm1527, %v1358
      %1552 = vst.msk [vmem:[%s1530 + $0xf9] sm:$0xff] %vm1527, %v1359
      %1553 = vst.msk [vmem:[%s1530 + $0x109] sm:$0xff] %vm1527, %v1360
      %1554 = vst.msk [vmem:[%s1530 + $0x111] sm:$0xff] %vm1527, %v1361
      %1555 = vst.msk [vmem:[%s1530 + $0x121] sm:$0xff] %vm1527, %v1362
      %1556 = vst.msk [vmem:[%s1530 + $0x129] sm:$0xff] %vm1527, %v1363
      %1557 = vst.msk [vmem:[%s1530 + $0x139] sm:$0xff] %vm1527, %v1364
      %1558 = vst.msk [vmem:[%s1530 + $0x141] sm:$0xff] %vm1527, %v1365
      %1559 = vst.msk [vmem:[%s1530 + $0x151] sm:$0xff] %vm1527, %v1366
      %1560 = vst.msk [vmem:[%s1530 + $0x159] sm:$0xff] %vm1527, %v1367
      %1561 = vst.msk [vmem:[%s1530 + $0x169] sm:$0xff] %vm1527, %v1368
      %1562 = vst.msk [vmem:[%s1530 + $0x171] sm:$0xff] %vm1527, %v1369
      %s1563 = scalar_lea.vmem [#allocation2], 408
      %1564 = vst.msk [vmem:[%s1563 + $0x1] sm:$0xff] %vm1527, %v1488
      %1565 = vst.msk [vmem:[%s1563 + $0x9] sm:$0xff] %vm1527, %v1489
      %v1566 = vld [vmem:[#allocation2] sm:$0xff]
      %v1567 = vld [vmem:[#allocation2 + $0x8] sm:$0xff]
      %v1568 = vld [vmem:[#allocation2 + $0x18] sm:$0xff]
      %v1569 = vld [vmem:[#allocation2 + $0x20] sm:$0xff]
      %v1570 = vld [vmem:[#allocation2 + $0x30] sm:$0xff]
      %v1571 = vld [vmem:[#allocation2 + $0x38] sm:$0xff]
      %v1572 = vld [vmem:[#allocation2 + $0x48] sm:$0xff]
      %v1573 = vld [vmem:[#allocation2 + $0x50] sm:$0xff]
      %v1574 = vld [vmem:[#allocation2 + $0x60] sm:$0xff]
      %v1575 = vld [vmem:[#allocation2 + $0x68] sm:$0xff]
      %v1576 = vld [vmem:[#allocation2 + $0x78] sm:$0xff]
      %v1577 = vld [vmem:[#allocation2 + $0x80] sm:$0xff]
      %v1578 = vld [vmem:[#allocation2 + $0x90] sm:$0xff]
      %v1579 = vld [vmem:[#allocation2 + $0x98] sm:$0xff]
      %v1580 = vld [vmem:[#allocation2 + $0xa8] sm:$0xff]
      %v1581 = vld [vmem:[#allocation2 + $0xb0] sm:$0xff]
      %v1582 = vld [vmem:[#allocation2 + $0xc0] sm:$0xff]
      %v1583 = vld [vmem:[#allocation2 + $0xc8] sm:$0xff]
      %v1584 = vld [vmem:[#allocation2 + $0xd8] sm:$0xff]
      %v1585 = vld [vmem:[#allocation2 + $0xe0] sm:$0xff]
      %v1586 = vld [vmem:[#allocation2 + $0xf0] sm:$0xff]
      %v1587 = vld [vmem:[#allocation2 + $0xf8] sm:$0xff]
      %v1588 = vld [vmem:[#allocation2 + $0x108] sm:$0xff]
      %v1589 = vld [vmem:[#allocation2 + $0x110] sm:$0xff]
      %v1590 = vld [vmem:[#allocation2 + $0x120] sm:$0xff]
      %v1591 = vld [vmem:[#allocation2 + $0x128] sm:$0xff]
      %v1592 = vld [vmem:[#allocation2 + $0x138] sm:$0xff]
      %v1593 = vld [vmem:[#allocation2 + $0x140] sm:$0xff]
      %v1594 = vld [vmem:[#allocation2 + $0x150] sm:$0xff]
      %v1595 = vld [vmem:[#allocation2 + $0x158] sm:$0xff]
      %v1596 = vld [vmem:[#allocation2 + $0x168] sm:$0xff]
      %v1597 = vld [vmem:[#allocation2 + $0x170] sm:$0xff]
      %v1598 = vlaneseq
      %v1599 = vshrl.u32 %v1598, 7
      %v1600 = vsub.s32 0, %v1599
      %v1601 = vrot.slane %v449, %v1600
      %v1602 = vmul.f32 %v1566, %v1601
      %v1603 = vmul.f32 %v1567, %v1601
      %v1604 = vmul.f32 %v1568, %v1601
      %v1605 = vmul.f32 %v1569, %v1601
      %v1606 = vmul.f32 %v1570, %v1601
      %v1607 = vmul.f32 %v1571, %v1601
      %v1608 = vmul.f32 %v1572, %v1601
      %v1609 = vmul.f32 %v1573, %v1601
      %v1610 = vmul.f32 %v1574, %v1601
      %v1611 = vmul.f32 %v1575, %v1601
      %v1612 = vmul.f32 %v1576, %v1601
      %v1613 = vmul.f32 %v1577, %v1601
      %v1614 = vmul.f32 %v1578, %v1601
      %v1615 = vmul.f32 %v1579, %v1601
      %v1616 = vmul.f32 %v1580, %v1601
      %v1617 = vmul.f32 %v1581, %v1601
      %v1618 = vmul.f32 %v1582, %v1601
      %v1619 = vmul.f32 %v1583, %v1601
      %v1620 = vmul.f32 %v1584, %v1601
      %v1621 = vmul.f32 %v1585, %v1601
      %v1622 = vmul.f32 %v1586, %v1601
      %v1623 = vmul.f32 %v1587, %v1601
      %v1624 = vmul.f32 %v1588, %v1601
      %v1625 = vmul.f32 %v1589, %v1601
      %v1626 = vmul.f32 %v1590, %v1601
      %v1627 = vmul.f32 %v1591, %v1601
      %v1628 = vmul.f32 %v1592, %v1601
      %v1629 = vmul.f32 %v1593, %v1601
      %v1630 = vmul.f32 %v1594, %v1601
      %v1631 = vmul.f32 %v1595, %v1601
      %v1632 = vmul.f32 %v1596, %v1601
      %v1633 = vmul.f32 %v1597, %v1601
      %v1634 = vadd.f32 %v1602, 0.0
      %v1635 = vadd.f32 %v1603, 0.0
      %v1636 = vadd.f32 %v1604, 0.0
      %v1637 = vadd.f32 %v1605, 0.0
      %v1638 = vadd.f32 %v1606, 0.0
      %v1639 = vadd.f32 %v1607, 0.0
      %v1640 = vadd.f32 %v1608, 0.0
      %v1641 = vadd.f32 %v1609, 0.0
      %v1642 = vadd.f32 %v1610, 0.0
      %v1643 = vadd.f32 %v1611, 0.0
      %v1644 = vadd.f32 %v1612, 0.0
      %v1645 = vadd.f32 %v1613, 0.0
      %v1646 = vadd.f32 %v1614, 0.0
      %v1647 = vadd.f32 %v1615, 0.0
      %v1648 = vadd.f32 %v1616, 0.0
      %v1649 = vadd.f32 %v1617, 0.0
      %v1650 = vadd.f32 %v1618, 0.0
      %v1651 = vadd.f32 %v1619, 0.0
      %v1652 = vadd.f32 %v1620, 0.0
      %v1653 = vadd.f32 %v1621, 0.0
      %v1654 = vadd.f32 %v1622, 0.0
      %v1655 = vadd.f32 %v1623, 0.0
      %v1656 = vadd.f32 %v1624, 0.0
      %v1657 = vadd.f32 %v1625, 0.0
      %v1658 = vadd.f32 %v1626, 0.0
      %v1659 = vadd.f32 %v1627, 0.0
      %v1660 = vadd.f32 %v1628, 0.0
      %v1661 = vadd.f32 %v1629, 0.0
      %v1662 = vadd.f32 %v1630, 0.0
      %v1663 = vadd.f32 %v1631, 0.0
      %v1664 = vadd.f32 %v1632, 0.0
      %v1665 = vadd.f32 %v1633, 0.0
      %v1666 = vld [vmem:[#allocation2 + $0x1] sm:$0xff]
      %v1667 = vld [vmem:[#allocation2 + $0x9] sm:$0xff]
      %v1668 = vld [vmem:[#allocation2 + $0x19] sm:$0xff]
      %v1669 = vld [vmem:[#allocation2 + $0x21] sm:$0xff]
      %v1670 = vld [vmem:[#allocation2 + $0x31] sm:$0xff]
      %v1671 = vld [vmem:[#allocation2 + $0x39] sm:$0xff]
      %v1672 = vld [vmem:[#allocation2 + $0x49] sm:$0xff]
      %v1673 = vld [vmem:[#allocation2 + $0x51] sm:$0xff]
      %v1674 = vld [vmem:[#allocation2 + $0x61] sm:$0xff]
      %v1675 = vld [vmem:[#allocation2 + $0x69] sm:$0xff]
      %v1676 = vld [vmem:[#allocation2 + $0x79] sm:$0xff]
      %v1677 = vld [vmem:[#allocation2 + $0x81] sm:$0xff]
      %v1678 = vld [vmem:[#allocation2 + $0x91] sm:$0xff]
      %v1679 = vld [vmem:[#allocation2 + $0x99] sm:$0xff]
      %v1680 = vld [vmem:[#allocation2 + $0xa9] sm:$0xff]
      %v1681 = vld [vmem:[#allocation2 + $0xb1] sm:$0xff]
      %v1682 = vld [vmem:[#allocation2 + $0xc1] sm:$0xff]
      %v1683 = vld [vmem:[#allocation2 + $0xc9] sm:$0xff]
      %v1684 = vld [vmem:[#allocation2 + $0xd9] sm:$0xff]
      %v1685 = vld [vmem:[#allocation2 + $0xe1] sm:$0xff]
      %v1686 = vld [vmem:[#allocation2 + $0xf1] sm:$0xff]
      %v1687 = vld [vmem:[#allocation2 + $0xf9] sm:$0xff]
      %v1688 = vld [vmem:[#allocation2 + $0x109] sm:$0xff]
      %v1689 = vld [vmem:[#allocation2 + $0x111] sm:$0xff]
      %v1690 = vld [vmem:[#allocation2 + $0x121] sm:$0xff]
      %v1691 = vld [vmem:[#allocation2 + $0x129] sm:$0xff]
      %v1692 = vld [vmem:[#allocation2 + $0x139] sm:$0xff]
      %v1693 = vld [vmem:[#allocation2 + $0x141] sm:$0xff]
      %v1694 = vld [vmem:[#allocation2 + $0x151] sm:$0xff]
      %v1695 = vld [vmem:[#allocation2 + $0x159] sm:$0xff]
      %v1696 = vld [vmem:[#allocation2 + $0x169] sm:$0xff]
      %v1697 = vld [vmem:[#allocation2 + $0x171] sm:$0xff]
      %v1698 = vlaneseq
      %v1699 = vshrl.u32 %v1698, 7
      %v1700 = vsub.s32 1, %v1699
      %v1701 = vrot.slane %v449, %v1700
      %v1702 = vmul.f32 %v1666, %v1701
      %v1703 = vmul.f32 %v1667, %v1701
      %v1704 = vmul.f32 %v1668, %v1701
      %v1705 = vmul.f32 %v1669, %v1701
      %v1706 = vmul.f32 %v1670, %v1701
      %v1707 = vmul.f32 %v1671, %v1701
      %v1708 = vmul.f32 %v1672, %v1701
      %v1709 = vmul.f32 %v1673, %v1701
      %v1710 = vmul.f32 %v1674, %v1701
      %v1711 = vmul.f32 %v1675, %v1701
      %v1712 = vmul.f32 %v1676, %v1701
      %v1713 = vmul.f32 %v1677, %v1701
      %v1714 = vmul.f32 %v1678, %v1701
      %v1715 = vmul.f32 %v1679, %v1701
      %v1716 = vmul.f32 %v1680, %v1701
      %v1717 = vmul.f32 %v1681, %v1701
      %v1718 = vmul.f32 %v1682, %v1701
      %v1719 = vmul.f32 %v1683, %v1701
      %v1720 = vmul.f32 %v1684, %v1701
      %v1721 = vmul.f32 %v1685, %v1701
      %v1722 = vmul.f32 %v1686, %v1701
      %v1723 = vmul.f32 %v1687, %v1701
      %v1724 = vmul.f32 %v1688, %v1701
      %v1725 = vmul.f32 %v1689, %v1701
      %v1726 = vmul.f32 %v1690, %v1701
      %v1727 = vmul.f32 %v1691, %v1701
      %v1728 = vmul.f32 %v1692, %v1701
      %v1729 = vmul.f32 %v1693, %v1701
      %v1730 = vmul.f32 %v1694, %v1701
      %v1731 = vmul.f32 %v1695, %v1701
      %v1732 = vmul.f32 %v1696, %v1701
      %v1733 = vmul.f32 %v1697, %v1701
      %v1734 = vadd.f32 %v1634, %v1702
      %v1735 = vadd.f32 %v1635, %v1703
      %v1736 = vadd.f32 %v1636, %v1704
      %v1737 = vadd.f32 %v1637, %v1705
      %v1738 = vadd.f32 %v1638, %v1706
      %v1739 = vadd.f32 %v1639, %v1707
      %v1740 = vadd.f32 %v1640, %v1708
      %v1741 = vadd.f32 %v1641, %v1709
      %v1742 = vadd.f32 %v1642, %v1710
      %v1743 = vadd.f32 %v1643, %v1711
      %v1744 = vadd.f32 %v1644, %v1712
      %v1745 = vadd.f32 %v1645, %v1713
      %v1746 = vadd.f32 %v1646, %v1714
      %v1747 = vadd.f32 %v1647, %v1715
      %v1748 = vadd.f32 %v1648, %v1716
      %v1749 = vadd.f32 %v1649, %v1717
      %v1750 = vadd.f32 %v1650, %v1718
      %v1751 = vadd.f32 %v1651, %v1719
      %v1752 = vadd.f32 %v1652, %v1720
      %v1753 = vadd.f32 %v1653, %v1721
      %v1754 = vadd.f32 %v1654, %v1722
      %v1755 = vadd.f32 %v1655, %v1723
      %v1756 = vadd.f32 %v1656, %v1724
      %v1757 = vadd.f32 %v1657, %v1725
      %v1758 = vadd.f32 %v1658, %v1726
      %v1759 = vadd.f32 %v1659, %v1727
      %v1760 = vadd.f32 %v1660, %v1728
      %v1761 = vadd.f32 %v1661, %v1729
      %v1762 = vadd.f32 %v1662, %v1730
      %v1763 = vadd.f32 %v1663, %v1731
      %v1764 = vadd.f32 %v1664, %v1732
      %v1765 = vadd.f32 %v1665, %v1733
      %v1766 = vld [vmem:[#allocation2 + $0x2] sm:$0xff]
      %v1767 = vld [vmem:[#allocation2 + $0xa] sm:$0xff]
      %v1768 = vld [vmem:[#allocation2 + $0x1a] sm:$0xff]
      %v1769 = vld [vmem:[#allocation2 + $0x22] sm:$0xff]
      %v1770 = vld [vmem:[#allocation2 + $0x32] sm:$0xff]
      %v1771 = vld [vmem:[#allocation2 + $0x3a] sm:$0xff]
      %v1772 = vld [vmem:[#allocation2 + $0x4a] sm:$0xff]
      %v1773 = vld [vmem:[#allocation2 + $0x52] sm:$0xff]
      %v1774 = vld [vmem:[#allocation2 + $0x62] sm:$0xff]
      %v1775 = vld [vmem:[#allocation2 + $0x6a] sm:$0xff]
      %v1776 = vld [vmem:[#allocation2 + $0x7a] sm:$0xff]
      %v1777 = vld [vmem:[#allocation2 + $0x82] sm:$0xff]
      %v1778 = vld [vmem:[#allocation2 + $0x92] sm:$0xff]
      %v1779 = vld [vmem:[#allocation2 + $0x9a] sm:$0xff]
      %v1780 = vld [vmem:[#allocation2 + $0xaa] sm:$0xff]
      %v1781 = vld [vmem:[#allocation2 + $0xb2] sm:$0xff]
      %v1782 = vld [vmem:[#allocation2 + $0xc2] sm:$0xff]
      %v1783 = vld [vmem:[#allocation2 + $0xca] sm:$0xff]
      %v1784 = vld [vmem:[#allocation2 + $0xda] sm:$0xff]
      %v1785 = vld [vmem:[#allocation2 + $0xe2] sm:$0xff]
      %v1786 = vld [vmem:[#allocation2 + $0xf2] sm:$0xff]
      %v1787 = vld [vmem:[#allocation2 + $0xfa] sm:$0xff]
      %v1788 = vld [vmem:[#allocation2 + $0x10a] sm:$0xff]
      %v1789 = vld [vmem:[#allocation2 + $0x112] sm:$0xff]
      %v1790 = vld [vmem:[#allocation2 + $0x122] sm:$0xff]
      %v1791 = vld [vmem:[#allocation2 + $0x12a] sm:$0xff]
      %v1792 = vld [vmem:[#allocation2 + $0x13a] sm:$0xff]
      %v1793 = vld [vmem:[#allocation2 + $0x142] sm:$0xff]
      %v1794 = vld [vmem:[#allocation2 + $0x152] sm:$0xff]
      %v1795 = vld [vmem:[#allocation2 + $0x15a] sm:$0xff]
      %v1796 = vld [vmem:[#allocation2 + $0x16a] sm:$0xff]
      %v1797 = vld [vmem:[#allocation2 + $0x172] sm:$0xff]
      %v1798 = vlaneseq
      %v1799 = vshrl.u32 %v1798, 7
      %v1800 = vsub.s32 2, %v1799
      %v1801 = vrot.slane %v449, %v1800
      %v1802 = vmul.f32 %v1766, %v1801
      %v1803 = vmul.f32 %v1767, %v1801
      %v1804 = vmul.f32 %v1768, %v1801
      %v1805 = vmul.f32 %v1769, %v1801
      %v1806 = vmul.f32 %v1770, %v1801
      %v1807 = vmul.f32 %v1771, %v1801
      %v1808 = vmul.f32 %v1772, %v1801
      %v1809 = vmul.f32 %v1773, %v1801
      %v1810 = vmul.f32 %v1774, %v1801
      %v1811 = vmul.f32 %v1775, %v1801
      %v1812 = vmul.f32 %v1776, %v1801
      %v1813 = vmul.f32 %v1777, %v1801
      %v1814 = vmul.f32 %v1778, %v1801
      %v1815 = vmul.f32 %v1779, %v1801
      %v1816 = vmul.f32 %v1780, %v1801
      %v1817 = vmul.f32 %v1781, %v1801
      %v1818 = vmul.f32 %v1782, %v1801
      %v1819 = vmul.f32 %v1783, %v1801
      %v1820 = vmul.f32 %v1784, %v1801
      %v1821 = vmul.f32 %v1785, %v1801
      %v1822 = vmul.f32 %v1786, %v1801
      %v1823 = vmul.f32 %v1787, %v1801
      %v1824 = vmul.f32 %v1788, %v1801
      %v1825 = vmul.f32 %v1789, %v1801
      %v1826 = vmul.f32 %v1790, %v1801
      %v1827 = vmul.f32 %v1791, %v1801
      %v1828 = vmul.f32 %v1792, %v1801
      %v1829 = vmul.f32 %v1793, %v1801
      %v1830 = vmul.f32 %v1794, %v1801
      %v1831 = vmul.f32 %v1795, %v1801
      %v1832 = vmul.f32 %v1796, %v1801
      %v1833 = vmul.f32 %v1797, %v1801
      %v1834 = vadd.f32 %v1734, %v1802
      %v1835 = vadd.f32 %v1735, %v1803
      %v1836 = vadd.f32 %v1736, %v1804
      %v1837 = vadd.f32 %v1737, %v1805
      %v1838 = vadd.f32 %v1738, %v1806
      %v1839 = vadd.f32 %v1739, %v1807
      %v1840 = vadd.f32 %v1740, %v1808
      %v1841 = vadd.f32 %v1741, %v1809
      %v1842 = vadd.f32 %v1742, %v1810
      %v1843 = vadd.f32 %v1743, %v1811
      %v1844 = vadd.f32 %v1744, %v1812
      %v1845 = vadd.f32 %v1745, %v1813
      %v1846 = vadd.f32 %v1746, %v1814
      %v1847 = vadd.f32 %v1747, %v1815
      %v1848 = vadd.f32 %v1748, %v1816
      %v1849 = vadd.f32 %v1749, %v1817
      %v1850 = vadd.f32 %v1750, %v1818
      %v1851 = vadd.f32 %v1751, %v1819
      %v1852 = vadd.f32 %v1752, %v1820
      %v1853 = vadd.f32 %v1753, %v1821
      %v1854 = vadd.f32 %v1754, %v1822
      %v1855 = vadd.f32 %v1755, %v1823
      %v1856 = vadd.f32 %v1756, %v1824
      %v1857 = vadd.f32 %v1757, %v1825
      %v1858 = vadd.f32 %v1758, %v1826
      %v1859 = vadd.f32 %v1759, %v1827
      %v1860 = vadd.f32 %v1760, %v1828
      %v1861 = vadd.f32 %v1761, %v1829
      %v1862 = vadd.f32 %v1762, %v1830
      %v1863 = vadd.f32 %v1763, %v1831
      %v1864 = vadd.f32 %v1764, %v1832
      %v1865 = vadd.f32 %v1765, %v1833
      %v1866 = vld [vmem:[%s1530] sm:$0xff]
      %v1867 = vld [vmem:[%s1530 + $0x8] sm:$0xff]
      %v1868 = vld [vmem:[%s1530 + $0x18] sm:$0xff]
      %v1869 = vld [vmem:[%s1530 + $0x20] sm:$0xff]
      %v1870 = vld [vmem:[%s1530 + $0x30] sm:$0xff]
      %v1871 = vld [vmem:[%s1530 + $0x38] sm:$0xff]
      %v1872 = vld [vmem:[%s1530 + $0x48] sm:$0xff]
      %v1873 = vld [vmem:[%s1530 + $0x50] sm:$0xff]
      %v1874 = vld [vmem:[%s1530 + $0x60] sm:$0xff]
      %v1875 = vld [vmem:[%s1530 + $0x68] sm:$0xff]
      %v1876 = vld [vmem:[%s1530 + $0x78] sm:$0xff]
      %v1877 = vld [vmem:[%s1530 + $0x80] sm:$0xff]
      %v1878 = vld [vmem:[%s1530 + $0x90] sm:$0xff]
      %v1879 = vld [vmem:[%s1530 + $0x98] sm:$0xff]
      %v1880 = vld [vmem:[%s1530 + $0xa8] sm:$0xff]
      %v1881 = vld [vmem:[%s1530 + $0xb0] sm:$0xff]
      %v1882 = vld [vmem:[%s1530 + $0xc0] sm:$0xff]
      %v1883 = vld [vmem:[%s1530 + $0xc8] sm:$0xff]
      %v1884 = vld [vmem:[%s1530 + $0xd8] sm:$0xff]
      %v1885 = vld [vmem:[%s1530 + $0xe0] sm:$0xff]
      %v1886 = vld [vmem:[%s1530 + $0xf0] sm:$0xff]
      %v1887 = vld [vmem:[%s1530 + $0xf8] sm:$0xff]
      %v1888 = vld [vmem:[%s1530 + $0x108] sm:$0xff]
      %v1889 = vld [vmem:[%s1530 + $0x110] sm:$0xff]
      %v1890 = vld [vmem:[%s1530 + $0x120] sm:$0xff]
      %v1891 = vld [vmem:[%s1530 + $0x128] sm:$0xff]
      %v1892 = vld [vmem:[%s1530 + $0x138] sm:$0xff]
      %v1893 = vld [vmem:[%s1530 + $0x140] sm:$0xff]
      %v1894 = vld [vmem:[%s1530 + $0x150] sm:$0xff]
      %v1895 = vld [vmem:[%s1530 + $0x158] sm:$0xff]
      %v1896 = vld [vmem:[%s1530 + $0x168] sm:$0xff]
      %v1897 = vld [vmem:[%s1530 + $0x170] sm:$0xff]
      %v1898 = vlaneseq
      %v1899 = vshrl.u32 %v1898, 7
      %v1900 = vsub.s32 3, %v1899
      %v1901 = vrot.slane %v449, %v1900
      %v1902 = vmul.f32 %v1866, %v1901
      %v1903 = vmul.f32 %v1867, %v1901
      %v1904 = vmul.f32 %v1868, %v1901
      %v1905 = vmul.f32 %v1869, %v1901
      %v1906 = vmul.f32 %v1870, %v1901
      %v1907 = vmul.f32 %v1871, %v1901
      %v1908 = vmul.f32 %v1872, %v1901
      %v1909 = vmul.f32 %v1873, %v1901
      %v1910 = vmul.f32 %v1874, %v1901
      %v1911 = vmul.f32 %v1875, %v1901
      %v1912 = vmul.f32 %v1876, %v1901
      %v1913 = vmul.f32 %v1877, %v1901
      %v1914 = vmul.f32 %v1878, %v1901
      %v1915 = vmul.f32 %v1879, %v1901
      %v1916 = vmul.f32 %v1880, %v1901
      %v1917 = vmul.f32 %v1881, %v1901
      %v1918 = vmul.f32 %v1882, %v1901
      %v1919 = vmul.f32 %v1883, %v1901
      %v1920 = vmul.f32 %v1884, %v1901
      %v1921 = vmul.f32 %v1885, %v1901
      %v1922 = vmul.f32 %v1886, %v1901
      %v1923 = vmul.f32 %v1887, %v1901
      %v1924 = vmul.f32 %v1888, %v1901
      %v1925 = vmul.f32 %v1889, %v1901
      %v1926 = vmul.f32 %v1890, %v1901
      %v1927 = vmul.f32 %v1891, %v1901
      %v1928 = vmul.f32 %v1892, %v1901
      %v1929 = vmul.f32 %v1893, %v1901
      %v1930 = vmul.f32 %v1894, %v1901
      %v1931 = vmul.f32 %v1895, %v1901
      %v1932 = vmul.f32 %v1896, %v1901
      %v1933 = vmul.f32 %v1897, %v1901
      %v1934 = vadd.f32 %v1834, %v1902
      %v1935 = vadd.f32 %v1835, %v1903
      %v1936 = vadd.f32 %v1836, %v1904
      %v1937 = vadd.f32 %v1837, %v1905
      %v1938 = vadd.f32 %v1838, %v1906
      %v1939 = vadd.f32 %v1839, %v1907
      %v1940 = vadd.f32 %v1840, %v1908
      %v1941 = vadd.f32 %v1841, %v1909
      %v1942 = vadd.f32 %v1842, %v1910
      %v1943 = vadd.f32 %v1843, %v1911
      %v1944 = vadd.f32 %v1844, %v1912
      %v1945 = vadd.f32 %v1845, %v1913
      %v1946 = vadd.f32 %v1846, %v1914
      %v1947 = vadd.f32 %v1847, %v1915
      %v1948 = vadd.f32 %v1848, %v1916
      %v1949 = vadd.f32 %v1849, %v1917
      %v1950 = vadd.f32 %v1850, %v1918
      %v1951 = vadd.f32 %v1851, %v1919
      %v1952 = vadd.f32 %v1852, %v1920
      %v1953 = vadd.f32 %v1853, %v1921
      %v1954 = vadd.f32 %v1854, %v1922
      %v1955 = vadd.f32 %v1855, %v1923
      %v1956 = vadd.f32 %v1856, %v1924
      %v1957 = vadd.f32 %v1857, %v1925
      %v1958 = vadd.f32 %v1858, %v1926
      %v1959 = vadd.f32 %v1859, %v1927
      %v1960 = vadd.f32 %v1860, %v1928
      %v1961 = vadd.f32 %v1861, %v1929
      %v1962 = vadd.f32 %v1862, %v1930
      %v1963 = vadd.f32 %v1863, %v1931
      %v1964 = vadd.f32 %v1864, %v1932
      %v1965 = vadd.f32 %v1865, %v1933
      %v1966 = vld [vmem:[%s1530 + $0x1] sm:$0xff]
      %v1967 = vld [vmem:[%s1530 + $0x9] sm:$0xff]
      %v1968 = vld [vmem:[%s1530 + $0x19] sm:$0xff]
      %v1969 = vld [vmem:[%s1530 + $0x21] sm:$0xff]
      %v1970 = vld [vmem:[%s1530 + $0x31] sm:$0xff]
      %v1971 = vld [vmem:[%s1530 + $0x39] sm:$0xff]
      %v1972 = vld [vmem:[%s1530 + $0x49] sm:$0xff]
      %v1973 = vld [vmem:[%s1530 + $0x51] sm:$0xff]
      %v1974 = vld [vmem:[%s1530 + $0x61] sm:$0xff]
      %v1975 = vld [vmem:[%s1530 + $0x69] sm:$0xff]
      %v1976 = vld [vmem:[%s1530 + $0x79] sm:$0xff]
      %v1977 = vld [vmem:[%s1530 + $0x81] sm:$0xff]
      %v1978 = vld [vmem:[%s1530 + $0x91] sm:$0xff]
      %v1979 = vld [vmem:[%s1530 + $0x99] sm:$0xff]
      %v1980 = vld [vmem:[%s1530 + $0xa9] sm:$0xff]
      %v1981 = vld [vmem:[%s1530 + $0xb1] sm:$0xff]
      %v1982 = vld [vmem:[%s1530 + $0xc1] sm:$0xff]
      %v1983 = vld [vmem:[%s1530 + $0xc9] sm:$0xff]
      %v1984 = vld [vmem:[%s1530 + $0xd9] sm:$0xff]
      %v1985 = vld [vmem:[%s1530 + $0xe1] sm:$0xff]
      %v1986 = vld [vmem:[%s1530 + $0xf1] sm:$0xff]
      %v1987 = vld [vmem:[%s1530 + $0xf9] sm:$0xff]
      %v1988 = vld [vmem:[%s1530 + $0x109] sm:$0xff]
      %v1989 = vld [vmem:[%s1530 + $0x111] sm:$0xff]
      %v1990 = vld [vmem:[%s1530 + $0x121] sm:$0xff]
      %v1991 = vld [vmem:[%s1530 + $0x129] sm:$0xff]
      %v1992 = vld [vmem:[%s1530 + $0x139] sm:$0xff]
      %v1993 = vld [vmem:[%s1530 + $0x141] sm:$0xff]
      %v1994 = vld [vmem:[%s1530 + $0x151] sm:$0xff]
      %v1995 = vld [vmem:[%s1530 + $0x159] sm:$0xff]
      %v1996 = vld [vmem:[%s1530 + $0x169] sm:$0xff]
      %v1997 = vld [vmem:[%s1530 + $0x171] sm:$0xff]
      %v1998 = vlaneseq
      %v1999 = vshrl.u32 %v1998, 7
      %v2000 = vsub.s32 4, %v1999
      %v2001 = vrot.slane %v449, %v2000
      %v2002 = vmul.f32 %v1966, %v2001
      %v2003 = vmul.f32 %v1967, %v2001
      %v2004 = vmul.f32 %v1968, %v2001
      %v2005 = vmul.f32 %v1969, %v2001
      %v2006 = vmul.f32 %v1970, %v2001
      %v2007 = vmul.f32 %v1971, %v2001
      %v2008 = vmul.f32 %v1972, %v2001
      %v2009 = vmul.f32 %v1973, %v2001
      %v2010 = vmul.f32 %v1974, %v2001
      %v2011 = vmul.f32 %v1975, %v2001
      %v2012 = vmul.f32 %v1976, %v2001
      %v2013 = vmul.f32 %v1977, %v2001
      %v2014 = vmul.f32 %v1978, %v2001
      %v2015 = vmul.f32 %v1979, %v2001
      %v2016 = vmul.f32 %v1980, %v2001
      %v2017 = vmul.f32 %v1981, %v2001
      %v2018 = vmul.f32 %v1982, %v2001
      %v2019 = vmul.f32 %v1983, %v2001
      %v2020 = vmul.f32 %v1984, %v2001
      %v2021 = vmul.f32 %v1985, %v2001
      %v2022 = vmul.f32 %v1986, %v2001
      %v2023 = vmul.f32 %v1987, %v2001
      %v2024 = vmul.f32 %v1988, %v2001
      %v2025 = vmul.f32 %v1989, %v2001
      %v2026 = vmul.f32 %v1990, %v2001
      %v2027 = vmul.f32 %v1991, %v2001
      %v2028 = vmul.f32 %v1992, %v2001
      %v2029 = vmul.f32 %v1993, %v2001
      %v2030 = vmul.f32 %v1994, %v2001
      %v2031 = vmul.f32 %v1995, %v2001
      %v2032 = vmul.f32 %v1996, %v2001
      %v2033 = vmul.f32 %v1997, %v2001
      %v2034 = vadd.f32 %v1934, %v2002
      %v2035 = vadd.f32 %v1935, %v2003
      %v2036 = vadd.f32 %v1936, %v2004
      %v2037 = vadd.f32 %v1937, %v2005
      %v2038 = vadd.f32 %v1938, %v2006
      %v2039 = vadd.f32 %v1939, %v2007
      %v2040 = vadd.f32 %v1940, %v2008
      %v2041 = vadd.f32 %v1941, %v2009
      %v2042 = vadd.f32 %v1942, %v2010
      %v2043 = vadd.f32 %v1943, %v2011
      %v2044 = vadd.f32 %v1944, %v2012
      %v2045 = vadd.f32 %v1945, %v2013
      %v2046 = vadd.f32 %v1946, %v2014
      %v2047 = vadd.f32 %v1947, %v2015
      %v2048 = vadd.f32 %v1948, %v2016
      %v2049 = vadd.f32 %v1949, %v2017
      %v2050 = vadd.f32 %v1950, %v2018
      %v2051 = vadd.f32 %v1951, %v2019
      %v2052 = vadd.f32 %v1952, %v2020
      %v2053 = vadd.f32 %v1953, %v2021
      %v2054 = vadd.f32 %v1954, %v2022
      %v2055 = vadd.f32 %v1955, %v2023
      %v2056 = vadd.f32 %v1956, %v2024
      %v2057 = vadd.f32 %v1957, %v2025
      %v2058 = vadd.f32 %v1958, %v2026
      %v2059 = vadd.f32 %v1959, %v2027
      %v2060 = vadd.f32 %v1960, %v2028
      %v2061 = vadd.f32 %v1961, %v2029
      %v2062 = vadd.f32 %v1962, %v2030
      %v2063 = vadd.f32 %v1963, %v2031
      %v2064 = vadd.f32 %v1964, %v2032
      %v2065 = vadd.f32 %v1965, %v2033
      %v2066 = vld [vmem:[%s1530 + $0x2] sm:$0xff]
      %v2067 = vld [vmem:[%s1530 + $0xa] sm:$0xff]
      %v2068 = vld [vmem:[%s1530 + $0x1a] sm:$0xff]
      %v2069 = vld [vmem:[%s1530 + $0x22] sm:$0xff]
      %v2070 = vld [vmem:[%s1530 + $0x32] sm:$0xff]
      %v2071 = vld [vmem:[%s1530 + $0x3a] sm:$0xff]
      %v2072 = vld [vmem:[%s1530 + $0x4a] sm:$0xff]
      %v2073 = vld [vmem:[%s1530 + $0x52] sm:$0xff]
      %v2074 = vld [vmem:[%s1530 + $0x62] sm:$0xff]
      %v2075 = vld [vmem:[%s1530 + $0x6a] sm:$0xff]
      %v2076 = vld [vmem:[%s1530 + $0x7a] sm:$0xff]
      %v2077 = vld [vmem:[%s1530 + $0x82] sm:$0xff]
      %v2078 = vld [vmem:[%s1530 + $0x92] sm:$0xff]
      %v2079 = vld [vmem:[%s1530 + $0x9a] sm:$0xff]
      %v2080 = vld [vmem:[%s1530 + $0xaa] sm:$0xff]
      %v2081 = vld [vmem:[%s1530 + $0xb2] sm:$0xff]
      %v2082 = vld [vmem:[%s1530 + $0xc2] sm:$0xff]
      %v2083 = vld [vmem:[%s1530 + $0xca] sm:$0xff]
      %v2084 = vld [vmem:[%s1530 + $0xda] sm:$0xff]
      %v2085 = vld [vmem:[%s1530 + $0xe2] sm:$0xff]
      %v2086 = vld [vmem:[%s1530 + $0xf2] sm:$0xff]
      %v2087 = vld [vmem:[%s1530 + $0xfa] sm:$0xff]
      %v2088 = vld [vmem:[%s1530 + $0x10a] sm:$0xff]
      %v2089 = vld [vmem:[%s1530 + $0x112] sm:$0xff]
      %v2090 = vld [vmem:[%s1530 + $0x122] sm:$0xff]
      %v2091 = vld [vmem:[%s1530 + $0x12a] sm:$0xff]
      %v2092 = vld [vmem:[%s1530 + $0x13a] sm:$0xff]
      %v2093 = vld [vmem:[%s1530 + $0x142] sm:$0xff]
      %v2094 = vld [vmem:[%s1530 + $0x152] sm:$0xff]
      %v2095 = vld [vmem:[%s1530 + $0x15a] sm:$0xff]
      %v2096 = vld [vmem:[%s1530 + $0x16a] sm:$0xff]
      %v2097 = vld [vmem:[%s1530 + $0x172] sm:$0xff]
      %v2098 = vlaneseq
      %v2099 = vshrl.u32 %v2098, 7
      %v2100 = vsub.s32 5, %v2099
      %v2101 = vrot.slane %v449, %v2100
      %v2102 = vmul.f32 %v2066, %v2101
      %v2103 = vmul.f32 %v2067, %v2101
      %v2104 = vmul.f32 %v2068, %v2101
      %v2105 = vmul.f32 %v2069, %v2101
      %v2106 = vmul.f32 %v2070, %v2101
      %v2107 = vmul.f32 %v2071, %v2101
      %v2108 = vmul.f32 %v2072, %v2101
      %v2109 = vmul.f32 %v2073, %v2101
      %v2110 = vmul.f32 %v2074, %v2101
      %v2111 = vmul.f32 %v2075, %v2101
      %v2112 = vmul.f32 %v2076, %v2101
      %v2113 = vmul.f32 %v2077, %v2101
      %v2114 = vmul.f32 %v2078, %v2101
      %v2115 = vmul.f32 %v2079, %v2101
      %v2116 = vmul.f32 %v2080, %v2101
      %v2117 = vmul.f32 %v2081, %v2101
      %v2118 = vmul.f32 %v2082, %v2101
      %v2119 = vmul.f32 %v2083, %v2101
      %v2120 = vmul.f32 %v2084, %v2101
      %v2121 = vmul.f32 %v2085, %v2101
      %v2122 = vmul.f32 %v2086, %v2101
      %v2123 = vmul.f32 %v2087, %v2101
      %v2124 = vmul.f32 %v2088, %v2101
      %v2125 = vmul.f32 %v2089, %v2101
      %v2126 = vmul.f32 %v2090, %v2101
      %v2127 = vmul.f32 %v2091, %v2101
      %v2128 = vmul.f32 %v2092, %v2101
      %v2129 = vmul.f32 %v2093, %v2101
      %v2130 = vmul.f32 %v2094, %v2101
      %v2131 = vmul.f32 %v2095, %v2101
      %v2132 = vmul.f32 %v2096, %v2101
      %v2133 = vmul.f32 %v2097, %v2101
      %v2134 = vadd.f32 %v2034, %v2102
      %v2135 = vadd.f32 %v2035, %v2103
      %v2136 = vadd.f32 %v2036, %v2104
      %v2137 = vadd.f32 %v2037, %v2105
      %v2138 = vadd.f32 %v2038, %v2106
      %v2139 = vadd.f32 %v2039, %v2107
      %v2140 = vadd.f32 %v2040, %v2108
      %v2141 = vadd.f32 %v2041, %v2109
      %v2142 = vadd.f32 %v2042, %v2110
      %v2143 = vadd.f32 %v2043, %v2111
      %v2144 = vadd.f32 %v2044, %v2112
      %v2145 = vadd.f32 %v2045, %v2113
      %v2146 = vadd.f32 %v2046, %v2114
      %v2147 = vadd.f32 %v2047, %v2115
      %v2148 = vadd.f32 %v2048, %v2116
      %v2149 = vadd.f32 %v2049, %v2117
      %v2150 = vadd.f32 %v2050, %v2118
      %v2151 = vadd.f32 %v2051, %v2119
      %v2152 = vadd.f32 %v2052, %v2120
      %v2153 = vadd.f32 %v2053, %v2121
      %v2154 = vadd.f32 %v2054, %v2122
      %v2155 = vadd.f32 %v2055, %v2123
      %v2156 = vadd.f32 %v2056, %v2124
      %v2157 = vadd.f32 %v2057, %v2125
      %v2158 = vadd.f32 %v2058, %v2126
      %v2159 = vadd.f32 %v2059, %v2127
      %v2160 = vadd.f32 %v2060, %v2128
      %v2161 = vadd.f32 %v2061, %v2129
      %v2162 = vadd.f32 %v2062, %v2130
      %v2163 = vadd.f32 %v2063, %v2131
      %v2164 = vadd.f32 %v2064, %v2132
      %v2165 = vadd.f32 %v2065, %v2133
      %s2166 = scalar_lea.vmem [#allocation2], 48
      %v2167 = vld [vmem:[%s2166] sm:$0xff]
      %v2168 = vld [vmem:[%s2166 + $0x8] sm:$0xff]
      %v2169 = vld [vmem:[%s2166 + $0x18] sm:$0xff]
      %v2170 = vld [vmem:[%s2166 + $0x20] sm:$0xff]
      %v2171 = vld [vmem:[%s2166 + $0x30] sm:$0xff]
      %v2172 = vld [vmem:[%s2166 + $0x38] sm:$0xff]
      %v2173 = vld [vmem:[%s2166 + $0x48] sm:$0xff]
      %v2174 = vld [vmem:[%s2166 + $0x50] sm:$0xff]
      %v2175 = vld [vmem:[%s2166 + $0x60] sm:$0xff]
      %v2176 = vld [vmem:[%s2166 + $0x68] sm:$0xff]
      %v2177 = vld [vmem:[%s2166 + $0x78] sm:$0xff]
      %v2178 = vld [vmem:[%s2166 + $0x80] sm:$0xff]
      %v2179 = vld [vmem:[%s2166 + $0x90] sm:$0xff]
      %v2180 = vld [vmem:[%s2166 + $0x98] sm:$0xff]
      %v2181 = vld [vmem:[%s2166 + $0xa8] sm:$0xff]
      %v2182 = vld [vmem:[%s2166 + $0xb0] sm:$0xff]
      %v2183 = vld [vmem:[%s2166 + $0xc0] sm:$0xff]
      %v2184 = vld [vmem:[%s2166 + $0xc8] sm:$0xff]
      %v2185 = vld [vmem:[%s2166 + $0xd8] sm:$0xff]
      %v2186 = vld [vmem:[%s2166 + $0xe0] sm:$0xff]
      %v2187 = vld [vmem:[%s2166 + $0xf0] sm:$0xff]
      %v2188 = vld [vmem:[%s2166 + $0xf8] sm:$0xff]
      %v2189 = vld [vmem:[%s2166 + $0x108] sm:$0xff]
      %v2190 = vld [vmem:[%s2166 + $0x110] sm:$0xff]
      %v2191 = vld [vmem:[%s2166 + $0x120] sm:$0xff]
      %v2192 = vld [vmem:[%s2166 + $0x128] sm:$0xff]
      %v2193 = vld [vmem:[%s2166 + $0x138] sm:$0xff]
      %v2194 = vld [vmem:[%s2166 + $0x140] sm:$0xff]
      %v2195 = vld [vmem:[%s2166 + $0x150] sm:$0xff]
      %v2196 = vld [vmem:[%s2166 + $0x158] sm:$0xff]
      %v2197 = vld [vmem:[%s2166 + $0x168] sm:$0xff]
      %v2198 = vld [vmem:[%s2166 + $0x170] sm:$0xff]
      %v2199 = vlaneseq
      %v2200 = vshrl.u32 %v2199, 7
      %v2201 = vsub.s32 6, %v2200
      %v2202 = vrot.slane %v449, %v2201
      %v2203 = vmul.f32 %v2167, %v2202
      %v2204 = vmul.f32 %v2168, %v2202
      %v2205 = vmul.f32 %v2169, %v2202
      %v2206 = vmul.f32 %v2170, %v2202
      %v2207 = vmul.f32 %v2171, %v2202
      %v2208 = vmul.f32 %v2172, %v2202
      %v2209 = vmul.f32 %v2173, %v2202
      %v2210 = vmul.f32 %v2174, %v2202
      %v2211 = vmul.f32 %v2175, %v2202
      %v2212 = vmul.f32 %v2176, %v2202
      %v2213 = vmul.f32 %v2177, %v2202
      %v2214 = vmul.f32 %v2178, %v2202
      %v2215 = vmul.f32 %v2179, %v2202
      %v2216 = vmul.f32 %v2180, %v2202
      %v2217 = vmul.f32 %v2181, %v2202
      %v2218 = vmul.f32 %v2182, %v2202
      %v2219 = vmul.f32 %v2183, %v2202
      %v2220 = vmul.f32 %v2184, %v2202
      %v2221 = vmul.f32 %v2185, %v2202
      %v2222 = vmul.f32 %v2186, %v2202
      %v2223 = vmul.f32 %v2187, %v2202
      %v2224 = vmul.f32 %v2188, %v2202
      %v2225 = vmul.f32 %v2189, %v2202
      %v2226 = vmul.f32 %v2190, %v2202
      %v2227 = vmul.f32 %v2191, %v2202
      %v2228 = vmul.f32 %v2192, %v2202
      %v2229 = vmul.f32 %v2193, %v2202
      %v2230 = vmul.f32 %v2194, %v2202
      %v2231 = vmul.f32 %v2195, %v2202
      %v2232 = vmul.f32 %v2196, %v2202
      %v2233 = vmul.f32 %v2197, %v2202
      %v2234 = vmul.f32 %v2198, %v2202
      %v2235 = vadd.f32 %v2134, %v2203
      %v2236 = vadd.f32 %v2135, %v2204
      %v2237 = vadd.f32 %v2136, %v2205
      %v2238 = vadd.f32 %v2137, %v2206
      %v2239 = vadd.f32 %v2138, %v2207
      %v2240 = vadd.f32 %v2139, %v2208
      %v2241 = vadd.f32 %v2140, %v2209
      %v2242 = vadd.f32 %v2141, %v2210
      %v2243 = vadd.f32 %v2142, %v2211
      %v2244 = vadd.f32 %v2143, %v2212
      %v2245 = vadd.f32 %v2144, %v2213
      %v2246 = vadd.f32 %v2145, %v2214
      %v2247 = vadd.f32 %v2146, %v2215
      %v2248 = vadd.f32 %v2147, %v2216
      %v2249 = vadd.f32 %v2148, %v2217
      %v2250 = vadd.f32 %v2149, %v2218
      %v2251 = vadd.f32 %v2150, %v2219
      %v2252 = vadd.f32 %v2151, %v2220
      %v2253 = vadd.f32 %v2152, %v2221
      %v2254 = vadd.f32 %v2153, %v2222
      %v2255 = vadd.f32 %v2154, %v2223
      %v2256 = vadd.f32 %v2155, %v2224
      %v2257 = vadd.f32 %v2156, %v2225
      %v2258 = vadd.f32 %v2157, %v2226
      %v2259 = vadd.f32 %v2158, %v2227
      %v2260 = vadd.f32 %v2159, %v2228
      %v2261 = vadd.f32 %v2160, %v2229
      %v2262 = vadd.f32 %v2161, %v2230
      %v2263 = vadd.f32 %v2162, %v2231
      %v2264 = vadd.f32 %v2163, %v2232
      %v2265 = vadd.f32 %v2164, %v2233
      %v2266 = vadd.f32 %v2165, %v2234
      %v2267 = vld [vmem:[%s2166 + $0x1] sm:$0xff]
      %v2268 = vld [vmem:[%s2166 + $0x9] sm:$0xff]
      %v2269 = vld [vmem:[%s2166 + $0x19] sm:$0xff]
      %v2270 = vld [vmem:[%s2166 + $0x21] sm:$0xff]
      %v2271 = vld [vmem:[%s2166 + $0x31] sm:$0xff]
      %v2272 = vld [vmem:[%s2166 + $0x39] sm:$0xff]
      %v2273 = vld [vmem:[%s2166 + $0x49] sm:$0xff]
      %v2274 = vld [vmem:[%s2166 + $0x51] sm:$0xff]
      %v2275 = vld [vmem:[%s2166 + $0x61] sm:$0xff]
      %v2276 = vld [vmem:[%s2166 + $0x69] sm:$0xff]
      %v2277 = vld [vmem:[%s2166 + $0x79] sm:$0xff]
      %v2278 = vld [vmem:[%s2166 + $0x81] sm:$0xff]
      %v2279 = vld [vmem:[%s2166 + $0x91] sm:$0xff]
      %v2280 = vld [vmem:[%s2166 + $0x99] sm:$0xff]
      %v2281 = vld [vmem:[%s2166 + $0xa9] sm:$0xff]
      %v2282 = vld [vmem:[%s2166 + $0xb1] sm:$0xff]
      %v2283 = vld [vmem:[%s2166 + $0xc1] sm:$0xff]
      %v2284 = vld [vmem:[%s2166 + $0xc9] sm:$0xff]
      %v2285 = vld [vmem:[%s2166 + $0xd9] sm:$0xff]
      %v2286 = vld [vmem:[%s2166 + $0xe1] sm:$0xff]
      %v2287 = vld [vmem:[%s2166 + $0xf1] sm:$0xff]
      %v2288 = vld [vmem:[%s2166 + $0xf9] sm:$0xff]
      %v2289 = vld [vmem:[%s2166 + $0x109] sm:$0xff]
      %v2290 = vld [vmem:[%s2166 + $0x111] sm:$0xff]
      %v2291 = vld [vmem:[%s2166 + $0x121] sm:$0xff]
      %v2292 = vld [vmem:[%s2166 + $0x129] sm:$0xff]
      %v2293 = vld [vmem:[%s2166 + $0x139] sm:$0xff]
      %v2294 = vld [vmem:[%s2166 + $0x141] sm:$0xff]
      %v2295 = vld [vmem:[%s2166 + $0x151] sm:$0xff]
      %v2296 = vld [vmem:[%s2166 + $0x159] sm:$0xff]
      %v2297 = vld [vmem:[%s2166 + $0x169] sm:$0xff]
      %v2298 = vld [vmem:[%s2166 + $0x171] sm:$0xff]
      %v2299 = vlaneseq
      %v2300 = vshrl.u32 %v2299, 7
      %v2301 = vsub.s32 7, %v2300
      %v2302 = vrot.slane %v449, %v2301
      %v2303 = vmul.f32 %v2267, %v2302
      %v2304 = vmul.f32 %v2268, %v2302
      %v2305 = vmul.f32 %v2269, %v2302
      %v2306 = vmul.f32 %v2270, %v2302
      %v2307 = vmul.f32 %v2271, %v2302
      %v2308 = vmul.f32 %v2272, %v2302
      %v2309 = vmul.f32 %v2273, %v2302
      %v2310 = vmul.f32 %v2274, %v2302
      %v2311 = vmul.f32 %v2275, %v2302
      %v2312 = vmul.f32 %v2276, %v2302
      %v2313 = vmul.f32 %v2277, %v2302
      %v2314 = vmul.f32 %v2278, %v2302
      %v2315 = vmul.f32 %v2279, %v2302
      %v2316 = vmul.f32 %v2280, %v2302
      %v2317 = vmul.f32 %v2281, %v2302
      %v2318 = vmul.f32 %v2282, %v2302
      %v2319 = vmul.f32 %v2283, %v2302
      %v2320 = vmul.f32 %v2284, %v2302
      %v2321 = vmul.f32 %v2285, %v2302
      %v2322 = vmul.f32 %v2286, %v2302
      %v2323 = vmul.f32 %v2287, %v2302
      %v2324 = vmul.f32 %v2288, %v2302
      %v2325 = vmul.f32 %v2289, %v2302
      %v2326 = vmul.f32 %v2290, %v2302
      %v2327 = vmul.f32 %v2291, %v2302
      %v2328 = vmul.f32 %v2292, %v2302
      %v2329 = vmul.f32 %v2293, %v2302
      %v2330 = vmul.f32 %v2294, %v2302
      %v2331 = vmul.f32 %v2295, %v2302
      %v2332 = vmul.f32 %v2296, %v2302
      %v2333 = vmul.f32 %v2297, %v2302
      %v2334 = vmul.f32 %v2298, %v2302
      %v2335 = vadd.f32 %v2235, %v2303
      %v2336 = vadd.f32 %v2236, %v2304
      %v2337 = vadd.f32 %v2237, %v2305
      %v2338 = vadd.f32 %v2238, %v2306
      %v2339 = vadd.f32 %v2239, %v2307
      %v2340 = vadd.f32 %v2240, %v2308
      %v2341 = vadd.f32 %v2241, %v2309
      %v2342 = vadd.f32 %v2242, %v2310
      %v2343 = vadd.f32 %v2243, %v2311
      %v2344 = vadd.f32 %v2244, %v2312
      %v2345 = vadd.f32 %v2245, %v2313
      %v2346 = vadd.f32 %v2246, %v2314
      %v2347 = vadd.f32 %v2247, %v2315
      %v2348 = vadd.f32 %v2248, %v2316
      %v2349 = vadd.f32 %v2249, %v2317
      %v2350 = vadd.f32 %v2250, %v2318
      %v2351 = vadd.f32 %v2251, %v2319
      %v2352 = vadd.f32 %v2252, %v2320
      %v2353 = vadd.f32 %v2253, %v2321
      %v2354 = vadd.f32 %v2254, %v2322
      %v2355 = vadd.f32 %v2255, %v2323
      %v2356 = vadd.f32 %v2256, %v2324
      %v2357 = vadd.f32 %v2257, %v2325
      %v2358 = vadd.f32 %v2258, %v2326
      %v2359 = vadd.f32 %v2259, %v2327
      %v2360 = vadd.f32 %v2260, %v2328
      %v2361 = vadd.f32 %v2261, %v2329
      %v2362 = vadd.f32 %v2262, %v2330
      %v2363 = vadd.f32 %v2263, %v2331
      %v2364 = vadd.f32 %v2264, %v2332
      %v2365 = vadd.f32 %v2265, %v2333
      %v2366 = vadd.f32 %v2266, %v2334
      %v2367 = vld [vmem:[%s2166 + $0x2] sm:$0xff]
      %v2368 = vld [vmem:[%s2166 + $0xa] sm:$0xff]
      %v2369 = vld [vmem:[%s2166 + $0x1a] sm:$0xff]
      %v2370 = vld [vmem:[%s2166 + $0x22] sm:$0xff]
      %v2371 = vld [vmem:[%s2166 + $0x32] sm:$0xff]
      %v2372 = vld [vmem:[%s2166 + $0x3a] sm:$0xff]
      %v2373 = vld [vmem:[%s2166 + $0x4a] sm:$0xff]
      %v2374 = vld [vmem:[%s2166 + $0x52] sm:$0xff]
      %v2375 = vld [vmem:[%s2166 + $0x62] sm:$0xff]
      %v2376 = vld [vmem:[%s2166 + $0x6a] sm:$0xff]
      %v2377 = vld [vmem:[%s2166 + $0x7a] sm:$0xff]
      %v2378 = vld [vmem:[%s2166 + $0x82] sm:$0xff]
      %v2379 = vld [vmem:[%s2166 + $0x92] sm:$0xff]
      %v2380 = vld [vmem:[%s2166 + $0x9a] sm:$0xff]
      %v2381 = vld [vmem:[%s2166 + $0xaa] sm:$0xff]
      %v2382 = vld [vmem:[%s2166 + $0xb2] sm:$0xff]
      %v2383 = vld [vmem:[%s2166 + $0xc2] sm:$0xff]
      %v2384 = vld [vmem:[%s2166 + $0xca] sm:$0xff]
      %v2385 = vld [vmem:[%s2166 + $0xda] sm:$0xff]
      %v2386 = vld [vmem:[%s2166 + $0xe2] sm:$0xff]
      %v2387 = vld [vmem:[%s2166 + $0xf2] sm:$0xff]
      %v2388 = vld [vmem:[%s2166 + $0xfa] sm:$0xff]
      %v2389 = vld [vmem:[%s2166 + $0x10a] sm:$0xff]
      %v2390 = vld [vmem:[%s2166 + $0x112] sm:$0xff]
      %v2391 = vld [vmem:[%s2166 + $0x122] sm:$0xff]
      %v2392 = vld [vmem:[%s2166 + $0x12a] sm:$0xff]
      %v2393 = vld [vmem:[%s2166 + $0x13a] sm:$0xff]
      %v2394 = vld [vmem:[%s2166 + $0x142] sm:$0xff]
      %v2395 = vld [vmem:[%s2166 + $0x152] sm:$0xff]
      %v2396 = vld [vmem:[%s2166 + $0x15a] sm:$0xff]
      %v2397 = vld [vmem:[%s2166 + $0x16a] sm:$0xff]
      %v2398 = vld [vmem:[%s2166 + $0x172] sm:$0xff]
      %v2399 = vlaneseq
      %v2400 = vshrl.u32 %v2399, 7
      %v2401 = vsub.s32 0, %v2400
      %v2402 = vrot.slane %v450, %v2401
      %v2403 = vmul.f32 %v2367, %v2402
      %v2404 = vmul.f32 %v2368, %v2402
      %v2405 = vmul.f32 %v2369, %v2402
      %v2406 = vmul.f32 %v2370, %v2402
      %v2407 = vmul.f32 %v2371, %v2402
      %v2408 = vmul.f32 %v2372, %v2402
      %v2409 = vmul.f32 %v2373, %v2402
      %v2410 = vmul.f32 %v2374, %v2402
      %v2411 = vmul.f32 %v2375, %v2402
      %v2412 = vmul.f32 %v2376, %v2402
      %v2413 = vmul.f32 %v2377, %v2402
      %v2414 = vmul.f32 %v2378, %v2402
      %v2415 = vmul.f32 %v2379, %v2402
      %v2416 = vmul.f32 %v2380, %v2402
      %v2417 = vmul.f32 %v2381, %v2402
      %v2418 = vmul.f32 %v2382, %v2402
      %v2419 = vmul.f32 %v2383, %v2402
      %v2420 = vmul.f32 %v2384, %v2402
      %v2421 = vmul.f32 %v2385, %v2402
      %v2422 = vmul.f32 %v2386, %v2402
      %v2423 = vmul.f32 %v2387, %v2402
      %v2424 = vmul.f32 %v2388, %v2402
      %v2425 = vmul.f32 %v2389, %v2402
      %v2426 = vmul.f32 %v2390, %v2402
      %v2427 = vmul.f32 %v2391, %v2402
      %v2428 = vmul.f32 %v2392, %v2402
      %v2429 = vmul.f32 %v2393, %v2402
      %v2430 = vmul.f32 %v2394, %v2402
      %v2431 = vmul.f32 %v2395, %v2402
      %v2432 = vmul.f32 %v2396, %v2402
      %v2433 = vmul.f32 %v2397, %v2402
      %v2434 = vmul.f32 %v2398, %v2402
      %v2435 = vadd.f32 %v2335, %v2403
      %v2436 = vadd.f32 %v2336, %v2404
      %v2437 = vadd.f32 %v2337, %v2405
      %v2438 = vadd.f32 %v2338, %v2406
      %v2439 = vadd.f32 %v2339, %v2407
      %v2440 = vadd.f32 %v2340, %v2408
      %v2441 = vadd.f32 %v2341, %v2409
      %v2442 = vadd.f32 %v2342, %v2410
      %v2443 = vadd.f32 %v2343, %v2411
      %v2444 = vadd.f32 %v2344, %v2412
      %v2445 = vadd.f32 %v2345, %v2413
      %v2446 = vadd.f32 %v2346, %v2414
      %v2447 = vadd.f32 %v2347, %v2415
      %v2448 = vadd.f32 %v2348, %v2416
      %v2449 = vadd.f32 %v2349, %v2417
      %v2450 = vadd.f32 %v2350, %v2418
      %v2451 = vadd.f32 %v2351, %v2419
      %v2452 = vadd.f32 %v2352, %v2420
      %v2453 = vadd.f32 %v2353, %v2421
      %v2454 = vadd.f32 %v2354, %v2422
      %v2455 = vadd.f32 %v2355, %v2423
      %v2456 = vadd.f32 %v2356, %v2424
      %v2457 = vadd.f32 %v2357, %v2425
      %v2458 = vadd.f32 %v2358, %v2426
      %v2459 = vadd.f32 %v2359, %v2427
      %v2460 = vadd.f32 %v2360, %v2428
      %v2461 = vadd.f32 %v2361, %v2429
      %v2462 = vadd.f32 %v2362, %v2430
      %v2463 = vadd.f32 %v2363, %v2431
      %v2464 = vadd.f32 %v2364, %v2432
      %v2465 = vadd.f32 %v2365, %v2433
      %v2466 = vadd.f32 %v2366, %v2434
      %v2468 = vlaneseq
      %v2469 = vshrl.u32 %v2468, 7
      %v2470 = vsub.s32 0, %v2469
      %v2471 = vrot.slane %v451, %v2470
      %v2473 = vadd.f32 %v2435, %v2471
      %v2474 = vadd.f32 %v2436, %v2471
      %v2475 = vadd.f32 %v2437, %v2471
      %v2476 = vadd.f32 %v2438, %v2471
      %v2477 = vadd.f32 %v2439, %v2471
      %v2478 = vadd.f32 %v2440, %v2471
      %v2479 = vadd.f32 %v2441, %v2471
      %v2480 = vadd.f32 %v2442, %v2471
      %v2481 = vadd.f32 %v2443, %v2471
      %v2482 = vadd.f32 %v2444, %v2471
      %v2483 = vadd.f32 %v2445, %v2471
      %v2484 = vadd.f32 %v2446, %v2471
      %v2485 = vadd.f32 %v2447, %v2471
      %v2486 = vadd.f32 %v2448, %v2471
      %v2487 = vadd.f32 %v2449, %v2471
      %v2488 = vadd.f32 %v2450, %v2471
      %v2489 = vadd.f32 %v2451, %v2471
      %v2490 = vadd.f32 %v2452, %v2471
      %v2491 = vadd.f32 %v2453, %v2471
      %v2492 = vadd.f32 %v2454, %v2471
      %v2493 = vadd.f32 %v2455, %v2471
      %v2494 = vadd.f32 %v2456, %v2471
      %v2495 = vadd.f32 %v2457, %v2471
      %v2496 = vadd.f32 %v2458, %v2471
      %v2497 = vadd.f32 %v2459, %v2471
      %v2498 = vadd.f32 %v2460, %v2471
      %v2499 = vadd.f32 %v2461, %v2471
      %v2500 = vadd.f32 %v2462, %v2471
      %v2501 = vadd.f32 %v2463, %v2471
      %v2502 = vadd.f32 %v2464, %v2471
      %v2503 = vadd.f32 %v2465, %v2471
      %v2504 = vadd.f32 %v2466, %v2471
      %v2505 = vmax.f32 %v2473, 0.0
      %v2506 = vmax.f32 %v2474, 0.0
      %v2507 = vmax.f32 %v2475, 0.0
      %v2508 = vmax.f32 %v2476, 0.0
      %v2509 = vmax.f32 %v2477, 0.0
      %v2510 = vmax.f32 %v2478, 0.0
      %v2511 = vmax.f32 %v2479, 0.0
      %v2512 = vmax.f32 %v2480, 0.0
      %v2513 = vmax.f32 %v2481, 0.0
      %v2514 = vmax.f32 %v2482, 0.0
      %v2515 = vmax.f32 %v2483, 0.0
      %v2516 = vmax.f32 %v2484, 0.0
      %v2517 = vmax.f32 %v2485, 0.0
      %v2518 = vmax.f32 %v2486, 0.0
      %v2519 = vmax.f32 %v2487, 0.0
      %v2520 = vmax.f32 %v2488, 0.0
      %v2521 = vmax.f32 %v2489, 0.0
      %v2522 = vmax.f32 %v2490, 0.0
      %v2523 = vmax.f32 %v2491, 0.0
      %v2524 = vmax.f32 %v2492, 0.0
      %v2525 = vmax.f32 %v2493, 0.0
      %v2526 = vmax.f32 %v2494, 0.0
      %v2527 = vmax.f32 %v2495, 0.0
      %v2528 = vmax.f32 %v2496, 0.0
      %v2529 = vmax.f32 %v2497, 0.0
      %v2530 = vmax.f32 %v2498, 0.0
      %v2531 = vmax.f32 %v2499, 0.0
      %v2532 = vmax.f32 %v2500, 0.0
      %v2533 = vmax.f32 %v2501, 0.0
      %v2534 = vmax.f32 %v2502, 0.0
      %v2535 = vmax.f32 %v2503, 0.0
      %v2536 = vmax.f32 %v2504, 0.0
      %2569 = vrot.lane.b32.xlu0 %v2505, 4
      %v2570 = vpop.permute.xlu0 %2569
      %2571 = vrot.lane.b32.xlu0 %v2506, 4
      %v2572 = vpop.permute.xlu0 %2571
      %2573 = vrot.lane.b32.xlu0 %v2507, 4
      %v2574 = vpop.permute.xlu0 %2573
      %2575 = vrot.lane.b32.xlu0 %v2508, 4
      %v2576 = vpop.permute.xlu0 %2575
      %2577 = vrot.lane.b32.xlu0 %v2509, 4
      %v2578 = vpop.permute.xlu0 %2577
      %2579 = vrot.lane.b32.xlu0 %v2510, 4
      %v2580 = vpop.permute.xlu0 %2579
      %2581 = vrot.lane.b32.xlu0 %v2511, 4
      %v2582 = vpop.permute.xlu0 %2581
      %2583 = vrot.lane.b32.xlu0 %v2512, 4
      %v2584 = vpop.permute.xlu0 %2583
      %2585 = vrot.lane.b32.xlu0 %v2513, 4
      %v2586 = vpop.permute.xlu0 %2585
      %2587 = vrot.lane.b32.xlu0 %v2514, 4
      %v2588 = vpop.permute.xlu0 %2587
      %2589 = vrot.lane.b32.xlu0 %v2515, 4
      %v2590 = vpop.permute.xlu0 %2589
      %2591 = vrot.lane.b32.xlu0 %v2516, 4
      %v2592 = vpop.permute.xlu0 %2591
      %2593 = vrot.lane.b32.xlu0 %v2517, 4
      %v2594 = vpop.permute.xlu0 %2593
      %2595 = vrot.lane.b32.xlu0 %v2518, 4
      %v2596 = vpop.permute.xlu0 %2595
      %2597 = vrot.lane.b32.xlu0 %v2519, 4
      %v2598 = vpop.permute.xlu0 %2597
      %2599 = vrot.lane.b32.xlu0 %v2520, 4
      %v2600 = vpop.permute.xlu0 %2599
      %2601 = vrot.lane.b32.xlu0 %v2521, 4
      %v2602 = vpop.permute.xlu0 %2601
      %2603 = vrot.lane.b32.xlu0 %v2522, 4
      %v2604 = vpop.permute.xlu0 %2603
      %2605 = vrot.lane.b32.xlu0 %v2523, 4
      %v2606 = vpop.permute.xlu0 %2605
      %2607 = vrot.lane.b32.xlu0 %v2524, 4
      %v2608 = vpop.permute.xlu0 %2607
      %2609 = vrot.lane.b32.xlu0 %v2525, 4
      %v2610 = vpop.permute.xlu0 %2609
      %2611 = vrot.lane.b32.xlu0 %v2526, 4
      %v2612 = vpop.permute.xlu0 %2611
      %2613 = vrot.lane.b32.xlu0 %v2527, 4
      %v2614 = vpop.permute.xlu0 %2613
      %2615 = vrot.lane.b32.xlu0 %v2528, 4
      %v2616 = vpop.permute.xlu0 %2615
      %2617 = vrot.lane.b32.xlu0 %v2529, 4
      %v2618 = vpop.permute.xlu0 %2617
      %2619 = vrot.lane.b32.xlu0 %v2530, 4
      %v2620 = vpop.permute.xlu0 %2619
      %2621 = vrot.lane.b32.xlu0 %v2531, 4
      %v2622 = vpop.permute.xlu0 %2621
      %2623 = vrot.lane.b32.xlu0 %v2532, 4
      %v2624 = vpop.permute.xlu0 %2623
      %2625 = vrot.lane.b32.xlu0 %v2533, 4
      %v2626 = vpop.permute.xlu0 %2625
      %2627 = vrot.lane.b32.xlu0 %v2534, 4
      %v2628 = vpop.permute.xlu0 %2627
      %2629 = vrot.lane.b32.xlu0 %v2535, 4
      %v2630 = vpop.permute.xlu0 %2629
      %2631 = vrot.lane.b32.xlu0 %v2536, 4
      %v2632 = vpop.permute.xlu0 %2631
      %v2665 = vsel %vm1527, %v1338, %v2570
      %v2666 = vsel %vm1527, %v1339, %v2572
      %v2667 = vsel %vm1527, %v1340, %v2574
      %v2668 = vsel %vm1527, %v1341, %v2576
      %v2669 = vsel %vm1527, %v1342, %v2578
      %v2670 = vsel %vm1527, %v1343, %v2580
      %v2671 = vsel %vm1527, %v1344, %v2582
      %v2672 = vsel %vm1527, %v1345, %v2584
      %v2673 = vsel %vm1527, %v1346, %v2586
      %v2674 = vsel %vm1527, %v1347, %v2588
      %v2675 = vsel %vm1527, %v1348, %v2590
      %v2676 = vsel %vm1527, %v1349, %v2592
      %v2677 = vsel %vm1527, %v1350, %v2594
      %v2678 = vsel %vm1527, %v1351, %v2596
      %v2679 = vsel %vm1527, %v1352, %v2598
      %v2680 = vsel %vm1527, %v1353, %v2600
      %v2681 = vsel %vm1527, %v1354, %v2602
      %v2682 = vsel %vm1527, %v1355, %v2604
      %v2683 = vsel %vm1527, %v1356, %v2606
      %v2684 = vsel %vm1527, %v1357, %v2608
      %v2685 = vsel %vm1527, %v1358, %v2610
      %v2686 = vsel %vm1527, %v1359, %v2612
      %v2687 = vsel %vm1527, %v1360, %v2614
      %v2688 = vsel %vm1527, %v1361, %v2616
      %v2689 = vsel %vm1527, %v1362, %v2618
      %v2690 = vsel %vm1527, %v1363, %v2620
      %v2691 = vsel %vm1527, %v1364, %v2622
      %v2692 = vsel %vm1527, %v1365, %v2624
      %v2693 = vsel %vm1527, %v1366, %v2626
      %v2694 = vsel %vm1527, %v1367, %v2628
      %v2695 = vsel %vm1527, %v1368, %v2630
      %v2696 = vsel %vm1527, %v1369, %v2632
      %vm2697 = vcmask 64512
      %2698 = vst.msk [vmem:[%s445] sm:$0xff] %vm2697, %v2665
      %2699 = vst.msk [vmem:[%s445 + $0x8] sm:$0xff] %vm2697, %v2666
      %2700 = vst.msk [vmem:[%s445 + $0x10] sm:$0xff] %vm2697, %v2667
      %2701 = vst.msk [vmem:[%s445 + $0x18] sm:$0xff] %vm2697, %v2668
      %2702 = vst.msk [vmem:[%s445 + $0x20] sm:$0xff] %vm2697, %v2669
      %2703 = vst.msk [vmem:[%s445 + $0x28] sm:$0xff] %vm2697, %v2670
      %2704 = vst.msk [vmem:[%s445 + $0x30] sm:$0xff] %vm2697, %v2671
      %2705 = vst.msk [vmem:[%s445 + $0x38] sm:$0xff] %vm2697, %v2672
      %2706 = vst.msk [vmem:[%s445 + $0x40] sm:$0xff] %vm2697, %v2673
      %2707 = vst.msk [vmem:[%s445 + $0x48] sm:$0xff] %vm2697, %v2674
      %2708 = vst.msk [vmem:[%s445 + $0x50] sm:$0xff] %vm2697, %v2675
      %2709 = vst.msk [vmem:[%s445 + $0x58] sm:$0xff] %vm2697, %v2676
      %2710 = vst.msk [vmem:[%s445 + $0x60] sm:$0xff] %vm2697, %v2677
      %2711 = vst.msk [vmem:[%s445 + $0x68] sm:$0xff] %vm2697, %v2678
      %2712 = vst.msk [vmem:[%s445 + $0x70] sm:$0xff] %vm2697, %v2679
      %2713 = vst.msk [vmem:[%s445 + $0x78] sm:$0xff] %vm2697, %v2680
      %2714 = vst.msk [vmem:[%s445 + $0x80] sm:$0xff] %vm2697, %v2681
      %2715 = vst.msk [vmem:[%s445 + $0x88] sm:$0xff] %vm2697, %v2682
      %2716 = vst.msk [vmem:[%s445 + $0x90] sm:$0xff] %vm2697, %v2683
      %2717 = vst.msk [vmem:[%s445 + $0x98] sm:$0xff] %vm2697, %v2684
      %2718 = vst.msk [vmem:[%s445 + $0xa0] sm:$0xff] %vm2697, %v2685
      %2719 = vst.msk [vmem:[%s445 + $0xa8] sm:$0xff] %vm2697, %v2686
      %2720 = vst.msk [vmem:[%s445 + $0xb0] sm:$0xff] %vm2697, %v2687
      %2721 = vst.msk [vmem:[%s445 + $0xb8] sm:$0xff] %vm2697, %v2688
      %2722 = vst.msk [vmem:[%s445 + $0xc0] sm:$0xff] %vm2697, %v2689
      %2723 = vst.msk [vmem:[%s445 + $0xc8] sm:$0xff] %vm2697, %v2690
      %2724 = vst.msk [vmem:[%s445 + $0xd0] sm:$0xff] %vm2697, %v2691
      %2725 = vst.msk [vmem:[%s445 + $0xd8] sm:$0xff] %vm2697, %v2692
      %2726 = vst.msk [vmem:[%s445 + $0xe0] sm:$0xff] %vm2697, %v2693
      %2727 = vst.msk [vmem:[%s445 + $0xe8] sm:$0xff] %vm2697, %v2694
      %2728 = vst.msk [vmem:[%s445 + $0xf0] sm:$0xff] %vm2697, %v2695
      %2729 = vst.msk [vmem:[%s445 + $0xf8] sm:$0xff] %vm2697, %v2696
      %s2730 = smul.u32 16, %s23
      %p2731 = scmp.lt.s32.totalorder %s22, 1
      %s2732 = scalar_select %p2731, %s22, 1
      %p2733 = scmp.lt.s32.totalorder %s2730, 15
      %s2734 = scalar_select %p2733, %s2730, 15
      %s2735 = smul.addr %s2734, 2
      %s2736 = smul.addr %s2732, 32
      %s2737 = sadd.s32 %s2735, %s2736
      %s2738 = smul.addr %s2737, 8
      %s2739 = scalar_lea.vmem %s7, %s2738
      // Predicated region
      $region49: #{tpu_custom_call.1} parent=47 // pred_check
        %p2740 = pneg %p234
      $region50: #{tpu_custom_call.1} parent=47 // pred_check_branch
        %2742 = sbr.rel (%p2740) target = $region52
      $region51: #{tpu_custom_call.1} parent=47 // pred_region
        %s2743 = smul.u32 16, %s23
      $region52: #{tpu_custom_call.1} parent=47 // pred_fallthru
        _
    $region48: #{tpu_custom_call.1} parent=5 // pred_fallthru
      _
    %p2744 = scmp.le.s32.totalorder 2, %s13
    // Predicated region
    $region53: #{tpu_custom_call.1} parent=5 // pred_check
      %p2745 = pneg %p2744
    $region54: #{tpu_custom_call.1} parent=5 // pred_check_branch
      %2747 = sbr.rel (%p2745) target = $region56
    $region55: #{tpu_custom_call.1} parent=5 // pred_region
      %s2748 = ssub.s32 %s13, 2
      // Predicated region
      $region57: #{tpu_custom_call.1} parent=55 // pred_check
        %p2749 = pneg %p240
      $region58: #{tpu_custom_call.1} parent=55 // pred_check_branch
        %2751 = sbr.rel (%p2749) target = $region60
      $region59: #{tpu_custom_call.1} parent=55 // pred_region
        %s2752 = smul.u32 16, %s25
        %p2753 = scmp.lt.s32.totalorder %s24, 1
        %s2754 = scalar_select %p2753, %s24, 1
        %p2755 = scmp.lt.s32.totalorder %s2752, 15
        %s2756 = scalar_select %p2755, %s2752, 15
        %s2757 = smul.addr %s2756, 2
        %s2758 = smul.addr %s2754, 32
        %s2759 = sadd.s32 %s2757, %s2758
        %s2760 = smul.addr %s2759, 8
        %s2761 = scalar_lea.vmem %s7, %s2760
      $region60: #{tpu_custom_call.1} parent=55 // pred_fallthru
        _
    $region56: #{tpu_custom_call.1} parent=5 // pred_fallthru
      _
  $region6: #{tpu_custom_call.1} parent=0 // loop_footer
    %s17 = sadd.s32 1, %s13
  $region7: #{tpu_custom_call.1} parent=0 // loop_footer_branch
    %12 = sbr.rel target = $region3
  $region8: #{tpu_custom_call.1} parent=0 // loop_exit
    _

</llo_original>
